<compile_context>
chip_gen: v5e
topology: v5e:2x2
jax: 0.10.0
libtpu: 0.0.40
codegen_flags: <defaults>
</compile_context>

<pallas_src>
import jax
import jax.numpy as jnp
from jax import lax
from jax.experimental import pallas as pl
from jax.experimental.pallas import tpu as pltpu


def _sig_pooling_kernel(img_ref, key_ref, qry_ref,
                        w_iqik_ref, b_iqik_ref,
                        w_q_ref, b_q_ref,
                        w_k_ref, b_k_ref,
                        seg_ref, segT_ref, inv_tau_ref,
                        out_ref):
    # img_ref/key_ref: (TB*N, H), qry_ref: (TB*N, P)  -- batch*token rows.
    h = w_q_ref.shape[1]
    img = img_ref[...]

    # Fused img-side projections: one MXU pass producing [iq || ik].
    iqik = jnp.dot(img, w_iqik_ref[...],
                   preferred_element_type=jnp.float32) + b_iqik_ref[...]
    iq = iqik[:, :h]
    ik = iqik[:, h:]
    q = jnp.dot(qry_ref[...], w_q_ref[...],
                preferred_element_type=jnp.float32) + b_q_ref[...]
    k = jnp.dot(key_ref[...], w_k_ref[...],
                preferred_element_type=jnp.float32) + b_k_ref[...]

    eps = jnp.float32(1e-8)

    def cos_sim(a, b):
        # torch.F.cosine_similarity(dim=-1): (a.b) / max(|a|*|b|, eps).
        # Kept as exact f32 sqrt/divide: tau=0.01 amplifies any approx error.
        num = jnp.sum(a * b, axis=-1, keepdims=True)
        na = jnp.sqrt(jnp.sum(a * a, axis=-1, keepdims=True))
        nb = jnp.sqrt(jnp.sum(b * b, axis=-1, keepdims=True))
        return num / jnp.maximum(na * nb, eps)

    inv_tau = inv_tau_ref[0, 0]
    score = (cos_sim(q, iq) - cos_sim(k, ik)) * inv_tau            # (TB*N, 1)

    # Per-batch softmax over the N tokens -- reshape/transpose-free using the
    # one-hot row->segment matrix segT (TB*N, TB): masked sublane reductions
    # give per-segment max/denominator, then a one-hot weighted lane-sum maps
    # them back to rows.  Math is identical to the reference softmax.
    segT = segT_ref[...]                                           # (TB*N, TB)
    in_seg = segT > jnp.float32(0.5)
    seg_max = jnp.max(jnp.where(in_seg, score, -jnp.inf),
                      axis=0, keepdims=True)                       # (1, TB)
    row_max = jnp.sum(segT * seg_max, axis=1, keepdims=True)       # (TB*N, 1)
    e = jnp.exp(score - row_max)
    seg_den = jnp.sum(segT * e, axis=0, keepdims=True)             # (1, TB)
    row_den = jnp.sum(segT * seg_den, axis=1, keepdims=True)       # (TB*N, 1)
    # Softmax normalizer via EUP reciprocal (error is not tau-amplified here).
    mask = e * pl.reciprocal(row_den, approx=True)

    # Weighted pooling over tokens: pooled[b] = sum_n mask[b,n] * img[b,n,:].
    weighted = mask * img.astype(jnp.float32)                      # (TB*N, H)
    pooled = jnp.dot(seg_ref[...], weighted,
                     preferred_element_type=jnp.float32)           # (TB, H)
    out_ref[...] = pooled.astype(out_ref.dtype)


def _pick_tb(B, N, H, P, act_item, weight_bytes):
    """Largest batch tile satisfying block-shape rules and a VMEM budget."""
    # Per-batch-element VMEM: double-buffered activation/output blocks plus
    # f32 in-kernel intermediates (iqik, q, k, weighted).
    per_b = 2 * N * (2 * H + P) * act_item + 2 * H * act_item + N * 5 * H * 4
    budget = max((48 << 20) - 2 * weight_bytes, per_b)
    cap = max(1, budget // per_b)
    divisors = [d for d in range(1, B + 1) if B % d == 0]
    # Block legality: last-two dims of block_shape must be multiples of (8,128)
    # or equal the full array dims -> TB % 8 == 0 (=> TB*N % 8 == 0) or TB == B.
    valid = [d for d in divisors if d <= cap and (d == B or d % 8 == 0)]
    if not valid:
        return B
    multi = [d for d in valid if B // d >= 2 and d >= 8]   # keep both v7x TCs busy
    return max(multi) if multi else max(valid)


def sig_pooling(img_embs, key_frame_expanded, query_expanded,
                w_iq, b_iq, w_ik, b_ik, w_q, b_q, w_k, b_k, tau):
    """Pallas implementation of SigPooling.forward.

    img_embs:            [B, N, H]
    key_frame_expanded:  [B, N, H]
    query_expanded:      [B, N, P]   (P = composer_proj_dim)
    weights are [in, out] (torch W^T); biases are [1, out]; tau is [1, 1].
    Returns [B, H].
    """
    B, N, H = img_embs.shape
    P = query_expanded.shape[-1]
    act_item = img_embs.dtype.itemsize
    w_item = w_iq.dtype.itemsize

    # Fuse the two img-side projections (shared LHS) into one [H, 2H] matmul.
    w_iqik = jnp.concatenate([w_iq, w_ik], axis=1)      # (H, 2H)
    b_iqik = jnp.concatenate([b_iq, b_ik], axis=1)      # (1, 2H)
    inv_tau = (1.0 / tau.astype(jnp.float32)).reshape(1, 1)

    weight_bytes = (w_iqik.size + b_iqik.size + w_q.size + b_q.size
                    + w_k.size + b_k.size) * w_item
    TB = _pick_tb(B, N, H, P, act_item, weight_bytes)
    TBN = TB * N
    grid = (B // TB,)

    # Host-side flattening (free XLA reshape): the kernel's matmul LHS gets
    # TB*N rows, filling the MXU sublanes even for small per-image token counts.
    img2 = img_embs.reshape(B * N, H)
    key2 = key_frame_expanded.reshape(B * N, H)
    qry2 = query_expanded.reshape(B * N, P)

    # One-hot segment matrices (grid-invariant, VMEM-resident constants).
    seg_ids = jnp.arange(TBN, dtype=jnp.int32) // N
    seg = (jnp.arange(TB, dtype=jnp.int32)[:, None]
           == seg_ids[None, :]).astype(jnp.float32)     # (TB, TB*N)
    segT = seg.T                                        # (TB*N, TB)

    const_bytes = weight_bytes + (seg.size + segT.size) * 4 + 4
    block_bytes = (TBN * (2 * H + P) + TB * H) * act_item
    interm_bytes = TBN * (5 * H + 3 * TB + 8) * 4
    est = 2 * const_bytes + 2 * block_bytes + interm_bytes
    vmem_limit = int(min(max(2 * est, 32 << 20), 64 << 20))

    args = (img2, key2, qry2, w_iqik, b_iqik, w_q, b_q, w_k, b_k,
            seg, segT, inv_tau)
    out_shape = jax.ShapeDtypeStruct((B, H), img_embs.dtype)

    def build(optimized):
        def rep(shape):
            if optimized:
                return pl.BlockSpec(shape, lambda b, _s=shape: (0,) * len(_s),
                                    pipeline_mode=pl.Buffered(1))
            return pl.BlockSpec(shape, lambda b, _s=shape: (0,) * len(_s))

        if optimized:
            tau_spec = pl.BlockSpec(memory_space=pltpu.MemorySpace.SMEM)
        else:
            tau_spec = rep((1, 1))

        in_specs = [
            pl.BlockSpec((TBN, H), lambda b: (b, 0)),    # img (flattened)
            pl.BlockSpec((TBN, H), lambda b: (b, 0)),    # key_frame (flattened)
            pl.BlockSpec((TBN, P), lambda b: (b, 0)),    # query (flattened)
            rep((H, 2 * H)), rep((1, 2 * H)),            # fused linear_iq||ik
            rep((P, H)), rep((1, H)),                    # linear_q
            rep((H, H)), rep((1, H)),                    # linear_k
            rep((TB, TBN)), rep((TBN, TB)),              # segment one-hots
            tau_spec,                                    # 1/tau scalar
        ]
        out_spec = pl.BlockSpec((TB, H), lambda b: (b, 0))

        return pl.pallas_call(
            _sig_pooling_kernel,
            out_shape=out_shape,
            grid=grid,
            in_specs=in_specs,
            out_specs=out_spec,
            compiler_params=pltpu.CompilerParams(
                dimension_semantics=("parallel",),
                vmem_limit_bytes=vmem_limit,
            ),
        )

    try:
        out = build(True)(*args)
        jax.block_until_ready(out)
        return out
    except Exception:
        # Fallback: identical kernel without Buffered(1)/SMEM scalar specs
        # (for jax builds where those knobs are unavailable).
        return build(False)(*args)


def sig_pooling_ref(img, kf, qry, w_iq, b_iq, w_ik, b_ik, w_q, b_q, w_k, b_k, tau):
    """Pure-JAX reference (mirrors the PyTorch forward)."""
    hp = lax.Precision.HIGHEST
    iq = jnp.dot(img, w_iq, precision=hp) + b_iq
    ik = jnp.dot(img, w_ik, precision=hp) + b_ik
    q = jnp.dot(qry, w_q, precision=hp) + b_q
    k = jnp.dot(kf, w_k, precision=hp) + b_k

    def cos(a, b):
        num = jnp.sum(a * b, axis=-1)
        den = jnp.maximum(jnp.linalg.norm(a, axis=-1) * jnp.linalg.norm(b, axis=-1), 1e-8)
        return num / den

    score = (cos(q, iq) - cos(k, ik)) / tau[0, 0]          # [B, N]
    mask = jax.nn.softmax(score, axis=-1)[..., None]       # [B, N, 1]
    return jnp.sum(mask * img, axis=1)                     # [B, H]


if __name__ == "__main__":
    # batch, tokens/frame, hidden_size, composer_proj_dim
    B, N, H, P = 16, 8, 128, 64
    keys = jax.random.split(jax.random.PRNGKey(0), 11)

    img = jax.random.normal(keys[0], (B, N, H), jnp.float32)
    kf = jax.random.normal(keys[1], (B, N, H), jnp.float32)
    qry = jax.random.normal(keys[2], (B, N, P), jnp.float32)

    def linear_init(kw, kb, fan_in, fan_out):
        lim = 1.0 / (fan_in ** 0.5)
        w = jax.random.uniform(kw, (fan_in, fan_out), jnp.float32, -lim, lim)
        b = jax.random.uniform(kb, (1, fan_out), jnp.float32, -lim, lim)
        return w, b

    w_iq, b_iq = linear_init(keys[3], keys[4], H, H)
    w_ik, b_ik = linear_init(keys[5], keys[6], H, H)
    w_q, b_q = linear_init(keys[7], keys[8], P, H)
    w_k, b_k = linear_init(keys[9], keys[10], H, H)
    tau = jnp.full((1, 1), 0.01, jnp.float32)   # torch.tensor(0.01) parameter

    out = sig_pooling(img, kf, qry, w_iq, b_iq, w_ik, b_ik, w_q, b_q, w_k, b_k, tau)
    out = jax.block_until_ready(out)

    ref = sig_pooling_ref(img, kf, qry, w_iq, b_iq, w_ik, b_ik, w_q, b_q, w_k, b_k, tau)

    assert out.shape == (B, H), (out.shape, (B, H))
    assert out.dtype == img.dtype, (out.dtype, img.dtype)
    max_err = float(jnp.max(jnp.abs(out - ref)))
    # tau = 0.01 amplifies tiny matmul-precision deltas into the softmax logits,
    # so use a modest tolerance; structural bugs produce O(1) errors.
    assert jnp.allclose(out, ref, rtol=5e-2, atol=5e-2), f"max_err={max_err}"

    print("KERNEL_OK")
</pallas_src>

<mosaic_0001>
module attributes {stable_mosaic.version = 11 : i64} {
  func.func @_sig_pooling_kernel(%arg0: i32, %arg1: memref<64x128xf32, #tpu.memory_space<vmem>>, %arg2: memref<64x128xf32, #tpu.memory_space<vmem>>, %arg3: memref<64x64xf32, #tpu.memory_space<vmem>>, %arg4: memref<128x256xf32, #tpu.memory_space<vmem>>, %arg5: memref<1x256xf32, #tpu.memory_space<vmem>>, %arg6: memref<64x128xf32, #tpu.memory_space<vmem>>, %arg7: memref<1x128xf32, #tpu.memory_space<vmem>>, %arg8: memref<128x128xf32, #tpu.memory_space<vmem>>, %arg9: memref<1x128xf32, #tpu.memory_space<vmem>>, %arg10: memref<8x64xf32, #tpu.memory_space<vmem>>, %arg11: memref<64x8xf32, #tpu.memory_space<vmem>>, %arg12: memref<1x1xf32, #tpu.memory_space<smem>>, %arg13: memref<8x128xf32, #tpu.memory_space<vmem>>) attributes {dimension_semantics = [#tpu.dimension_semantics<parallel>], iteration_bounds = array<i64: 2>, scalar_prefetch = 0 : i64, scratch_operands = 0 : i64, tpu.core_type = #tpu.core_type<tc>, window_params = [{transform_indices = @transform_0, window_bounds = array<i64: 64, 128>}, {transform_indices = @transform_1, window_bounds = array<i64: 64, 128>}, {transform_indices = @transform_2, window_bounds = array<i64: 64, 64>}, {pipeline_mode = #tpu.pipeline_mode<synchronous>, transform_indices = @transform_3, window_bounds = array<i64: 128, 256>}, {pipeline_mode = #tpu.pipeline_mode<synchronous>, transform_indices = @transform_4, window_bounds = array<i64: 1, 256>}, {pipeline_mode = #tpu.pipeline_mode<synchronous>, transform_indices = @transform_5, window_bounds = array<i64: 64, 128>}, {pipeline_mode = #tpu.pipeline_mode<synchronous>, transform_indices = @transform_6, window_bounds = array<i64: 1, 128>}, {pipeline_mode = #tpu.pipeline_mode<synchronous>, transform_indices = @transform_7, window_bounds = array<i64: 128, 128>}, {pipeline_mode = #tpu.pipeline_mode<synchronous>, transform_indices = @transform_8, window_bounds = array<i64: 1, 128>}, {pipeline_mode = #tpu.pipeline_mode<synchronous>, transform_indices = @transform_9, window_bounds = array<i64: 8, 64>}, {pipeline_mode = #tpu.pipeline_mode<synchronous>, transform_indices = @transform_10, window_bounds = array<i64: 64, 8>}, {transform_indices = @transform_11, window_bounds = array<i64: 1, 1>}, {transform_indices = @transform_12, window_bounds = array<i64: 8, 128>}]} {
    %c0 = arith.constant 0 : index
    %c0_0 = arith.constant 0 : index
    %0 = vector.load %arg1[%c0, %c0_0] : memref<64x128xf32, #tpu.memory_space<vmem>>, vector<64x128xf32>
    %c0_1 = arith.constant 0 : index
    %c0_2 = arith.constant 0 : index
    %1 = vector.load %arg4[%c0_1, %c0_2] : memref<128x256xf32, #tpu.memory_space<vmem>>, vector<128x256xf32>
    %cst = arith.constant dense<0.000000e+00> : vector<64x256xf32>
    %2 = tpu.matmul %0, %1, %cst {dimension_numbers = #tpu.dot_dimension_numbers<[1], [0], [0], [1], [0, 0, 1, 1], [], []>} : vector<64x128xf32>, vector<128x256xf32>, vector<64x256xf32> -> vector<64x256xf32>
    %c0_3 = arith.constant 0 : index
    %c0_4 = arith.constant 0 : index
    %3 = vector.load %arg5[%c0_3, %c0_4] : memref<1x256xf32, #tpu.memory_space<vmem>>, vector<1x256xf32>
    %4 = vector.broadcast %3 : vector<1x256xf32> to vector<64x256xf32>
    %5 = arith.addf %2, %4 : vector<64x256xf32>
    %6 = vector.extract_strided_slice %5 {offsets = [0, 0], sizes = [64, 128], strides = [1, 1]} : vector<64x256xf32> to vector<64x128xf32>
    %7 = vector.extract_strided_slice %5 {offsets = [0, 128], sizes = [64, 128], strides = [1, 1]} : vector<64x256xf32> to vector<64x128xf32>
    %c0_5 = arith.constant 0 : index
    %c0_6 = arith.constant 0 : index
    %8 = vector.load %arg3[%c0_5, %c0_6] : memref<64x64xf32, #tpu.memory_space<vmem>>, vector<64x64xf32>
    %c0_7 = arith.constant 0 : index
    %c0_8 = arith.constant 0 : index
    %9 = vector.load %arg6[%c0_7, %c0_8] : memref<64x128xf32, #tpu.memory_space<vmem>>, vector<64x128xf32>
    %cst_9 = arith.constant dense<0.000000e+00> : vector<64x128xf32>
    %10 = tpu.matmul %8, %9, %cst_9 {dimension_numbers = #tpu.dot_dimension_numbers<[1], [0], [0], [1], [0, 0, 1, 1], [], []>} : vector<64x64xf32>, vector<64x128xf32>, vector<64x128xf32> -> vector<64x128xf32>
    %c0_10 = arith.constant 0 : index
    %c0_11 = arith.constant 0 : index
    %11 = vector.load %arg7[%c0_10, %c0_11] : memref<1x128xf32, #tpu.memory_space<vmem>>, vector<1x128xf32>
    %12 = vector.broadcast %11 : vector<1x128xf32> to vector<64x128xf32>
    %13 = arith.addf %10, %12 : vector<64x128xf32>
    %c0_12 = arith.constant 0 : index
    %c0_13 = arith.constant 0 : index
    %14 = vector.load %arg2[%c0_12, %c0_13] : memref<64x128xf32, #tpu.memory_space<vmem>>, vector<64x128xf32>
    %c0_14 = arith.constant 0 : index
    %c0_15 = arith.constant 0 : index
    %15 = vector.load %arg8[%c0_14, %c0_15] : memref<128x128xf32, #tpu.memory_space<vmem>>, vector<128x128xf32>
    %cst_16 = arith.constant dense<0.000000e+00> : vector<64x128xf32>
    %16 = tpu.matmul %14, %15, %cst_16 {dimension_numbers = #tpu.dot_dimension_numbers<[1], [0], [0], [1], [0, 0, 1, 1], [], []>} : vector<64x128xf32>, vector<128x128xf32>, vector<64x128xf32> -> vector<64x128xf32>
    %c0_17 = arith.constant 0 : index
    %c0_18 = arith.constant 0 : index
    %17 = vector.load %arg9[%c0_17, %c0_18] : memref<1x128xf32, #tpu.memory_space<vmem>>, vector<1x128xf32>
    %18 = vector.broadcast %17 : vector<1x128xf32> to vector<64x128xf32>
    %19 = arith.addf %16, %18 : vector<64x128xf32>
    %c0_19 = arith.constant 0 : index
    %c0_20 = arith.constant 0 : index
    %20 = memref.load %arg12[%c0_19, %c0_20] : memref<1x1xf32, #tpu.memory_space<smem>>
    %21 = arith.mulf %13, %6 : vector<64x128xf32>
    %cst_21 = arith.constant dense<0.000000e+00> : vector<64xf32>
    %22 = vector.multi_reduction <add>, %21, %cst_21 [1] : vector<64x128xf32> to vector<64xf32>
    %23 = vector.shape_cast %22 : vector<64xf32> to vector<64x1xf32>
    %24 = arith.mulf %13, %13 : vector<64x128xf32>
    %cst_22 = arith.constant dense<0.000000e+00> : vector<64xf32>
    %25 = vector.multi_reduction <add>, %24, %cst_22 [1] : vector<64x128xf32> to vector<64xf32>
    %26 = vector.shape_cast %25 : vector<64xf32> to vector<64x1xf32>
    %27 = math.sqrt %26 : vector<64x1xf32>
    %28 = arith.mulf %6, %6 : vector<64x128xf32>
    %cst_23 = arith.constant dense<0.000000e+00> : vector<64xf32>
    %29 = vector.multi_reduction <add>, %28, %cst_23 [1] : vector<64x128xf32> to vector<64xf32>
    %30 = vector.shape_cast %29 : vector<64xf32> to vector<64x1xf32>
    %31 = math.sqrt %30 : vector<64x1xf32>
    %32 = arith.mulf %27, %31 : vector<64x1xf32>
    %cst_24 = arith.constant 9.99999993E-9 : f32
    %33 = vector.broadcast %cst_24 : f32 to vector<64x1xf32>
    %34 = arith.maximumf %32, %33 : vector<64x1xf32>
    %35 = arith.divf %23, %34 : vector<64x1xf32>
    %36 = arith.mulf %19, %7 : vector<64x128xf32>
    %cst_25 = arith.constant dense<0.000000e+00> : vector<64xf32>
    %37 = vector.multi_reduction <add>, %36, %cst_25 [1] : vector<64x128xf32> to vector<64xf32>
    %38 = vector.shape_cast %37 : vector<64xf32> to vector<64x1xf32>
    %39 = arith.mulf %19, %19 : vector<64x128xf32>
    %cst_26 = arith.constant dense<0.000000e+00> : vector<64xf32>
    %40 = vector.multi_reduction <add>, %39, %cst_26 [1] : vector<64x128xf32> to vector<64xf32>
    %41 = vector.shape_cast %40 : vector<64xf32> to vector<64x1xf32>
    %42 = math.sqrt %41 : vector<64x1xf32>
    %43 = arith.mulf %7, %7 : vector<64x128xf32>
    %cst_27 = arith.constant dense<0.000000e+00> : vector<64xf32>
    %44 = vector.multi_reduction <add>, %43, %cst_27 [1] : vector<64x128xf32> to vector<64xf32>
    %45 = vector.shape_cast %44 : vector<64xf32> to vector<64x1xf32>
    %46 = math.sqrt %45 : vector<64x1xf32>
    %47 = arith.mulf %42, %46 : vector<64x1xf32>
    %cst_28 = arith.constant 9.99999993E-9 : f32
    %48 = vector.broadcast %cst_28 : f32 to vector<64x1xf32>
    %49 = arith.maximumf %47, %48 : vector<64x1xf32>
    %50 = arith.divf %38, %49 : vector<64x1xf32>
    %51 = arith.subf %35, %50 : vector<64x1xf32>
    %52 = vector.broadcast %20 : f32 to vector<64x1xf32>
    %53 = arith.mulf %51, %52 : vector<64x1xf32>
    %c0_29 = arith.constant 0 : index
    %c0_30 = arith.constant 0 : index
    %54 = vector.load %arg11[%c0_29, %c0_30] : memref<64x8xf32, #tpu.memory_space<vmem>>, vector<64x8xf32>
    %cst_31 = arith.constant 5.000000e-01 : f32
    %55 = vector.broadcast %cst_31 : f32 to vector<64x8xf32>
    %56 = arith.cmpf ogt, %54, %55 : vector<64x8xf32>
    %cst_32 = arith.constant 0xFF800000 : f32
    %57 = vector.shape_cast %53 : vector<64x1xf32> to vector<64x1xf32>
    %58 = vector.broadcast %57 : vector<64x1xf32> to vector<64x8xf32>
    %59 = vector.broadcast %cst_32 : f32 to vector<64x8xf32>
    %60 = arith.select %56, %58, %59 : vector<64x8xi1>, vector<64x8xf32>
    %cst_33 = arith.constant dense<0xFF800000> : vector<8xf32>
    %61 = vector.multi_reduction <maximumf>, %60, %cst_33 [0] : vector<64x8xf32> to vector<8xf32>
    %62 = vector.shape_cast %61 : vector<8xf32> to vector<1x8xf32>
    %63 = vector.broadcast %62 : vector<1x8xf32> to vector<64x8xf32>
    %64 = arith.mulf %54, %63 : vector<64x8xf32>
    %cst_34 = arith.constant dense<0.000000e+00> : vector<64xf32>
    %65 = vector.multi_reduction <add>, %64, %cst_34 [1] : vector<64x8xf32> to vector<64xf32>
    %66 = vector.shape_cast %65 : vector<64xf32> to vector<64x1xf32>
    %67 = arith.subf %53, %66 : vector<64x1xf32>
    %68 = math.exp %67 : vector<64x1xf32>
    %69 = vector.broadcast %68 : vector<64x1xf32> to vector<64x8xf32>
    %70 = arith.mulf %54, %69 : vector<64x8xf32>
    %cst_35 = arith.constant dense<0.000000e+00> : vector<8xf32>
    %71 = vector.multi_reduction <add>, %70, %cst_35 [0] : vector<64x8xf32> to vector<8xf32>
    %72 = vector.shape_cast %71 : vector<8xf32> to vector<1x8xf32>
    %73 = vector.broadcast %72 : vector<1x8xf32> to vector<64x8xf32>
    %74 = arith.mulf %54, %73 : vector<64x8xf32>
    %cst_36 = arith.constant dense<0.000000e+00> : vector<64xf32>
    %75 = vector.multi_reduction <add>, %74, %cst_36 [1] : vector<64x8xf32> to vector<64xf32>
    %76 = vector.shape_cast %75 : vector<64xf32> to vector<64x1xf32>
    %77 = tpu.reciprocal %76 {approx = true} : vector<64x1xf32> -> vector<64x1xf32>
    %78 = arith.mulf %68, %77 : vector<64x1xf32>
    %79 = vector.broadcast %78 : vector<64x1xf32> to vector<64x128xf32>
    %80 = arith.mulf %79, %0 : vector<64x128xf32>
    %c0_37 = arith.constant 0 : index
    %c0_38 = arith.constant 0 : index
    %81 = vector.load %arg10[%c0_37, %c0_38] : memref<8x64xf32, #tpu.memory_space<vmem>>, vector<8x64xf32>
    %cst_39 = arith.constant dense<0.000000e+00> : vector<8x128xf32>
    %82 = tpu.matmul %81, %80, %cst_39 {dimension_numbers = #tpu.dot_dimension_numbers<[1], [0], [0], [1], [0, 0, 1, 1], [], []>} : vector<8x64xf32>, vector<64x128xf32>, vector<8x128xf32> -> vector<8x128xf32>
    %c0_40 = arith.constant 0 : index
    %c0_41 = arith.constant 0 : index
    %83 = vector.load %arg13[%c0_40, %c0_41] : memref<8x128xf32, #tpu.memory_space<vmem>>, vector<8x128xf32>
    tpu.vector_store %arg13[%c0_40, %c0_41], %82 {strides = array<i32>} : memref<8x128xf32, #tpu.memory_space<vmem>>, vector<8x128xf32>,
    return
  }
  func.func @transform_0(%arg0: i32) -> (i32, i32) {
    %c0_i32 = arith.constant 0 : i32
    %c0_i32_0 = arith.constant 0 : i32
    return %arg0, %c0_i32 : i32, i32
  }
  func.func @transform_1(%arg0: i32) -> (i32, i32) {
    %c0_i32 = arith.constant 0 : i32
    %c0_i32_0 = arith.constant 0 : i32
    return %arg0, %c0_i32 : i32, i32
  }
  func.func @transform_2(%arg0: i32) -> (i32, i32) {
    %c0_i32 = arith.constant 0 : i32
    %c0_i32_0 = arith.constant 0 : i32
    return %arg0, %c0_i32 : i32, i32
  }
  func.func @transform_3(%arg0: i32) -> (i32, i32) {
    %c0_i32 = arith.constant 0 : i32
    %c0_i32_0 = arith.constant 0 : i32
    %c0_i32_1 = arith.constant 0 : i32
    return %c0_i32, %c0_i32_0 : i32, i32
  }
  func.func @transform_4(%arg0: i32) -> (i32, i32) {
    %c0_i32 = arith.constant 0 : i32
    %c0_i32_0 = arith.constant 0 : i32
    %c0_i32_1 = arith.constant 0 : i32
    return %c0_i32, %c0_i32_0 : i32, i32
  }
  func.func @transform_5(%arg0: i32) -> (i32, i32) {
    %c0_i32 = arith.constant 0 : i32
    %c0_i32_0 = arith.constant 0 : i32
    %c0_i32_1 = arith.constant 0 : i32
    return %c0_i32, %c0_i32_0 : i32, i32
  }
  func.func @transform_6(%arg0: i32) -> (i32, i32) {
    %c0_i32 = arith.constant 0 : i32
    %c0_i32_0 = arith.constant 0 : i32
    %c0_i32_1 = arith.constant 0 : i32
    return %c0_i32, %c0_i32_0 : i32, i32
  }
  func.func @transform_7(%arg0: i32) -> (i32, i32) {
    %c0_i32 = arith.constant 0 : i32
    %c0_i32_0 = arith.constant 0 : i32
    %c0_i32_1 = arith.constant 0 : i32
    return %c0_i32, %c0_i32_0 : i32, i32
  }
  func.func @transform_8(%arg0: i32) -> (i32, i32) {
    %c0_i32 = arith.constant 0 : i32
    %c0_i32_0 = arith.constant 0 : i32
    %c0_i32_1 = arith.constant 0 : i32
    return %c0_i32, %c0_i32_0 : i32, i32
  }
  func.func @transform_9(%arg0: i32) -> (i32, i32) {
    %c0_i32 = arith.constant 0 : i32
    %c0_i32_0 = arith.constant 0 : i32
    %c0_i32_1 = arith.constant 0 : i32
    return %c0_i32, %c0_i32_0 : i32, i32
  }
  func.func @transform_10(%arg0: i32) -> (i32, i32) {
    %c0_i32 = arith.constant 0 : i32
    %c0_i32_0 = arith.constant 0 : i32
    %c0_i32_1 = arith.constant 0 : i32
    return %c0_i32, %c0_i32_0 : i32, i32
  }
  func.func @transform_11(%arg0: i32) -> (i32, i32) {
    %c0_i32 = arith.constant 0 : i32
    %c0_i32_0 = arith.constant 0 : i32
    %c0_i32_1 = arith.constant 0 : i32
    return %c0_i32, %c0_i32_0 : i32, i32
  }
  func.func @transform_12(%arg0: i32) -> (i32, i32) {
    %c0_i32 = arith.constant 0 : i32
    %c0_i32_0 = arith.constant 0 : i32
    return %arg0, %c0_i32 : i32, i32
  }
}

module attributes {stable_mosaic.version = 11 : i64} {
  func.func @_sig_pooling_kernel(%arg0: i32, %arg1: memref<64x128xf32, #tpu.memory_space<vmem>>, %arg2: memref<64x128xf32, #tpu.memory_space<vmem>>, %arg3: memref<64x64xf32, #tpu.memory_space<vmem>>, %arg4: memref<128x256xf32, #tpu.memory_space<vmem>>, %arg5: memref<1x256xf32, #tpu.memory_space<vmem>>, %arg6: memref<64x128xf32, #tpu.memory_space<vmem>>, %arg7: memref<1x128xf32, #tpu.memory_space<vmem>>, %arg8: memref<128x128xf32, #tpu.memory_space<vmem>>, %arg9: memref<1x128xf32, #tpu.memory_space<vmem>>, %arg10: memref<8x64xf32, #tpu.memory_space<vmem>>, %arg11: memref<64x8xf32, #tpu.memory_space<vmem>>, %arg12: memref<1x1xf32, #tpu.memory_space<vmem>>, %arg13: memref<8x128xf32, #tpu.memory_space<vmem>>) attributes {dimension_semantics = [#tpu.dimension_semantics<parallel>], iteration_bounds = array<i64: 2>, scalar_prefetch = 0 : i64, scratch_operands = 0 : i64, tpu.core_type = #tpu.core_type<tc>, window_params = [{transform_indices = @transform_0, window_bounds = array<i64: 64, 128>}, {transform_indices = @transform_1, window_bounds = array<i64: 64, 128>}, {transform_indices = @transform_2, window_bounds = array<i64: 64, 64>}, {pipeline_mode = #tpu.pipeline_mode<synchronous>, transform_indices = @transform_3, window_bounds = array<i64: 128, 256>}, {pipeline_mode = #tpu.pipeline_mode<synchronous>, transform_indices = @transform_4, window_bounds = array<i64: 1, 256>}, {pipeline_mode = #tpu.pipeline_mode<synchronous>, transform_indices = @transform_5, window_bounds = array<i64: 64, 128>}, {pipeline_mode = #tpu.pipeline_mode<synchronous>, transform_indices = @transform_6, window_bounds = array<i64: 1, 128>}, {pipeline_mode = #tpu.pipeline_mode<synchronous>, transform_indices = @transform_7, window_bounds = array<i64: 128, 128>}, {pipeline_mode = #tpu.pipeline_mode<synchronous>, transform_indices = @transform_8, window_bounds = array<i64: 1, 128>}, {pipeline_mode = #tpu.pipeline_mode<synchronous>, transform_indices = @transform_9, window_bounds = array<i64: 8, 64>}, {pipeline_mode = #tpu.pipeline_mode<synchronous>, transform_indices = @transform_10, window_bounds = array<i64: 64, 8>}, {pipeline_mode = #tpu.pipeline_mode<synchronous>, transform_indices = @transform_11, window_bounds = array<i64: 1, 1>}, {transform_indices = @transform_12, window_bounds = array<i64: 8, 128>}]} {
    %c0 = arith.constant 0 : index
    %c0_0 = arith.constant 0 : index
    %0 = vector.load %arg1[%c0, %c0_0] : memref<64x128xf32, #tpu.memory_space<vmem>>, vector<64x128xf32>
    %c0_1 = arith.constant 0 : index
    %c0_2 = arith.constant 0 : index
    %1 = vector.load %arg4[%c0_1, %c0_2] : memref<128x256xf32, #tpu.memory_space<vmem>>, vector<128x256xf32>
    %cst = arith.constant dense<0.000000e+00> : vector<64x256xf32>
    %2 = tpu.matmul %0, %1, %cst {dimension_numbers = #tpu.dot_dimension_numbers<[1], [0], [0], [1], [0, 0, 1, 1], [], []>} : vector<64x128xf32>, vector<128x256xf32>, vector<64x256xf32> -> vector<64x256xf32>
    %c0_3 = arith.constant 0 : index
    %c0_4 = arith.constant 0 : index
    %3 = vector.load %arg5[%c0_3, %c0_4] : memref<1x256xf32, #tpu.memory_space<vmem>>, vector<1x256xf32>
    %4 = vector.broadcast %3 : vector<1x256xf32> to vector<64x256xf32>
    %5 = arith.addf %2, %4 : vector<64x256xf32>
    %6 = vector.extract_strided_slice %5 {offsets = [0, 0], sizes = [64, 128], strides = [1, 1]} : vector<64x256xf32> to vector<64x128xf32>
    %7 = vector.extract_strided_slice %5 {offsets = [0, 128], sizes = [64, 128], strides = [1, 1]} : vector<64x256xf32> to vector<64x128xf32>
    %c0_5 = arith.constant 0 : index
    %c0_6 = arith.constant 0 : index
    %8 = vector.load %arg3[%c0_5, %c0_6] : memref<64x64xf32, #tpu.memory_space<vmem>>, vector<64x64xf32>
    %c0_7 = arith.constant 0 : index
    %c0_8 = arith.constant 0 : index
    %9 = vector.load %arg6[%c0_7, %c0_8] : memref<64x128xf32, #tpu.memory_space<vmem>>, vector<64x128xf32>
    %cst_9 = arith.constant dense<0.000000e+00> : vector<64x128xf32>
    %10 = tpu.matmul %8, %9, %cst_9 {dimension_numbers = #tpu.dot_dimension_numbers<[1], [0], [0], [1], [0, 0, 1, 1], [], []>} : vector<64x64xf32>, vector<64x128xf32>, vector<64x128xf32> -> vector<64x128xf32>
    %c0_10 = arith.constant 0 : index
    %c0_11 = arith.constant 0 : index
    %11 = vector.load %arg7[%c0_10, %c0_11] : memref<1x128xf32, #tpu.memory_space<vmem>>, vector<1x128xf32>
    %12 = vector.broadcast %11 : vector<1x128xf32> to vector<64x128xf32>
    %13 = arith.addf %10, %12 : vector<64x128xf32>
    %c0_12 = arith.constant 0 : index
    %c0_13 = arith.constant 0 : index
    %14 = vector.load %arg2[%c0_12, %c0_13] : memref<64x128xf32, #tpu.memory_space<vmem>>, vector<64x128xf32>
    %c0_14 = arith.constant 0 : index
    %c0_15 = arith.constant 0 : index
    %15 = vector.load %arg8[%c0_14, %c0_15] : memref<128x128xf32, #tpu.memory_space<vmem>>, vector<128x128xf32>
    %cst_16 = arith.constant dense<0.000000e+00> : vector<64x128xf32>
    %16 = tpu.matmul %14, %15, %cst_16 {dimension_numbers = #tpu.dot_dimension_numbers<[1], [0], [0], [1], [0, 0, 1, 1], [], []>} : vector<64x128xf32>, vector<128x128xf32>, vector<64x128xf32> -> vector<64x128xf32>
    %c0_17 = arith.constant 0 : index
    %c0_18 = arith.constant 0 : index
    %17 = vector.load %arg9[%c0_17, %c0_18] : memref<1x128xf32, #tpu.memory_space<vmem>>, vector<1x128xf32>
    %18 = vector.broadcast %17 : vector<1x128xf32> to vector<64x128xf32>
    %19 = arith.addf %16, %18 : vector<64x128xf32>
    %c0_19 = arith.constant 0 : index
    %c0_20 = arith.constant 0 : index
    %20 = vector.load %arg12[%c0_19, %c0_20] : memref<1x1xf32, #tpu.memory_space<vmem>>, vector<1x1xf32>
    %21 = vector.extract %20[0, 0] : f32 from vector<1x1xf32>
    %22 = arith.mulf %13, %6 : vector<64x128xf32>
    %cst_21 = arith.constant dense<0.000000e+00> : vector<64xf32>
    %23 = vector.multi_reduction <add>, %22, %cst_21 [1] : vector<64x128xf32> to vector<64xf32>
    %24 = vector.shape_cast %23 : vector<64xf32> to vector<64x1xf32>
    %25 = arith.mulf %13, %13 : vector<64x128xf32>
    %cst_22 = arith.constant dense<0.000000e+00> : vector<64xf32>
    %26 = vector.multi_reduction <add>, %25, %cst_22 [1] : vector<64x128xf32> to vector<64xf32>
    %27 = vector.shape_cast %26 : vector<64xf32> to vector<64x1xf32>
    %28 = math.sqrt %27 : vector<64x1xf32>
    %29 = arith.mulf %6, %6 : vector<64x128xf32>
    %cst_23 = arith.constant dense<0.000000e+00> : vector<64xf32>
    %30 = vector.multi_reduction <add>, %29, %cst_23 [1] : vector<64x128xf32> to vector<64xf32>
    %31 = vector.shape_cast %30 : vector<64xf32> to vector<64x1xf32>
    %32 = math.sqrt %31 : vector<64x1xf32>
    %33 = arith.mulf %28, %32 : vector<64x1xf32>
    %cst_24 = arith.constant 9.99999993E-9 : f32
    %34 = vector.broadcast %cst_24 : f32 to vector<64x1xf32>
    %35 = arith.maximumf %33, %34 : vector<64x1xf32>
    %36 = arith.divf %24, %35 : vector<64x1xf32>
    %37 = arith.mulf %19, %7 : vector<64x128xf32>
    %cst_25 = arith.constant dense<0.000000e+00> : vector<64xf32>
    %38 = vector.multi_reduction <add>, %37, %cst_25 [1] : vector<64x128xf32> to vector<64xf32>
    %39 = vector.shape_cast %38 : vector<64xf32> to vector<64x1xf32>
    %40 = arith.mulf %19, %19 : vector<64x128xf32>
    %cst_26 = arith.constant dense<0.000000e+00> : vector<64xf32>
    %41 = vector.multi_reduction <add>, %40, %cst_26 [1] : vector<64x128xf32> to vector<64xf32>
    %42 = vector.shape_cast %41 : vector<64xf32> to vector<64x1xf32>
    %43 = math.sqrt %42 : vector<64x1xf32>
    %44 = arith.mulf %7, %7 : vector<64x128xf32>
    %cst_27 = arith.constant dense<0.000000e+00> : vector<64xf32>
    %45 = vector.multi_reduction <add>, %44, %cst_27 [1] : vector<64x128xf32> to vector<64xf32>
    %46 = vector.shape_cast %45 : vector<64xf32> to vector<64x1xf32>
    %47 = math.sqrt %46 : vector<64x1xf32>
    %48 = arith.mulf %43, %47 : vector<64x1xf32>
    %cst_28 = arith.constant 9.99999993E-9 : f32
    %49 = vector.broadcast %cst_28 : f32 to vector<64x1xf32>
    %50 = arith.maximumf %48, %49 : vector<64x1xf32>
    %51 = arith.divf %39, %50 : vector<64x1xf32>
    %52 = arith.subf %36, %51 : vector<64x1xf32>
    %53 = vector.broadcast %21 : f32 to vector<64x1xf32>
    %54 = arith.mulf %52, %53 : vector<64x1xf32>
    %c0_29 = arith.constant 0 : index
    %c0_30 = arith.constant 0 : index
    %55 = vector.load %arg11[%c0_29, %c0_30] : memref<64x8xf32, #tpu.memory_space<vmem>>, vector<64x8xf32>
    %cst_31 = arith.constant 5.000000e-01 : f32
    %56 = vector.broadcast %cst_31 : f32 to vector<64x8xf32>
    %57 = arith.cmpf ogt, %55, %56 : vector<64x8xf32>
    %cst_32 = arith.constant 0xFF800000 : f32
    %58 = vector.shape_cast %54 : vector<64x1xf32> to vector<64x1xf32>
    %59 = vector.broadcast %58 : vector<64x1xf32> to vector<64x8xf32>
    %60 = vector.broadcast %cst_32 : f32 to vector<64x8xf32>
    %61 = arith.select %57, %59, %60 : vector<64x8xi1>, vector<64x8xf32>
    %cst_33 = arith.constant dense<0xFF800000> : vector<8xf32>
    %62 = vector.multi_reduction <maximumf>, %61, %cst_33 [0] : vector<64x8xf32> to vector<8xf32>
    %63 = vector.shape_cast %62 : vector<8xf32> to vector<1x8xf32>
    %64 = vector.broadcast %63 : vector<1x8xf32> to vector<64x8xf32>
    %65 = arith.mulf %55, %64 : vector<64x8xf32>
    %cst_34 = arith.constant dense<0.000000e+00> : vector<64xf32>
    %66 = vector.multi_reduction <add>, %65, %cst_34 [1] : vector<64x8xf32> to vector<64xf32>
    %67 = vector.shape_cast %66 : vector<64xf32> to vector<64x1xf32>
    %68 = arith.subf %54, %67 : vector<64x1xf32>
    %69 = math.exp %68 : vector<64x1xf32>
    %70 = vector.broadcast %69 : vector<64x1xf32> to vector<64x8xf32>
    %71 = arith.mulf %55, %70 : vector<64x8xf32>
    %cst_35 = arith.constant dense<0.000000e+00> : vector<8xf32>
    %72 = vector.multi_reduction <add>, %71, %cst_35 [0] : vector<64x8xf32> to vector<8xf32>
    %73 = vector.shape_cast %72 : vector<8xf32> to vector<1x8xf32>
    %74 = vector.broadcast %73 : vector<1x8xf32> to vector<64x8xf32>
    %75 = arith.mulf %55, %74 : vector<64x8xf32>
    %cst_36 = arith.constant dense<0.000000e+00> : vector<64xf32>
    %76 = vector.multi_reduction <add>, %75, %cst_36 [1] : vector<64x8xf32> to vector<64xf32>
    %77 = vector.shape_cast %76 : vector<64xf32> to vector<64x1xf32>
    %78 = tpu.reciprocal %77 {approx = true} : vector<64x1xf32> -> vector<64x1xf32>
    %79 = arith.mulf %69, %78 : vector<64x1xf32>
    %80 = vector.broadcast %79 : vector<64x1xf32> to vector<64x128xf32>
    %81 = arith.mulf %80, %0 : vector<64x128xf32>
    %c0_37 = arith.constant 0 : index
    %c0_38 = arith.constant 0 : index
    %82 = vector.load %arg10[%c0_37, %c0_38] : memref<8x64xf32, #tpu.memory_space<vmem>>, vector<8x64xf32>
    %cst_39 = arith.constant dense<0.000000e+00> : vector<8x128xf32>
    %83 = tpu.matmul %82, %81, %cst_39 {dimension_numbers = #tpu.dot_dimension_numbers<[1], [0], [0], [1], [0, 0, 1, 1], [], []>} : vector<8x64xf32>, vector<64x128xf32>, vector<8x128xf32> -> vector<8x128xf32>
    %c0_40 = arith.constant 0 : index
    %c0_41 = arith.constant 0 : index
    %84 = vector.load %arg13[%c0_40, %c0_41] : memref<8x128xf32, #tpu.memory_space<vmem>>, vector<8x128xf32>
    tpu.vector_store %arg13[%c0_40, %c0_41], %83 {strides = array<i32>} : memref<8x128xf32, #tpu.memory_space<vmem>>, vector<8x128xf32>,
    return
  }
  func.func @transform_0(%arg0: i32) -> (i32, i32) {
    %c0_i32 = arith.constant 0 : i32
    %c0_i32_0 = arith.constant 0 : i32
    return %arg0, %c0_i32 : i32, i32
  }
  func.func @transform_1(%arg0: i32) -> (i32, i32) {
    %c0_i32 = arith.constant 0 : i32
    %c0_i32_0 = arith.constant 0 : i32
    return %arg0, %c0_i32 : i32, i32
  }
  func.func @transform_2(%arg0: i32) -> (i32, i32) {
    %c0_i32 = arith.constant 0 : i32
    %c0_i32_0 = arith.constant 0 : i32
    return %arg0, %c0_i32 : i32, i32
  }
  func.func @transform_3(%arg0: i32) -> (i32, i32) {
    %c0_i32 = arith.constant 0 : i32
    %c0_i32_0 = arith.constant 0 : i32
    %c0_i32_1 = arith.constant 0 : i32
    return %c0_i32, %c0_i32_0 : i32, i32
  }
  func.func @transform_4(%arg0: i32) -> (i32, i32) {
    %c0_i32 = arith.constant 0 : i32
    %c0_i32_0 = arith.constant 0 : i32
    %c0_i32_1 = arith.constant 0 : i32
    return %c0_i32, %c0_i32_0 : i32, i32
  }
  func.func @transform_5(%arg0: i32) -> (i32, i32) {
    %c0_i32 = arith.constant 0 : i32
    %c0_i32_0 = arith.constant 0 : i32
    %c0_i32_1 = arith.constant 0 : i32
    return %c0_i32, %c0_i32_0 : i32, i32
  }
  func.func @transform_6(%arg0: i32) -> (i32, i32) {
    %c0_i32 = arith.constant 0 : i32
    %c0_i32_0 = arith.constant 0 : i32
    %c0_i32_1 = arith.constant 0 : i32
    return %c0_i32, %c0_i32_0 : i32, i32
  }
  func.func @transform_7(%arg0: i32) -> (i32, i32) {
    %c0_i32 = arith.constant 0 : i32
    %c0_i32_0 = arith.constant 0 : i32
    %c0_i32_1 = arith.constant 0 : i32
    return %c0_i32, %c0_i32_0 : i32, i32
  }
  func.func @transform_8(%arg0: i32) -> (i32, i32) {
    %c0_i32 = arith.constant 0 : i32
    %c0_i32_0 = arith.constant 0 : i32
    %c0_i32_1 = arith.constant 0 : i32
    return %c0_i32, %c0_i32_0 : i32, i32
  }
  func.func @transform_9(%arg0: i32) -> (i32, i32) {
    %c0_i32 = arith.constant 0 : i32
    %c0_i32_0 = arith.constant 0 : i32
    %c0_i32_1 = arith.constant 0 : i32
    return %c0_i32, %c0_i32_0 : i32, i32
  }
  func.func @transform_10(%arg0: i32) -> (i32, i32) {
    %c0_i32 = arith.constant 0 : i32
    %c0_i32_0 = arith.constant 0 : i32
    %c0_i32_1 = arith.constant 0 : i32
    return %c0_i32, %c0_i32_0 : i32, i32
  }
  func.func @transform_11(%arg0: i32) -> (i32, i32) {
    %c0_i32 = arith.constant 0 : i32
    %c0_i32_0 = arith.constant 0 : i32
    %c0_i32_1 = arith.constant 0 : i32
    return %c0_i32, %c0_i32_0 : i32, i32
  }
  func.func @transform_12(%arg0: i32) -> (i32, i32) {
    %c0_i32 = arith.constant 0 : i32
    %c0_i32_0 = arith.constant 0 : i32
    return %arg0, %c0_i32 : i32, i32
  }
}

</mosaic_0001>

<llo_original>
// kernel: tpu_custom_call.1
$region0: #{tpu_custom_call.1}
  #allocation0 [shape = 'u32[]', space=smem, size = 0x4, offset = 0x4, fixed_abs, tag = 'smem constant byte address 0x4 - core index']
  #allocation1 [shape = 'u32[72,128]{1,0:T(1,128)}', space=vmem, size = 0x9000, scoped, tag = 'internal scratch']
  #allocation2 [shape = 'f32[1,1]{1,0:T(1,128)S(6)}', space=smem, size = 0x200, scoped, tag = 'scoped memory for tpu_custom_call.1']
  %s0 = inlined_call_operand.vmem [shape: f32[128,128], index: 0, kind: input, shape index: {}]
  %s1 = inlined_call_operand.hbm [shape: f32[128,128], index: 1, kind: input, shape index: {}]
  %s2 = inlined_call_operand.vmem [shape: f32[128,64], index: 2, kind: input, shape index: {}]
  %s3 = inlined_call_operand.hbm [shape: f32[128,256], index: 3, kind: input, shape index: {}]
  %s4 = inlined_call_operand.vmem [shape: f32[1,256], index: 4, kind: input, shape index: {}]
  %s5 = inlined_call_operand.vmem [shape: f32[64,128], index: 5, kind: input, shape index: {}]
  %s6 = inlined_call_operand.vmem [shape: f32[1,128], index: 6, kind: input, shape index: {}]
  %s7 = inlined_call_operand.hbm [shape: f32[128,128], index: 7, kind: input, shape index: {}]
  %s8 = inlined_call_operand.hbm [shape: f32[1,128], index: 8, kind: input, shape index: {}]
  %s9 = inlined_call_operand.vmem [shape: f32[8,64], index: 9, kind: input, shape index: {}]
  %s10 = inlined_call_operand.vmem [shape: f32[64,8], index: 10, kind: input, shape index: {}]
  %s11 = inlined_call_operand.<no memory space> [shape: f32[1,1], index: 11, kind: input, shape index: {}]
  %s12 = inlined_call_operand.hbm [shape: f32[16,128], index: 12, kind: output, shape index: {}]
  %s13 = sld [smem:[#allocation0]]
  $region97: #{tpu_custom_call.1} parent=0
    _
  %s15 = ssub.s32 1, %s13
  %s16 = scalar_select 0, %s15, %s13
  %17 = sst [smem:[#allocation2]] %s11
  $region1: #{tpu_custom_call.1} parent=0
    #allocation3 [shape = 'u8[65536]{0}', space=vmem, size = 0x10000, scoped, tag = 'input window, operand 1']
    #allocation4 [shape = 's32[2]{0}', space=sflag, size = 0x8, scoped, tag = 'scoped memory for tpu_custom_call.1']
    #allocation5 [shape = 's32[2]{0}', space=sflag, size = 0x8, scoped, tag = 'scoped memory for tpu_custom_call.1']
    #allocation6 [shape = 'u8[131072]{0}', space=vmem, size = 0x20000, scoped, tag = 'input window, operand 3, single buffered']
    #allocation7 [shape = 's32[1]{0}', space=sflag, size = 0x4, scoped, tag = 'scoped memory for tpu_custom_call.1']
    #allocation8 [shape = 'u8[65536]{0}', space=vmem, size = 0x10000, scoped, tag = 'input window, operand 7, single buffered']
    #allocation9 [shape = 'u8[512]{0}', space=vmem, size = 0x400, scoped, tag = 'input window, operand 8, single buffered']
    #allocation10 [shape = 's32[1]{0}', space=sflag, size = 0x4, scoped, tag = 'scoped memory for tpu_custom_call.1']
    #allocation11 [shape = 'u8[8192]{0}', space=vmem, size = 0x2000, scoped, tag = 'output window, operand 0']
    %18 = vsyncpa [#allocation4], 0
    %s19 = scalar_lea.sflag [#allocation4], 1
    %20 = vsyncpa %s19, 0
    %21 = vsyncpa [#allocation7], 0
    %22 = vsyncpa [#allocation10], 0
    %23 = vsyncpa [#allocation5], 0
    %s24 = scalar_lea.sflag [#allocation5], 1
    %25 = vsyncpa %s24, 0
    loop: start=0, step=1, limit=4
    $region2: #{tpu_custom_call.1} parent=1 // loop_pre_header
      _
    $region3: #{tpu_custom_call.1} parent=1 // loop_header
      %s27 = sphi 0, %s31
      %p28 = scmp.ge.s32.totalorder %s27, 4
      %s37 = sphi 0, %s39
      %s40 = sphi 0, %s37
      %s41 = sphi 0, %s40
      %s57 = sphi 0, %s41
      %s63 = sphi 0, %s65
      %s66 = sphi 0, %s63
      %s67 = sphi 0, %s66
      %s83 = sphi 0, %s67
      %s89 = sphi 0, %s91
      %s92 = sphi 0, %s89
      %s93 = sphi 0, %s92
      %s109 = sphi 0, %s93
      %s113 = sphi 0, %s113
      %s115 = sphi 0, %s113
      %s116 = sphi 0, %s115
      %s130 = sphi 0, %s116
      %s134 = sphi 0, %s134
      %s136 = sphi 0, %s134
      %s137 = sphi 0, %s136
      %s151 = sphi 0, %s137
      %s155 = sphi 0, %s155
      %s157 = sphi 0, %s155
      %s158 = sphi 0, %s157
      %s172 = sphi 0, %s158
      %s176 = sphi 0, %s176
      %s178 = sphi 0, %s176
      %s179 = sphi 0, %s178
      %s193 = sphi 0, %s179
      %s197 = sphi 0, %s197
      %s199 = sphi 0, %s197
      %s200 = sphi 0, %s199
      %s214 = sphi 0, %s200
      %s218 = sphi 0, %s218
      %s220 = sphi 0, %s218
      %s221 = sphi 0, %s220
      %s235 = sphi 0, %s221
      %s239 = sphi 0, %s239
      %s241 = sphi 0, %s239
      %s242 = sphi 0, %s241
      %s256 = sphi 0, %s242
      %s260 = sphi 0, %s260
      %s262 = sphi 0, %s260
      %s263 = sphi 0, %s262
      %s277 = sphi 0, %s263
      %s281 = sphi 0, %s281
      %s283 = sphi 0, %s281
      %s284 = sphi 0, %s283
      %s298 = sphi 0, %s284
      %s304 = sphi 0, %s306
      %s307 = sphi 0, %s304
      %s308 = sphi 0, %s307
      %s324 = sphi 0, %s308
    $region4: #{tpu_custom_call.1} parent=1 // loop_header_branch
      %30 = sbr.rel (%p28) target = $region8
    $region5: #{tpu_custom_call.1} parent=1 // loop_body
      %s32 = ssub.s32 %s27, 1
      %s33 = ssub.s32 %s27, 2
      %s34 = sadd.s32 %s27, 1
      %s35 = ssub.s32 %s27, %s34
      %p36 = scmp.eq.s32.totalorder %s35, 0
      %s38 = sadd.s32 %s37, 1
      %s39 = scalar_select %p36, %s37, %s38
      %p42 = pneg %p36
      %p43 = scmp.eq.s32.totalorder %s27, 1
      %p44 = por %p42, %p43
      %p45 = scmp.ne.s32.totalorder %s37, %s40
      %p46 = scmp.eq.s32.totalorder %s27, 0
      %p47 = por %p45, %p46
      %p48 = scmp.ne.s32.totalorder %s37, %s40
      %p49 = scmp.eq.s32.totalorder %s32, 1
      %p50 = por %p48, %p49
      %p51 = scmp.ne.s32.totalorder %s40, %s41
      %p52 = scmp.eq.s32.totalorder %s32, 0
      %p53 = por %p51, %p52
      %p54 = scmp.ne.s32.totalorder %s40, %s41
      %p55 = scmp.eq.s32.totalorder %s33, 1
      %p56 = por %p54, %p55
      %p58 = scmp.ne.s32.totalorder %s41, %s57
      %p59 = scmp.eq.s32.totalorder %s33, 0
      %p60 = por %p58, %p59
      %s61 = ssub.s32 %s27, %s34
      %p62 = scmp.eq.s32.totalorder %s61, 0
      %s64 = sadd.s32 %s63, 1
      %s65 = scalar_select %p62, %s63, %s64
      %p68 = pneg %p62
      %p69 = scmp.eq.s32.totalorder %s27, 1
      %p70 = por %p68, %p69
      %p71 = scmp.ne.s32.totalorder %s63, %s66
      %p72 = scmp.eq.s32.totalorder %s27, 0
      %p73 = por %p71, %p72
      %p74 = scmp.ne.s32.totalorder %s63, %s66
      %p75 = scmp.eq.s32.totalorder %s32, 1
      %p76 = por %p74, %p75
      %p77 = scmp.ne.s32.totalorder %s66, %s67
      %p78 = scmp.eq.s32.totalorder %s32, 0
      %p79 = por %p77, %p78
      %p80 = scmp.ne.s32.totalorder %s66, %s67
      %p81 = scmp.eq.s32.totalorder %s33, 1
      %p82 = por %p80, %p81
      %p84 = scmp.ne.s32.totalorder %s67, %s83
      %p85 = scmp.eq.s32.totalorder %s33, 0
      %p86 = por %p84, %p85
      %s87 = ssub.s32 %s27, %s34
      %p88 = scmp.eq.s32.totalorder %s87, 0
      %s90 = sadd.s32 %s89, 1
      %s91 = scalar_select %p88, %s89, %s90
      %p94 = pneg %p88
      %p95 = scmp.eq.s32.totalorder %s27, 1
      %p96 = por %p94, %p95
      %p97 = scmp.ne.s32.totalorder %s89, %s92
      %p98 = scmp.eq.s32.totalorder %s27, 0
      %p99 = por %p97, %p98
      %p100 = scmp.ne.s32.totalorder %s89, %s92
      %p101 = scmp.eq.s32.totalorder %s32, 1
      %p102 = por %p100, %p101
      %p103 = scmp.ne.s32.totalorder %s92, %s93
      %p104 = scmp.eq.s32.totalorder %s32, 0
      %p105 = por %p103, %p104
      %p106 = scmp.ne.s32.totalorder %s92, %s93
      %p107 = scmp.eq.s32.totalorder %s33, 1
      %p108 = por %p106, %p107
      %p110 = scmp.ne.s32.totalorder %s93, %s109
      %p111 = scmp.eq.s32.totalorder %s33, 0
      %p112 = por %p110, %p111
      %s114 = sadd.s32 %s113, 1
      %p117 = scmp.eq.s32.totalorder %s27, 1
      %p118 = scmp.ne.s32.totalorder %s113, %s115
      %p119 = scmp.eq.s32.totalorder %s27, 0
      %p120 = por %p118, %p119
      %p121 = scmp.ne.s32.totalorder %s113, %s115
      %p122 = scmp.eq.s32.totalorder %s32, 1
      %p123 = por %p121, %p122
      %p124 = scmp.ne.s32.totalorder %s115, %s116
      %p125 = scmp.eq.s32.totalorder %s32, 0
      %p126 = por %p124, %p125
      %p127 = scmp.ne.s32.totalorder %s115, %s116
      %p128 = scmp.eq.s32.totalorder %s33, 1
      %p129 = por %p127, %p128
      %p131 = scmp.ne.s32.totalorder %s116, %s130
      %p132 = scmp.eq.s32.totalorder %s33, 0
      %p133 = por %p131, %p132
      %s135 = sadd.s32 %s134, 1
      %p138 = scmp.eq.s32.totalorder %s27, 1
      %p139 = scmp.ne.s32.totalorder %s134, %s136
      %p140 = scmp.eq.s32.totalorder %s27, 0
      %p141 = por %p139, %p140
      %p142 = scmp.ne.s32.totalorder %s134, %s136
      %p143 = scmp.eq.s32.totalorder %s32, 1
      %p144 = por %p142, %p143
      %p145 = scmp.ne.s32.totalorder %s136, %s137
      %p146 = scmp.eq.s32.totalorder %s32, 0
      %p147 = por %p145, %p146
      %p148 = scmp.ne.s32.totalorder %s136, %s137
      %p149 = scmp.eq.s32.totalorder %s33, 1
      %p150 = por %p148, %p149
      %p152 = scmp.ne.s32.totalorder %s137, %s151
      %p153 = scmp.eq.s32.totalorder %s33, 0
      %p154 = por %p152, %p153
      %s156 = sadd.s32 %s155, 1
      %p159 = scmp.eq.s32.totalorder %s27, 1
      %p160 = scmp.ne.s32.totalorder %s155, %s157
      %p161 = scmp.eq.s32.totalorder %s27, 0
      %p162 = por %p160, %p161
      %p163 = scmp.ne.s32.totalorder %s155, %s157
      %p164 = scmp.eq.s32.totalorder %s32, 1
      %p165 = por %p163, %p164
      %p166 = scmp.ne.s32.totalorder %s157, %s158
      %p167 = scmp.eq.s32.totalorder %s32, 0
      %p168 = por %p166, %p167
      %p169 = scmp.ne.s32.totalorder %s157, %s158
      %p170 = scmp.eq.s32.totalorder %s33, 1
      %p171 = por %p169, %p170
      %p173 = scmp.ne.s32.totalorder %s158, %s172
      %p174 = scmp.eq.s32.totalorder %s33, 0
      %p175 = por %p173, %p174
      %s177 = sadd.s32 %s176, 1
      %p180 = scmp.eq.s32.totalorder %s27, 1
      %p181 = scmp.ne.s32.totalorder %s176, %s178
      %p182 = scmp.eq.s32.totalorder %s27, 0
      %p183 = por %p181, %p182
      %p184 = scmp.ne.s32.totalorder %s176, %s178
      %p185 = scmp.eq.s32.totalorder %s32, 1
      %p186 = por %p184, %p185
      %p187 = scmp.ne.s32.totalorder %s178, %s179
      %p188 = scmp.eq.s32.totalorder %s32, 0
      %p189 = por %p187, %p188
      %p190 = scmp.ne.s32.totalorder %s178, %s179
      %p191 = scmp.eq.s32.totalorder %s33, 1
      %p192 = por %p190, %p191
      %p194 = scmp.ne.s32.totalorder %s179, %s193
      %p195 = scmp.eq.s32.totalorder %s33, 0
      %p196 = por %p194, %p195
      %s198 = sadd.s32 %s197, 1
      %p201 = scmp.eq.s32.totalorder %s27, 1
      %p202 = scmp.ne.s32.totalorder %s197, %s199
      %p203 = scmp.eq.s32.totalorder %s27, 0
      %p204 = por %p202, %p203
      %p205 = scmp.ne.s32.totalorder %s197, %s199
      %p206 = scmp.eq.s32.totalorder %s32, 1
      %p207 = por %p205, %p206
      %p208 = scmp.ne.s32.totalorder %s199, %s200
      %p209 = scmp.eq.s32.totalorder %s32, 0
      %p210 = por %p208, %p209
      %p211 = scmp.ne.s32.totalorder %s199, %s200
      %p212 = scmp.eq.s32.totalorder %s33, 1
      %p213 = por %p211, %p212
      %p215 = scmp.ne.s32.totalorder %s200, %s214
      %p216 = scmp.eq.s32.totalorder %s33, 0
      %p217 = por %p215, %p216
      %s219 = sadd.s32 %s218, 1
      %p222 = scmp.eq.s32.totalorder %s27, 1
      %p223 = scmp.ne.s32.totalorder %s218, %s220
      %p224 = scmp.eq.s32.totalorder %s27, 0
      %p225 = por %p223, %p224
      %p226 = scmp.ne.s32.totalorder %s218, %s220
      %p227 = scmp.eq.s32.totalorder %s32, 1
      %p228 = por %p226, %p227
      %p229 = scmp.ne.s32.totalorder %s220, %s221
      %p230 = scmp.eq.s32.totalorder %s32, 0
      %p231 = por %p229, %p230
      %p232 = scmp.ne.s32.totalorder %s220, %s221
      %p233 = scmp.eq.s32.totalorder %s33, 1
      %p234 = por %p232, %p233
      %p236 = scmp.ne.s32.totalorder %s221, %s235
      %p237 = scmp.eq.s32.totalorder %s33, 0
      %p238 = por %p236, %p237
      %s240 = sadd.s32 %s239, 1
      %p243 = scmp.eq.s32.totalorder %s27, 1
      %p244 = scmp.ne.s32.totalorder %s239, %s241
      %p245 = scmp.eq.s32.totalorder %s27, 0
      %p246 = por %p244, %p245
      %p247 = scmp.ne.s32.totalorder %s239, %s241
      %p248 = scmp.eq.s32.totalorder %s32, 1
      %p249 = por %p247, %p248
      %p250 = scmp.ne.s32.totalorder %s241, %s242
      %p251 = scmp.eq.s32.totalorder %s32, 0
      %p252 = por %p250, %p251
      %p253 = scmp.ne.s32.totalorder %s241, %s242
      %p254 = scmp.eq.s32.totalorder %s33, 1
      %p255 = por %p253, %p254
      %p257 = scmp.ne.s32.totalorder %s242, %s256
      %p258 = scmp.eq.s32.totalorder %s33, 0
      %p259 = por %p257, %p258
      %s261 = sadd.s32 %s260, 1
      %p264 = scmp.eq.s32.totalorder %s27, 1
      %p265 = scmp.ne.s32.totalorder %s260, %s262
      %p266 = scmp.eq.s32.totalorder %s27, 0
      %p267 = por %p265, %p266
      %p268 = scmp.ne.s32.totalorder %s260, %s262
      %p269 = scmp.eq.s32.totalorder %s32, 1
      %p270 = por %p268, %p269
      %p271 = scmp.ne.s32.totalorder %s262, %s263
      %p272 = scmp.eq.s32.totalorder %s32, 0
      %p273 = por %p271, %p272
      %p274 = scmp.ne.s32.totalorder %s262, %s263
      %p275 = scmp.eq.s32.totalorder %s33, 1
      %p276 = por %p274, %p275
      %p278 = scmp.ne.s32.totalorder %s263, %s277
      %p279 = scmp.eq.s32.totalorder %s33, 0
      %p280 = por %p278, %p279
      %s282 = sadd.s32 %s281, 1
      %p285 = scmp.eq.s32.totalorder %s27, 1
      %p286 = scmp.ne.s32.totalorder %s281, %s283
      %p287 = scmp.eq.s32.totalorder %s27, 0
      %p288 = por %p286, %p287
      %p289 = scmp.ne.s32.totalorder %s281, %s283
      %p290 = scmp.eq.s32.totalorder %s32, 1
      %p291 = por %p289, %p290
      %p292 = scmp.ne.s32.totalorder %s283, %s284
      %p293 = scmp.eq.s32.totalorder %s32, 0
      %p294 = por %p292, %p293
      %p295 = scmp.ne.s32.totalorder %s283, %s284
      %p296 = scmp.eq.s32.totalorder %s33, 1
      %p297 = por %p295, %p296
      %p299 = scmp.ne.s32.totalorder %s284, %s298
      %p300 = scmp.eq.s32.totalorder %s33, 0
      %p301 = por %p299, %p300
      %s302 = ssub.s32 %s27, %s34
      %p303 = scmp.eq.s32.totalorder %s302, 0
      %s305 = sadd.s32 %s304, 1
      %s306 = scalar_select %p303, %s304, %s305
      %p309 = pneg %p303
      %p310 = scmp.eq.s32.totalorder %s27, 1
      %p311 = por %p309, %p310
      %p312 = scmp.ne.s32.totalorder %s304, %s307
      %p313 = scmp.eq.s32.totalorder %s27, 0
      %p314 = por %p312, %p313
      %p315 = scmp.ne.s32.totalorder %s304, %s307
      %p316 = scmp.eq.s32.totalorder %s32, 1
      %p317 = por %p315, %p316
      %p318 = scmp.ne.s32.totalorder %s307, %s308
      %p319 = scmp.eq.s32.totalorder %s32, 0
      %p320 = por %p318, %p319
      %p321 = scmp.ne.s32.totalorder %s307, %s308
      %p322 = scmp.eq.s32.totalorder %s33, 1
      %p323 = por %p321, %p322
      %p325 = scmp.ne.s32.totalorder %s308, %s324
      %p326 = scmp.eq.s32.totalorder %s33, 0
      %p327 = por %p325, %p326
      %p328 = scmp.le.s32.totalorder 1, %s27
      %p329 = scmp.lt.s32.totalorder %s27, 3
      %p330 = pnand %p328, %p329
      %p331 = pneg %p330
      // Predicated region
      $region9: #{tpu_custom_call.1} parent=5 // pred_check
        _
      $region10: #{tpu_custom_call.1} parent=5 // pred_check_branch
        %333 = sbr.rel (%p330) target = $region12
      $region11: #{tpu_custom_call.1} parent=5 // pred_region
        %s334 = ssub.s32 %s27, 1
        // Predicated region
        $region13: #{tpu_custom_call.1} parent=11 // pred_check
          %p335 = pneg %p126
        $region14: #{tpu_custom_call.1} parent=11 // pred_check_branch
          %337 = sbr.rel (%p335) target = $region16
        $region15: #{tpu_custom_call.1} parent=11 // pred_region
          %339 = vsyncadd [#allocation7], 0
          %s340 = sshll.u32 %s3, 4
          %s341 = int_to_ptr.hbm [resolvable:$true] %s340
          %s342 = sshll.u32 [#allocation6], 4
          %s343 = int_to_ptr.vmem [resolvable:$true] %s342
          %348 = dma.hbm_to_vmem [thread:$0]  %s341, 4096, %s343, [#allocation7], 256, 256, 16
        $region16: #{tpu_custom_call.1} parent=11 // pred_fallthru
          _
        // Predicated region
        $region17: #{tpu_custom_call.1} parent=11 // pred_check
          %p349 = pneg %p147
        $region18: #{tpu_custom_call.1} parent=11 // pred_check_branch
          %351 = sbr.rel (%p349) target = $region20
        $region19: #{tpu_custom_call.1} parent=11 // pred_region
          _
        $region20: #{tpu_custom_call.1} parent=11 // pred_fallthru
          _
        // Predicated region
        $region21: #{tpu_custom_call.1} parent=11 // pred_check
          %p352 = pneg %p168
        $region22: #{tpu_custom_call.1} parent=11 // pred_check_branch
          %354 = sbr.rel (%p352) target = $region24
        $region23: #{tpu_custom_call.1} parent=11 // pred_region
          _
        $region24: #{tpu_custom_call.1} parent=11 // pred_fallthru
          _
        // Predicated region
        $region25: #{tpu_custom_call.1} parent=11 // pred_check
          %p355 = pneg %p189
        $region26: #{tpu_custom_call.1} parent=11 // pred_check_branch
          %357 = sbr.rel (%p355) target = $region28
        $region27: #{tpu_custom_call.1} parent=11 // pred_region
          _
        $region28: #{tpu_custom_call.1} parent=11 // pred_fallthru
          _
        // Predicated region
        $region29: #{tpu_custom_call.1} parent=11 // pred_check
          %p358 = pneg %p210
        $region30: #{tpu_custom_call.1} parent=11 // pred_check_branch
          %360 = sbr.rel (%p358) target = $region32
        $region31: #{tpu_custom_call.1} parent=11 // pred_region
          %362 = vsyncadd [#allocation7], 0
          %s363 = sshll.u32 %s7, 4
          %s364 = int_to_ptr.hbm [resolvable:$true] %s363
          %s365 = sshll.u32 [#allocation8], 4
          %s366 = int_to_ptr.vmem [resolvable:$true] %s365
          %371 = dma.hbm_to_vmem [thread:$0]  %s364, 2048, %s366, [#allocation7], 128, 128, 8
        $region32: #{tpu_custom_call.1} parent=11 // pred_fallthru
          _
        // Predicated region
        $region33: #{tpu_custom_call.1} parent=11 // pred_check
          %p372 = pneg %p231
        $region34: #{tpu_custom_call.1} parent=11 // pred_check_branch
          %374 = sbr.rel (%p372) target = $region36
        $region35: #{tpu_custom_call.1} parent=11 // pred_region
          %376 = vsyncadd [#allocation10], 0
          %s378 = sshll.u32 %s8, 4
          %s379 = int_to_ptr.hbm [resolvable:$true] %s378
          %s380 = sshll.u32 [#allocation9], 4
          %s381 = int_to_ptr.vmem [resolvable:$true] %s380
          %383 = dma.hbm_to_vmem [thread:$0]  %s379, 16, %s381, [#allocation10]
        $region36: #{tpu_custom_call.1} parent=11 // pred_fallthru
          _
        // Predicated region
        $region37: #{tpu_custom_call.1} parent=11 // pred_check
          %p384 = pneg %p252
        $region38: #{tpu_custom_call.1} parent=11 // pred_check_branch
          %386 = sbr.rel (%p384) target = $region40
        $region39: #{tpu_custom_call.1} parent=11 // pred_region
          _
        $region40: #{tpu_custom_call.1} parent=11 // pred_fallthru
          _
        // Predicated region
        $region41: #{tpu_custom_call.1} parent=11 // pred_check
          %p387 = pneg %p273
        $region42: #{tpu_custom_call.1} parent=11 // pred_check_branch
          %389 = sbr.rel (%p387) target = $region44
        $region43: #{tpu_custom_call.1} parent=11 // pred_region
          _
        $region44: #{tpu_custom_call.1} parent=11 // pred_fallthru
          _
        // Predicated region
        $region45: #{tpu_custom_call.1} parent=11 // pred_check
          %p390 = pneg %p294
        $region46: #{tpu_custom_call.1} parent=11 // pred_check_branch
          %392 = sbr.rel (%p390) target = $region48
        $region47: #{tpu_custom_call.1} parent=11 // pred_region
          _
        $region48: #{tpu_custom_call.1} parent=11 // pred_fallthru
          _
      $region12: #{tpu_custom_call.1} parent=5 // pred_fallthru
        _
      %p393 = scmp.lt.s32.totalorder %s27, 2
      // Predicated region
      $region49: #{tpu_custom_call.1} parent=5 // pred_check
        %p394 = pneg %p393
      $region50: #{tpu_custom_call.1} parent=5 // pred_check_branch
        %396 = sbr.rel (%p394) target = $region52
      $region51: #{tpu_custom_call.1} parent=5 // pred_region
        // Predicated region
        $region53: #{tpu_custom_call.1} parent=51 // pred_check
          %p397 = pneg %p47
        $region54: #{tpu_custom_call.1} parent=51 // pred_check_branch
          %399 = sbr.rel (%p397) target = $region56
        $region55: #{tpu_custom_call.1} parent=51 // pred_region
          %s400 = smul.u32 8, %s27
          %p401 = scmp.lt.s32.totalorder %s400, 15
          %s402 = scalar_select %p401, %s400, 15
          %s403 = smul.addr %s402, 8
          %s404 = scalar_lea.vmem %s0, %s403
          %s405 = smul.u32 8, %s27
        $region56: #{tpu_custom_call.1} parent=51 // pred_fallthru
          _
        // Predicated region
        $region57: #{tpu_custom_call.1} parent=51 // pred_check
          %p406 = pneg %p73
        $region58: #{tpu_custom_call.1} parent=51 // pred_check_branch
          %408 = sbr.rel (%p406) target = $region60
        $region59: #{tpu_custom_call.1} parent=51 // pred_region
          %s409 = sand.u32 %s63, 1
          %s410 = scalar_lea.sflag [#allocation4], %s409
          %s411 = sand.u32 %s63, 1
          %s412 = smul.addr %s411, 64
          %s413 = scalar_lea.vmem [#allocation3], %s412
          %s414 = smul.u32 8, %s27
          %416 = vsyncadd %s410, 0
          %s417 = smul.addr %s414, 8
          %s418 = scalar_lea.hbm %s1, %s417
          %s419 = sshll.u32 %s418, 4
          %s420 = int_to_ptr.hbm [resolvable:$true] %s419
          %s421 = sshll.u32 %s413, 4
          %s422 = int_to_ptr.vmem [resolvable:$true] %s421
          %427 = dma.hbm_to_vmem [thread:$0]  %s420, 1024, %s422, %s410, 128, 128, 8
        $region60: #{tpu_custom_call.1} parent=51 // pred_fallthru
          _
        // Predicated region
        $region61: #{tpu_custom_call.1} parent=51 // pred_check
          %p428 = pneg %p99
        $region62: #{tpu_custom_call.1} parent=51 // pred_check_branch
          %430 = sbr.rel (%p428) target = $region64
        $region63: #{tpu_custom_call.1} parent=51 // pred_region
          %s431 = smul.u32 8, %s27
          %p432 = scmp.lt.s32.totalorder %s431, 15
          %s433 = scalar_select %p432, %s431, 15
          %s434 = smul.addr %s433, 8
          %s435 = scalar_lea.vmem %s2, %s434
          %s436 = smul.u32 8, %s27
        $region64: #{tpu_custom_call.1} parent=51 // pred_fallthru
          _
      $region52: #{tpu_custom_call.1} parent=5 // pred_fallthru
        _
      %p437 = scmp.le.s32.totalorder 1, %s27
      %p438 = scmp.lt.s32.totalorder %s27, 3
      %p439 = pnand %p437, %p438
      %p440 = pneg %p439
      // Predicated region
      $region65: #{tpu_custom_call.1} parent=5 // pred_check
        _
      $region66: #{tpu_custom_call.1} parent=5 // pred_check_branch
        %442 = sbr.rel (%p439) target = $region68
      $region67: #{tpu_custom_call.1} parent=5 // pred_region
        %s443 = ssub.s32 %s27, 1
        %s444 = sand.u32 %s66, 1
        %s445 = scalar_lea.sflag [#allocation4], %s444
        %s446 = sand.u32 %s66, 1
        %s447 = smul.addr %s446, 64
        %s448 = scalar_lea.vmem [#allocation3], %s447
        // Predicated region
        $region69: #{tpu_custom_call.1} parent=67 // pred_check
          %p449 = pneg %p79
        $region70: #{tpu_custom_call.1} parent=67 // pred_check_branch
          %451 = sbr.rel (%p449) target = $region72
        $region71: #{tpu_custom_call.1} parent=67 // pred_region
          %453 = dma.done %s445, 1024
        $region72: #{tpu_custom_call.1} parent=67 // pred_fallthru
          _
        // Predicated region
        $region73: #{tpu_custom_call.1} parent=67 // pred_check
          %p454 = pneg %p126
        $region74: #{tpu_custom_call.1} parent=67 // pred_check_branch
          %456 = sbr.rel (%p454) target = $region76
        $region75: #{tpu_custom_call.1} parent=67 // pred_region
          %458 = dma.done [#allocation7], 4096
        $region76: #{tpu_custom_call.1} parent=67 // pred_fallthru
          _
        // Predicated region
        $region77: #{tpu_custom_call.1} parent=67 // pred_check
          %p459 = pneg %p210
        $region78: #{tpu_custom_call.1} parent=67 // pred_check_branch
          %461 = sbr.rel (%p459) target = $region80
        $region79: #{tpu_custom_call.1} parent=67 // pred_region
          %463 = dma.done [#allocation7], 2048
        $region80: #{tpu_custom_call.1} parent=67 // pred_fallthru
          _
        // Predicated region
        $region81: #{tpu_custom_call.1} parent=67 // pred_check
          %p464 = pneg %p231
        $region82: #{tpu_custom_call.1} parent=67 // pred_check_branch
          %466 = sbr.rel (%p464) target = $region84
        $region83: #{tpu_custom_call.1} parent=67 // pred_region
          %468 = dma.done [#allocation10], 16
        $region84: #{tpu_custom_call.1} parent=67 // pred_fallthru
          _
        %s469 = smul.u32 8, %s32
        %p470 = scmp.lt.s32.totalorder %s469, 15
        %s471 = scalar_select %p470, %s469, 15
        %s472 = smul.addr %s471, 8
        %s473 = scalar_lea.vmem %s0, %s472
        %p474 = pneg %p53
        %p475 = pneg %p50
        %s476 = sand.u32 %s66, 1
        %s477 = scalar_lea.sflag [#allocation4], %s476
        %s478 = sand.u32 %s66, 1
        %s479 = smul.addr %s478, 64
        %s480 = scalar_lea.vmem [#allocation3], %s479
        %p481 = pneg %p79
        %p482 = pneg %p76
        %s483 = smul.u32 8, %s32
        %p484 = scmp.lt.s32.totalorder %s483, 15
        %s485 = scalar_select %p484, %s483, 15
        %s486 = smul.addr %s485, 8
        %s487 = scalar_lea.vmem %s2, %s486
        %p488 = pneg %p105
        %p489 = pneg %p102
        %p490 = pneg %p126
        %p491 = pneg %p123
        %p492 = pneg %p147
        %p493 = pneg %p144
        %p494 = pneg %p168
        %p495 = pneg %p165
        %p496 = pneg %p189
        %p497 = pneg %p186
        %p498 = pneg %p210
        %p499 = pneg %p207
        %p500 = pneg %p231
        %p501 = pneg %p228
        %p502 = pneg %p252
        %p503 = pneg %p249
        %p504 = pneg %p273
        %p505 = pneg %p270
        %p506 = pneg %p294
        %p507 = pneg %p291
        %p508 = pneg %p320
        %p509 = pneg %p317
        %s510 = sand.u32 %s307, 1
        %s511 = scalar_lea.sflag [#allocation5], %s510
        %s512 = sand.u32 %s307, 1
        %s513 = smul.addr %s512, 8
        %s514 = scalar_lea.vmem [#allocation11], %s513
        %s515 = smul.u32 8, %s32
        %p516 = scmp.lt.s32.totalorder %s515, 15
        %s517 = scalar_select %p516, %s515, 15
        %s518 = smul.addr %s517, 8
        %s519 = scalar_lea.vmem %s0, %s518
        %s520 = smul.u32 8, %s32
        %s521 = smul.u32 8, %s32
        %s522 = smul.u32 8, %s32
        %p523 = scmp.lt.s32.totalorder %s522, 15
        %s524 = scalar_select %p523, %s522, 15
        %s525 = smul.addr %s524, 8
        %s526 = scalar_lea.vmem %s2, %s525
        %s527 = smul.u32 8, %s32
        %v528 = vld [vmem:[%s519] sm:$0xff]
        %v529 = vld [vmem:[%s519 + $0x8] sm:$0xff]
        %v530 = vld [vmem:[%s519 + $0x10] sm:$0xff]
        %v531 = vld [vmem:[%s519 + $0x18] sm:$0xff]
        %v532 = vld [vmem:[%s519 + $0x20] sm:$0xff]
        %v533 = vld [vmem:[%s519 + $0x28] sm:$0xff]
        %v534 = vld [vmem:[%s519 + $0x30] sm:$0xff]
        %v535 = vld [vmem:[%s519 + $0x38] sm:$0xff]
        %v536 = vld [vmem:[#allocation6] sm:$0xff]
        %v537 = vld [vmem:[#allocation6 + $0x8] sm:$0xff]
        %v538 = vld [vmem:[#allocation6 + $0x10] sm:$0xff]
        %v539 = vld [vmem:[#allocation6 + $0x18] sm:$0xff]
        %v540 = vld [vmem:[#allocation6 + $0x20] sm:$0xff]
        %v541 = vld [vmem:[#allocation6 + $0x28] sm:$0xff]
        %v542 = vld [vmem:[#allocation6 + $0x30] sm:$0xff]
        %v543 = vld [vmem:[#allocation6 + $0x38] sm:$0xff]
        %v544 = vld [vmem:[#allocation6 + $0x40] sm:$0xff]
        %v545 = vld [vmem:[#allocation6 + $0x48] sm:$0xff]
        %v546 = vld [vmem:[#allocation6 + $0x50] sm:$0xff]
        %v547 = vld [vmem:[#allocation6 + $0x58] sm:$0xff]
        %v548 = vld [vmem:[#allocation6 + $0x60] sm:$0xff]
        %v549 = vld [vmem:[#allocation6 + $0x68] sm:$0xff]
        %v550 = vld [vmem:[#allocation6 + $0x70] sm:$0xff]
        %v551 = vld [vmem:[#allocation6 + $0x78] sm:$0xff]
        %v552 = vld [vmem:[#allocation6 + $0x80] sm:$0xff]
        %v553 = vld [vmem:[#allocation6 + $0x88] sm:$0xff]
        %v554 = vld [vmem:[#allocation6 + $0x90] sm:$0xff]
        %v555 = vld [vmem:[#allocation6 + $0x98] sm:$0xff]
        %v556 = vld [vmem:[#allocation6 + $0xa0] sm:$0xff]
        %v557 = vld [vmem:[#allocation6 + $0xa8] sm:$0xff]
        %v558 = vld [vmem:[#allocation6 + $0xb0] sm:$0xff]
        %v559 = vld [vmem:[#allocation6 + $0xb8] sm:$0xff]
        %v560 = vld [vmem:[#allocation6 + $0xc0] sm:$0xff]
        %v561 = vld [vmem:[#allocation6 + $0xc8] sm:$0xff]
        %v562 = vld [vmem:[#allocation6 + $0xd0] sm:$0xff]
        %v563 = vld [vmem:[#allocation6 + $0xd8] sm:$0xff]
        %v564 = vld [vmem:[#allocation6 + $0xe0] sm:$0xff]
        %v565 = vld [vmem:[#allocation6 + $0xe8] sm:$0xff]
        %v566 = vld [vmem:[#allocation6 + $0xf0] sm:$0xff]
        %v567 = vld [vmem:[#allocation6 + $0xf8] sm:$0xff]
        %v568 = vld [vmem:[%s4] sm:$0x3]
        %v570 = vperm.slane %v568, 0
        %v571 = vperm.slane %v568, 1
        %574 = vmatpush.msra.mxu0 %v566
        %575 = vmatpush.msra.mxu0 %v564
        %576 = vmatpush.msra.mxu0 %v562
        %577 = vmatpush.msra.mxu0 %v560
        %578 = vmatpush.msra.mxu0 %v558
        %579 = vmatpush.msra.mxu0 %v556
        %580 = vmatpush.msra.mxu0 %v554
        %581 = vmatpush.msra.mxu0 %v552
        %582 = vmatpush.msra.mxu0 %v550
        %583 = vmatpush.msra.mxu0 %v548
        %584 = vmatpush.msra.mxu0 %v546
        %585 = vmatpush.msra.mxu0 %v544
        %586 = vmatpush.msra.mxu0 %v542
        %587 = vmatpush.msra.mxu0 %v540
        %588 = vmatpush.msra.mxu0 %v538
        %589 = vmatpush.msra.mxu0 %v536
        %590 = vmatmul.f32.gmra.mxu0 %v528
        %v591 = vpop.f32.mrf.mxu0
        %v592 = vadd.f32 %v570, %v591
        %593 = vmatmul.f32.gmra.mxu0 %v529
        %v594 = vpop.f32.mrf.mxu0
        %v595 = vadd.f32 %v570, %v594
        %596 = vmatmul.f32.gmra.mxu0 %v530
        %v597 = vpop.f32.mrf.mxu0
        %v598 = vadd.f32 %v570, %v597
        %599 = vmatmul.f32.gmra.mxu0 %v531
        %v600 = vpop.f32.mrf.mxu0
        %v601 = vadd.f32 %v570, %v600
        %602 = vmatmul.f32.gmra.mxu0 %v532
        %v603 = vpop.f32.mrf.mxu0
        %v604 = vadd.f32 %v570, %v603
        %605 = vmatmul.f32.gmra.mxu0 %v533
        %v606 = vpop.f32.mrf.mxu0
        %v607 = vadd.f32 %v570, %v606
        %608 = vmatmul.f32.gmra.mxu0 %v534
        %v609 = vpop.f32.mrf.mxu0
        %v610 = vadd.f32 %v570, %v609
        %611 = vmatmul.f32.gmra.mxu0 %v535
        %v612 = vpop.f32.mrf.mxu0
        %v613 = vadd.f32 %v570, %v612
        %614 = vdwg.mxu0
        %615 = vmatpush.msra.mxu0 %v567
        %616 = vmatpush.msra.mxu0 %v565
        %617 = vmatpush.msra.mxu0 %v563
        %618 = vmatpush.msra.mxu0 %v561
        %619 = vmatpush.msra.mxu0 %v559
        %620 = vmatpush.msra.mxu0 %v557
        %621 = vmatpush.msra.mxu0 %v555
        %622 = vmatpush.msra.mxu0 %v553
        %623 = vmatpush.msra.mxu0 %v551
        %624 = vmatpush.msra.mxu0 %v549
        %625 = vmatpush.msra.mxu0 %v547
        %626 = vmatpush.msra.mxu0 %v545
        %627 = vmatpush.msra.mxu0 %v543
        %628 = vmatpush.msra.mxu0 %v541
        %629 = vmatpush.msra.mxu0 %v539
        %630 = vmatpush.msra.mxu0 %v537
        %631 = vmatmul.f32.gmra.mxu0 %v528
        %v632 = vpop.f32.mrf.mxu0
        %v633 = vadd.f32 %v571, %v632
        %634 = vmatmul.f32.gmra.mxu0 %v529
        %v635 = vpop.f32.mrf.mxu0
        %v636 = vadd.f32 %v571, %v635
        %637 = vmatmul.f32.gmra.mxu0 %v530
        %v638 = vpop.f32.mrf.mxu0
        %v639 = vadd.f32 %v571, %v638
        %640 = vmatmul.f32.gmra.mxu0 %v531
        %v641 = vpop.f32.mrf.mxu0
        %v642 = vadd.f32 %v571, %v641
        %643 = vmatmul.f32.gmra.mxu0 %v532
        %v644 = vpop.f32.mrf.mxu0
        %v645 = vadd.f32 %v571, %v644
        %646 = vmatmul.f32.gmra.mxu0 %v533
        %v647 = vpop.f32.mrf.mxu0
        %v648 = vadd.f32 %v571, %v647
        %649 = vmatmul.f32.gmra.mxu0 %v534
        %v650 = vpop.f32.mrf.mxu0
        %v651 = vadd.f32 %v571, %v650
        %652 = vmatmul.f32.gmra.mxu0 %v535
        %v653 = vpop.f32.mrf.mxu0
        %v654 = vadd.f32 %v571, %v653
        %655 = vdwg.mxu0
        %v656 = vld [vmem:[%s526] sm:$0xff]
        %v657 = vld [vmem:[%s526 + $0x8] sm:$0xff]
        %v658 = vld [vmem:[%s526 + $0x10] sm:$0xff]
        %v659 = vld [vmem:[%s526 + $0x18] sm:$0xff]
        %v660 = vld [vmem:[%s526 + $0x20] sm:$0xff]
        %v661 = vld [vmem:[%s526 + $0x28] sm:$0xff]
        %v662 = vld [vmem:[%s526 + $0x30] sm:$0xff]
        %v663 = vld [vmem:[%s526 + $0x38] sm:$0xff]
        %v664 = vld [vmem:[%s5] sm:$0xff]
        %v665 = vld [vmem:[%s5 + $0x8] sm:$0xff]
        %v666 = vld [vmem:[%s5 + $0x10] sm:$0xff]
        %v667 = vld [vmem:[%s5 + $0x18] sm:$0xff]
        %v668 = vld [vmem:[%s5 + $0x20] sm:$0xff]
        %v669 = vld [vmem:[%s5 + $0x28] sm:$0xff]
        %v670 = vld [vmem:[%s5 + $0x30] sm:$0xff]
        %v671 = vld [vmem:[%s5 + $0x38] sm:$0xff]
        %v672 = vld [vmem:[%s6] sm:$0x1]
        %v674 = vperm.slane %v672, 0
        %vm676 = vcmask 523264
        %v678 = vsel %vm676, %v656, 0
        %v681 = vsel %vm676, %v657, 0
        %v684 = vsel %vm676, %v658, 0
        %v687 = vsel %vm676, %v659, 0
        %v690 = vsel %vm676, %v660, 0
        %v693 = vsel %vm676, %v661, 0
        %v696 = vsel %vm676, %v662, 0
        %v699 = vsel %vm676, %v663, 0
        %701 = vmatpush.msra.mxu0 0.0
        %702 = vmatpush.msra.mxu0 0.0
        %703 = vmatpush.msra.mxu0 0.0
        %704 = vmatpush.msra.mxu0 0.0
        %705 = vmatpush.msra.mxu0 0.0
        %706 = vmatpush.msra.mxu0 0.0
        %707 = vmatpush.msra.mxu0 0.0
        %708 = vmatpush.msra.mxu0 0.0
        %709 = vmatpush.msra.mxu0 %v671
        %710 = vmatpush.msra.mxu0 %v670
        %711 = vmatpush.msra.mxu0 %v669
        %712 = vmatpush.msra.mxu0 %v668
        %713 = vmatpush.msra.mxu0 %v667
        %714 = vmatpush.msra.mxu0 %v666
        %715 = vmatpush.msra.mxu0 %v665
        %716 = vmatpush.msra.mxu0 %v664
        %717 = vmatmul.f32.gmra.mxu0 %v678
        %v718 = vpop.f32.mrf.mxu0
        %v719 = vadd.f32 %v674, %v718
        %720 = vmatmul.f32.gmra.mxu0 %v681
        %v721 = vpop.f32.mrf.mxu0
        %v722 = vadd.f32 %v674, %v721
        %723 = vmatmul.f32.gmra.mxu0 %v684
        %v724 = vpop.f32.mrf.mxu0
        %v725 = vadd.f32 %v674, %v724
        %726 = vmatmul.f32.gmra.mxu0 %v687
        %v727 = vpop.f32.mrf.mxu0
        %v728 = vadd.f32 %v674, %v727
        %729 = vmatmul.f32.gmra.mxu0 %v690
        %v730 = vpop.f32.mrf.mxu0
        %v731 = vadd.f32 %v674, %v730
        %732 = vmatmul.f32.gmra.mxu0 %v693
        %v733 = vpop.f32.mrf.mxu0
        %v734 = vadd.f32 %v674, %v733
        %735 = vmatmul.f32.gmra.mxu0 %v696
        %v736 = vpop.f32.mrf.mxu0
        %v737 = vadd.f32 %v674, %v736
        %738 = vmatmul.f32.gmra.mxu0 %v699
        %v739 = vpop.f32.mrf.mxu0
        %v740 = vadd.f32 %v674, %v739
        %741 = vdwg.mxu0
        %v742 = vld [vmem:[%s448] sm:$0xff]
        %v743 = vld [vmem:[%s448 + $0x8] sm:$0xff]
        %v744 = vld [vmem:[%s448 + $0x10] sm:$0xff]
        %v745 = vld [vmem:[%s448 + $0x18] sm:$0xff]
        %v746 = vld [vmem:[%s448 + $0x20] sm:$0xff]
        %v747 = vld [vmem:[%s448 + $0x28] sm:$0xff]
        %v748 = vld [vmem:[%s448 + $0x30] sm:$0xff]
        %v749 = vld [vmem:[%s448 + $0x38] sm:$0xff]
        %v750 = vld [vmem:[#allocation8] sm:$0xff]
        %v751 = vld [vmem:[#allocation8 + $0x8] sm:$0xff]
        %v752 = vld [vmem:[#allocation8 + $0x10] sm:$0xff]
        %v753 = vld [vmem:[#allocation8 + $0x18] sm:$0xff]
        %v754 = vld [vmem:[#allocation8 + $0x20] sm:$0xff]
        %v755 = vld [vmem:[#allocation8 + $0x28] sm:$0xff]
        %v756 = vld [vmem:[#allocation8 + $0x30] sm:$0xff]
        %v757 = vld [vmem:[#allocation8 + $0x38] sm:$0xff]
        %v758 = vld [vmem:[#allocation8 + $0x40] sm:$0xff]
        %v759 = vld [vmem:[#allocation8 + $0x48] sm:$0xff]
        %v760 = vld [vmem:[#allocation8 + $0x50] sm:$0xff]
        %v761 = vld [vmem:[#allocation8 + $0x58] sm:$0xff]
        %v762 = vld [vmem:[#allocation8 + $0x60] sm:$0xff]
        %v763 = vld [vmem:[#allocation8 + $0x68] sm:$0xff]
        %v764 = vld [vmem:[#allocation8 + $0x70] sm:$0xff]
        %v765 = vld [vmem:[#allocation8 + $0x78] sm:$0xff]
        %v766 = vld [vmem:[#allocation9] sm:$0x1]
        %v768 = vperm.slane %v766, 0
        %770 = vmatpush.msra.mxu0 %v765
        %771 = vmatpush.msra.mxu0 %v764
        %772 = vmatpush.msra.mxu0 %v763
        %773 = vmatpush.msra.mxu0 %v762
        %774 = vmatpush.msra.mxu0 %v761
        %775 = vmatpush.msra.mxu0 %v760
        %776 = vmatpush.msra.mxu0 %v759
        %777 = vmatpush.msra.mxu0 %v758
        %778 = vmatpush.msra.mxu0 %v757
        %779 = vmatpush.msra.mxu0 %v756
        %780 = vmatpush.msra.mxu0 %v755
        %781 = vmatpush.msra.mxu0 %v754
        %782 = vmatpush.msra.mxu0 %v753
        %783 = vmatpush.msra.mxu0 %v752
        %784 = vmatpush.msra.mxu0 %v751
        %785 = vmatpush.msra.mxu0 %v750
        %786 = vmatmul.f32.gmra.mxu0 %v742
        %v787 = vpop.f32.mrf.mxu0
        %v788 = vadd.f32 %v768, %v787
        %789 = vmatmul.f32.gmra.mxu0 %v743
        %v790 = vpop.f32.mrf.mxu0
        %v791 = vadd.f32 %v768, %v790
        %792 = vmatmul.f32.gmra.mxu0 %v744
        %v793 = vpop.f32.mrf.mxu0
        %v794 = vadd.f32 %v768, %v793
        %795 = vmatmul.f32.gmra.mxu0 %v745
        %v796 = vpop.f32.mrf.mxu0
        %v797 = vadd.f32 %v768, %v796
        %798 = vmatmul.f32.gmra.mxu0 %v746
        %v799 = vpop.f32.mrf.mxu0
        %v800 = vadd.f32 %v768, %v799
        %801 = vmatmul.f32.gmra.mxu0 %v747
        %v802 = vpop.f32.mrf.mxu0
        %v803 = vadd.f32 %v768, %v802
        %804 = vmatmul.f32.gmra.mxu0 %v748
        %v805 = vpop.f32.mrf.mxu0
        %v806 = vadd.f32 %v768, %v805
        %807 = vmatmul.f32.gmra.mxu0 %v749
        %v808 = vpop.f32.mrf.mxu0
        %v809 = vadd.f32 %v768, %v808
        %810 = vdwg.mxu0
        %s811 = sld [smem:[#allocation2]]
        %v812 = vmul.f32 %v719, %v592
        %v813 = vmul.f32 %v722, %v595
        %v814 = vmul.f32 %v725, %v598
        %v815 = vmul.f32 %v728, %v601
        %v816 = vmul.f32 %v731, %v604
        %v817 = vmul.f32 %v734, %v607
        %v818 = vmul.f32 %v737, %v610
        %v819 = vmul.f32 %v740, %v613
        %820 = vadd.xlane.f32.xlu0 %v812
        %v821 = vpop.xlane.xlu0 %820
        %822 = vadd.xlane.f32.xlu0 %v813
        %v823 = vpop.xlane.xlu0 %822
        %824 = vadd.xlane.f32.xlu0 %v814
        %v825 = vpop.xlane.xlu0 %824
        %826 = vadd.xlane.f32.xlu0 %v815
        %v827 = vpop.xlane.xlu0 %826
        %828 = vadd.xlane.f32.xlu0 %v816
        %v829 = vpop.xlane.xlu0 %828
        %830 = vadd.xlane.f32.xlu0 %v817
        %v831 = vpop.xlane.xlu0 %830
        %832 = vadd.xlane.f32.xlu0 %v818
        %v833 = vpop.xlane.xlu0 %832
        %834 = vadd.xlane.f32.xlu0 %v819
        %v835 = vpop.xlane.xlu0 %834
        %v836 = vmul.f32 %v719, %v719
        %v837 = vmul.f32 %v722, %v722
        %v838 = vmul.f32 %v725, %v725
        %v839 = vmul.f32 %v728, %v728
        %v840 = vmul.f32 %v731, %v731
        %v841 = vmul.f32 %v734, %v734
        %v842 = vmul.f32 %v737, %v737
        %v843 = vmul.f32 %v740, %v740
        %844 = vadd.xlane.f32.xlu0 %v836
        %v845 = vpop.xlane.xlu0 %844
        %846 = vadd.xlane.f32.xlu0 %v837
        %v847 = vpop.xlane.xlu0 %846
        %848 = vadd.xlane.f32.xlu0 %v838
        %v849 = vpop.xlane.xlu0 %848
        %850 = vadd.xlane.f32.xlu0 %v839
        %v851 = vpop.xlane.xlu0 %850
        %852 = vadd.xlane.f32.xlu0 %v840
        %v853 = vpop.xlane.xlu0 %852
        %854 = vadd.xlane.f32.xlu0 %v841
        %v855 = vpop.xlane.xlu0 %854
        %856 = vadd.xlane.f32.xlu0 %v842
        %v857 = vpop.xlane.xlu0 %856
        %858 = vadd.xlane.f32.xlu0 %v843
        %v859 = vpop.xlane.xlu0 %858
        %v860 = vrsqrt.pop %v845
        %v861 = vmul.f32 %v860, %v845
        %v862 = vmul.f32 %v861, %v860
        %v863 = vmul.f32 0.5, %v862
        %v864 = vsub.f32 1.5, %v863
        %v865 = vmul.f32 %v860, %v864
        %v866 = vmul.f32 %v845, %v865
        %vm867 = vcmp.eq.f32.partialorder %v845, inf
        %v868 = vsel %vm867, %v845, %v866
        %vm869 = vcmp.eq.f32.partialorder %v845, 0.0
        %v870 = vand.u32 %v845, 2147483648
        %v871 = vsel %vm869, %v870, %v868
        %v872 = vrsqrt.pop %v847
        %v873 = vmul.f32 %v872, %v847
        %v874 = vmul.f32 %v873, %v872
        %v875 = vmul.f32 0.5, %v874
        %v876 = vsub.f32 1.5, %v875
        %v877 = vmul.f32 %v872, %v876
        %v878 = vmul.f32 %v847, %v877
        %vm879 = vcmp.eq.f32.partialorder %v847, inf
        %v880 = vsel %vm879, %v847, %v878
        %vm881 = vcmp.eq.f32.partialorder %v847, 0.0
        %v882 = vand.u32 %v847, 2147483648
        %v883 = vsel %vm881, %v882, %v880
        %v884 = vrsqrt.pop %v849
        %v885 = vmul.f32 %v884, %v849
        %v886 = vmul.f32 %v885, %v884
        %v887 = vmul.f32 0.5, %v886
        %v888 = vsub.f32 1.5, %v887
        %v889 = vmul.f32 %v884, %v888
        %v890 = vmul.f32 %v849, %v889
        %vm891 = vcmp.eq.f32.partialorder %v849, inf
        %v892 = vsel %vm891, %v849, %v890
        %vm893 = vcmp.eq.f32.partialorder %v849, 0.0
        %v894 = vand.u32 %v849, 2147483648
        %v895 = vsel %vm893, %v894, %v892
        %v896 = vrsqrt.pop %v851
        %v897 = vmul.f32 %v896, %v851
        %v898 = vmul.f32 %v897, %v896
        %v899 = vmul.f32 0.5, %v898
        %v900 = vsub.f32 1.5, %v899
        %v901 = vmul.f32 %v896, %v900
        %v902 = vmul.f32 %v851, %v901
        %vm903 = vcmp.eq.f32.partialorder %v851, inf
        %v904 = vsel %vm903, %v851, %v902
        %vm905 = vcmp.eq.f32.partialorder %v851, 0.0
        %v906 = vand.u32 %v851, 2147483648
        %v907 = vsel %vm905, %v906, %v904
        %v908 = vrsqrt.pop %v853
        %v909 = vmul.f32 %v908, %v853
        %v910 = vmul.f32 %v909, %v908
        %v911 = vmul.f32 0.5, %v910
        %v912 = vsub.f32 1.5, %v911
        %v913 = vmul.f32 %v908, %v912
        %v914 = vmul.f32 %v853, %v913
        %vm915 = vcmp.eq.f32.partialorder %v853, inf
        %v916 = vsel %vm915, %v853, %v914
        %vm917 = vcmp.eq.f32.partialorder %v853, 0.0
        %v918 = vand.u32 %v853, 2147483648
        %v919 = vsel %vm917, %v918, %v916
        %v920 = vrsqrt.pop %v855
        %v921 = vmul.f32 %v920, %v855
        %v922 = vmul.f32 %v921, %v920
        %v923 = vmul.f32 0.5, %v922
        %v924 = vsub.f32 1.5, %v923
        %v925 = vmul.f32 %v920, %v924
        %v926 = vmul.f32 %v855, %v925
        %vm927 = vcmp.eq.f32.partialorder %v855, inf
        %v928 = vsel %vm927, %v855, %v926
        %vm929 = vcmp.eq.f32.partialorder %v855, 0.0
        %v930 = vand.u32 %v855, 2147483648
        %v931 = vsel %vm929, %v930, %v928
        %v932 = vrsqrt.pop %v857
        %v933 = vmul.f32 %v932, %v857
        %v934 = vmul.f32 %v933, %v932
        %v935 = vmul.f32 0.5, %v934
        %v936 = vsub.f32 1.5, %v935
        %v937 = vmul.f32 %v932, %v936
        %v938 = vmul.f32 %v857, %v937
        %vm939 = vcmp.eq.f32.partialorder %v857, inf
        %v940 = vsel %vm939, %v857, %v938
        %vm941 = vcmp.eq.f32.partialorder %v857, 0.0
        %v942 = vand.u32 %v857, 2147483648
        %v943 = vsel %vm941, %v942, %v940
        %v944 = vrsqrt.pop %v859
        %v945 = vmul.f32 %v944, %v859
        %v946 = vmul.f32 %v945, %v944
        %v947 = vmul.f32 0.5, %v946
        %v948 = vsub.f32 1.5, %v947
        %v949 = vmul.f32 %v944, %v948
        %v950 = vmul.f32 %v859, %v949
        %vm951 = vcmp.eq.f32.partialorder %v859, inf
        %v952 = vsel %vm951, %v859, %v950
        %vm953 = vcmp.eq.f32.partialorder %v859, 0.0
        %v954 = vand.u32 %v859, 2147483648
        %v955 = vsel %vm953, %v954, %v952
        %v956 = vmul.f32 %v592, %v592
        %v957 = vmul.f32 %v595, %v595
        %v958 = vmul.f32 %v598, %v598
        %v959 = vmul.f32 %v601, %v601
        %v960 = vmul.f32 %v604, %v604
        %v961 = vmul.f32 %v607, %v607
        %v962 = vmul.f32 %v610, %v610
        %v963 = vmul.f32 %v613, %v613
        %964 = vadd.xlane.f32.xlu0 %v956
        %v965 = vpop.xlane.xlu0 %964
        %966 = vadd.xlane.f32.xlu0 %v957
        %v967 = vpop.xlane.xlu0 %966
        %968 = vadd.xlane.f32.xlu0 %v958
        %v969 = vpop.xlane.xlu0 %968
        %970 = vadd.xlane.f32.xlu0 %v959
        %v971 = vpop.xlane.xlu0 %970
        %972 = vadd.xlane.f32.xlu0 %v960
        %v973 = vpop.xlane.xlu0 %972
        %974 = vadd.xlane.f32.xlu0 %v961
        %v975 = vpop.xlane.xlu0 %974
        %976 = vadd.xlane.f32.xlu0 %v962
        %v977 = vpop.xlane.xlu0 %976
        %978 = vadd.xlane.f32.xlu0 %v963
        %v979 = vpop.xlane.xlu0 %978
        %v980 = vrsqrt.pop %v965
        %v981 = vmul.f32 %v980, %v965
        %v982 = vmul.f32 %v981, %v980
        %v983 = vmul.f32 0.5, %v982
        %v984 = vsub.f32 1.5, %v983
        %v985 = vmul.f32 %v980, %v984
        %v986 = vmul.f32 %v965, %v985
        %vm987 = vcmp.eq.f32.partialorder %v965, inf
        %v988 = vsel %vm987, %v965, %v986
        %vm989 = vcmp.eq.f32.partialorder %v965, 0.0
        %v990 = vand.u32 %v965, 2147483648
        %v991 = vsel %vm989, %v990, %v988
        %v992 = vrsqrt.pop %v967
        %v993 = vmul.f32 %v992, %v967
        %v994 = vmul.f32 %v993, %v992
        %v995 = vmul.f32 0.5, %v994
        %v996 = vsub.f32 1.5, %v995
        %v997 = vmul.f32 %v992, %v996
        %v998 = vmul.f32 %v967, %v997
        %vm999 = vcmp.eq.f32.partialorder %v967, inf
        %v1000 = vsel %vm999, %v967, %v998
        %vm1001 = vcmp.eq.f32.partialorder %v967, 0.0
        %v1002 = vand.u32 %v967, 2147483648
        %v1003 = vsel %vm1001, %v1002, %v1000
        %v1004 = vrsqrt.pop %v969
        %v1005 = vmul.f32 %v1004, %v969
        %v1006 = vmul.f32 %v1005, %v1004
        %v1007 = vmul.f32 0.5, %v1006
        %v1008 = vsub.f32 1.5, %v1007
        %v1009 = vmul.f32 %v1004, %v1008
        %v1010 = vmul.f32 %v969, %v1009
        %vm1011 = vcmp.eq.f32.partialorder %v969, inf
        %v1012 = vsel %vm1011, %v969, %v1010
        %vm1013 = vcmp.eq.f32.partialorder %v969, 0.0
        %v1014 = vand.u32 %v969, 2147483648
        %v1015 = vsel %vm1013, %v1014, %v1012
        %v1016 = vrsqrt.pop %v971
        %v1017 = vmul.f32 %v1016, %v971
        %v1018 = vmul.f32 %v1017, %v1016
        %v1019 = vmul.f32 0.5, %v1018
        %v1020 = vsub.f32 1.5, %v1019
        %v1021 = vmul.f32 %v1016, %v1020
        %v1022 = vmul.f32 %v971, %v1021
        %vm1023 = vcmp.eq.f32.partialorder %v971, inf
        %v1024 = vsel %vm1023, %v971, %v1022
        %vm1025 = vcmp.eq.f32.partialorder %v971, 0.0
        %v1026 = vand.u32 %v971, 2147483648
        %v1027 = vsel %vm1025, %v1026, %v1024
        %v1028 = vrsqrt.pop %v973
        %v1029 = vmul.f32 %v1028, %v973
        %v1030 = vmul.f32 %v1029, %v1028
        %v1031 = vmul.f32 0.5, %v1030
        %v1032 = vsub.f32 1.5, %v1031
        %v1033 = vmul.f32 %v1028, %v1032
        %v1034 = vmul.f32 %v973, %v1033
        %vm1035 = vcmp.eq.f32.partialorder %v973, inf
        %v1036 = vsel %vm1035, %v973, %v1034
        %vm1037 = vcmp.eq.f32.partialorder %v973, 0.0
        %v1038 = vand.u32 %v973, 2147483648
        %v1039 = vsel %vm1037, %v1038, %v1036
        %v1040 = vrsqrt.pop %v975
        %v1041 = vmul.f32 %v1040, %v975
        %v1042 = vmul.f32 %v1041, %v1040
        %v1043 = vmul.f32 0.5, %v1042
        %v1044 = vsub.f32 1.5, %v1043
        %v1045 = vmul.f32 %v1040, %v1044
        %v1046 = vmul.f32 %v975, %v1045
        %vm1047 = vcmp.eq.f32.partialorder %v975, inf
        %v1048 = vsel %vm1047, %v975, %v1046
        %vm1049 = vcmp.eq.f32.partialorder %v975, 0.0
        %v1050 = vand.u32 %v975, 2147483648
        %v1051 = vsel %vm1049, %v1050, %v1048
        %v1052 = vrsqrt.pop %v977
        %v1053 = vmul.f32 %v1052, %v977
        %v1054 = vmul.f32 %v1053, %v1052
        %v1055 = vmul.f32 0.5, %v1054
        %v1056 = vsub.f32 1.5, %v1055
        %v1057 = vmul.f32 %v1052, %v1056
        %v1058 = vmul.f32 %v977, %v1057
        %vm1059 = vcmp.eq.f32.partialorder %v977, inf
        %v1060 = vsel %vm1059, %v977, %v1058
        %vm1061 = vcmp.eq.f32.partialorder %v977, 0.0
        %v1062 = vand.u32 %v977, 2147483648
        %v1063 = vsel %vm1061, %v1062, %v1060
        %v1064 = vrsqrt.pop %v979
        %v1065 = vmul.f32 %v1064, %v979
        %v1066 = vmul.f32 %v1065, %v1064
        %v1067 = vmul.f32 0.5, %v1066
        %v1068 = vsub.f32 1.5, %v1067
        %v1069 = vmul.f32 %v1064, %v1068
        %v1070 = vmul.f32 %v979, %v1069
        %vm1071 = vcmp.eq.f32.partialorder %v979, inf
        %v1072 = vsel %vm1071, %v979, %v1070
        %vm1073 = vcmp.eq.f32.partialorder %v979, 0.0
        %v1074 = vand.u32 %v979, 2147483648
        %v1075 = vsel %vm1073, %v1074, %v1072
        %v1076 = vmul.f32 %v871, %v991
        %v1077 = vmul.f32 %v883, %v1003
        %v1078 = vmul.f32 %v895, %v1015
        %v1079 = vmul.f32 %v907, %v1027
        %v1080 = vmul.f32 %v919, %v1039
        %v1081 = vmul.f32 %v931, %v1051
        %v1082 = vmul.f32 %v943, %v1063
        %v1083 = vmul.f32 %v955, %v1075
        %v1084 = vmax.f32 %v1076, 1e-08
        %v1085 = vmax.f32 %v1077, 1e-08
        %v1086 = vmax.f32 %v1078, 1e-08
        %v1087 = vmax.f32 %v1079, 1e-08
        %v1088 = vmax.f32 %v1080, 1e-08
        %v1089 = vmax.f32 %v1081, 1e-08
        %v1090 = vmax.f32 %v1082, 1e-08
        %v1091 = vmax.f32 %v1083, 1e-08
        %v1092 = vrcp.pop %v1084
        %v1093 = vmul.f32 %v1084, %v1092
        %v1094 = vsub.f32 1.0, %v1093
        %v1095 = vmul.f32 %v1092, %v1094
        %v1096 = vadd.f32 %v1092, %v1095
        %vm1097 = vweird.f32 %v1084
        %vm1098 = vweird.f32 %v1092
        %vm1099 = vmor %vm1097, %vm1098
        %v1100 = vsel %vm1099, %v1092, %v1096
        %v1101 = vand.u32 2147483647, %v1084
        %vm1102 = vcmp.eq.f32.partialorder %v1101, 8.507059e+37
        %v1103 = vand.u32 %v1084, 2147483648
        %v1104 = vor.u32 1.1754944e-38, %v1103
        %v1105 = vsel %vm1102, %v1104, %v1100
        %v1106 = vmul.f32 %v821, %v1105
        %v1107 = vrcp.pop %v1085
        %v1108 = vmul.f32 %v1085, %v1107
        %v1109 = vsub.f32 1.0, %v1108
        %v1110 = vmul.f32 %v1107, %v1109
        %v1111 = vadd.f32 %v1107, %v1110
        %vm1112 = vweird.f32 %v1085
        %vm1113 = vweird.f32 %v1107
        %vm1114 = vmor %vm1112, %vm1113
        %v1115 = vsel %vm1114, %v1107, %v1111
        %v1116 = vand.u32 2147483647, %v1085
        %vm1117 = vcmp.eq.f32.partialorder %v1116, 8.507059e+37
        %v1118 = vand.u32 %v1085, 2147483648
        %v1119 = vor.u32 1.1754944e-38, %v1118
        %v1120 = vsel %vm1117, %v1119, %v1115
        %v1121 = vmul.f32 %v823, %v1120
        %v1122 = vrcp.pop %v1086
        %v1123 = vmul.f32 %v1086, %v1122
        %v1124 = vsub.f32 1.0, %v1123
        %v1125 = vmul.f32 %v1122, %v1124
        %v1126 = vadd.f32 %v1122, %v1125
        %vm1127 = vweird.f32 %v1086
        %vm1128 = vweird.f32 %v1122
        %vm1129 = vmor %vm1127, %vm1128
        %v1130 = vsel %vm1129, %v1122, %v1126
        %v1131 = vand.u32 2147483647, %v1086
        %vm1132 = vcmp.eq.f32.partialorder %v1131, 8.507059e+37
        %v1133 = vand.u32 %v1086, 2147483648
        %v1134 = vor.u32 1.1754944e-38, %v1133
        %v1135 = vsel %vm1132, %v1134, %v1130
        %v1136 = vmul.f32 %v825, %v1135
        %v1137 = vrcp.pop %v1087
        %v1138 = vmul.f32 %v1087, %v1137
        %v1139 = vsub.f32 1.0, %v1138
        %v1140 = vmul.f32 %v1137, %v1139
        %v1141 = vadd.f32 %v1137, %v1140
        %vm1142 = vweird.f32 %v1087
        %vm1143 = vweird.f32 %v1137
        %vm1144 = vmor %vm1142, %vm1143
        %v1145 = vsel %vm1144, %v1137, %v1141
        %v1146 = vand.u32 2147483647, %v1087
        %vm1147 = vcmp.eq.f32.partialorder %v1146, 8.507059e+37
        %v1148 = vand.u32 %v1087, 2147483648
        %v1149 = vor.u32 1.1754944e-38, %v1148
        %v1150 = vsel %vm1147, %v1149, %v1145
        %v1151 = vmul.f32 %v827, %v1150
        %v1152 = vrcp.pop %v1088
        %v1153 = vmul.f32 %v1088, %v1152
        %v1154 = vsub.f32 1.0, %v1153
        %v1155 = vmul.f32 %v1152, %v1154
        %v1156 = vadd.f32 %v1152, %v1155
        %vm1157 = vweird.f32 %v1088
        %vm1158 = vweird.f32 %v1152
        %vm1159 = vmor %vm1157, %vm1158
        %v1160 = vsel %vm1159, %v1152, %v1156
        %v1161 = vand.u32 2147483647, %v1088
        %vm1162 = vcmp.eq.f32.partialorder %v1161, 8.507059e+37
        %v1163 = vand.u32 %v1088, 2147483648
        %v1164 = vor.u32 1.1754944e-38, %v1163
        %v1165 = vsel %vm1162, %v1164, %v1160
        %v1166 = vmul.f32 %v829, %v1165
        %v1167 = vrcp.pop %v1089
        %v1168 = vmul.f32 %v1089, %v1167
        %v1169 = vsub.f32 1.0, %v1168
        %v1170 = vmul.f32 %v1167, %v1169
        %v1171 = vadd.f32 %v1167, %v1170
        %vm1172 = vweird.f32 %v1089
        %vm1173 = vweird.f32 %v1167
        %vm1174 = vmor %vm1172, %vm1173
        %v1175 = vsel %vm1174, %v1167, %v1171
        %v1176 = vand.u32 2147483647, %v1089
        %vm1177 = vcmp.eq.f32.partialorder %v1176, 8.507059e+37
        %v1178 = vand.u32 %v1089, 2147483648
        %v1179 = vor.u32 1.1754944e-38, %v1178
        %v1180 = vsel %vm1177, %v1179, %v1175
        %v1181 = vmul.f32 %v831, %v1180
        %v1182 = vrcp.pop %v1090
        %v1183 = vmul.f32 %v1090, %v1182
        %v1184 = vsub.f32 1.0, %v1183
        %v1185 = vmul.f32 %v1182, %v1184
        %v1186 = vadd.f32 %v1182, %v1185
        %vm1187 = vweird.f32 %v1090
        %vm1188 = vweird.f32 %v1182
        %vm1189 = vmor %vm1187, %vm1188
        %v1190 = vsel %vm1189, %v1182, %v1186
        %v1191 = vand.u32 2147483647, %v1090
        %vm1192 = vcmp.eq.f32.partialorder %v1191, 8.507059e+37
        %v1193 = vand.u32 %v1090, 2147483648
        %v1194 = vor.u32 1.1754944e-38, %v1193
        %v1195 = vsel %vm1192, %v1194, %v1190
        %v1196 = vmul.f32 %v833, %v1195
        %v1197 = vrcp.pop %v1091
        %v1198 = vmul.f32 %v1091, %v1197
        %v1199 = vsub.f32 1.0, %v1198
        %v1200 = vmul.f32 %v1197, %v1199
        %v1201 = vadd.f32 %v1197, %v1200
        %vm1202 = vweird.f32 %v1091
        %vm1203 = vweird.f32 %v1197
        %vm1204 = vmor %vm1202, %vm1203
        %v1205 = vsel %vm1204, %v1197, %v1201
        %v1206 = vand.u32 2147483647, %v1091
        %vm1207 = vcmp.eq.f32.partialorder %v1206, 8.507059e+37
        %v1208 = vand.u32 %v1091, 2147483648
        %v1209 = vor.u32 1.1754944e-38, %v1208
        %v1210 = vsel %vm1207, %v1209, %v1205
        %v1211 = vmul.f32 %v835, %v1210
        %v1212 = vmul.f32 %v788, %v633
        %v1213 = vmul.f32 %v791, %v636
        %v1214 = vmul.f32 %v794, %v639
        %v1215 = vmul.f32 %v797, %v642
        %v1216 = vmul.f32 %v800, %v645
        %v1217 = vmul.f32 %v803, %v648
        %v1218 = vmul.f32 %v806, %v651
        %v1219 = vmul.f32 %v809, %v654
        %1220 = vadd.xlane.f32.xlu0 %v1212
        %v1221 = vpop.xlane.xlu0 %1220
        %1222 = vadd.xlane.f32.xlu0 %v1213
        %v1223 = vpop.xlane.xlu0 %1222
        %1224 = vadd.xlane.f32.xlu0 %v1214
        %v1225 = vpop.xlane.xlu0 %1224
        %1226 = vadd.xlane.f32.xlu0 %v1215
        %v1227 = vpop.xlane.xlu0 %1226
        %1228 = vadd.xlane.f32.xlu0 %v1216
        %v1229 = vpop.xlane.xlu0 %1228
        %1230 = vadd.xlane.f32.xlu0 %v1217
        %v1231 = vpop.xlane.xlu0 %1230
        %1232 = vadd.xlane.f32.xlu0 %v1218
        %v1233 = vpop.xlane.xlu0 %1232
        %1234 = vadd.xlane.f32.xlu0 %v1219
        %v1235 = vpop.xlane.xlu0 %1234
        %v1236 = vmul.f32 %v788, %v788
        %v1237 = vmul.f32 %v791, %v791
        %v1238 = vmul.f32 %v794, %v794
        %v1239 = vmul.f32 %v797, %v797
        %v1240 = vmul.f32 %v800, %v800
        %v1241 = vmul.f32 %v803, %v803
        %v1242 = vmul.f32 %v806, %v806
        %v1243 = vmul.f32 %v809, %v809
        %1244 = vadd.xlane.f32.xlu0 %v1236
        %v1245 = vpop.xlane.xlu0 %1244
        %1246 = vadd.xlane.f32.xlu0 %v1237
        %v1247 = vpop.xlane.xlu0 %1246
        %1248 = vadd.xlane.f32.xlu0 %v1238
        %v1249 = vpop.xlane.xlu0 %1248
        %1250 = vadd.xlane.f32.xlu0 %v1239
        %v1251 = vpop.xlane.xlu0 %1250
        %1252 = vadd.xlane.f32.xlu0 %v1240
        %v1253 = vpop.xlane.xlu0 %1252
        %1254 = vadd.xlane.f32.xlu0 %v1241
        %v1255 = vpop.xlane.xlu0 %1254
        %1256 = vadd.xlane.f32.xlu0 %v1242
        %v1257 = vpop.xlane.xlu0 %1256
        %1258 = vadd.xlane.f32.xlu0 %v1243
        %v1259 = vpop.xlane.xlu0 %1258
        %v1260 = vrsqrt.pop %v1245
        %v1261 = vmul.f32 %v1260, %v1245
        %v1262 = vmul.f32 %v1261, %v1260
        %v1263 = vmul.f32 0.5, %v1262
        %v1264 = vsub.f32 1.5, %v1263
        %v1265 = vmul.f32 %v1260, %v1264
        %v1266 = vmul.f32 %v1245, %v1265
        %vm1267 = vcmp.eq.f32.partialorder %v1245, inf
        %v1268 = vsel %vm1267, %v1245, %v1266
        %vm1269 = vcmp.eq.f32.partialorder %v1245, 0.0
        %v1270 = vand.u32 %v1245, 2147483648
        %v1271 = vsel %vm1269, %v1270, %v1268
        %v1272 = vrsqrt.pop %v1247
        %v1273 = vmul.f32 %v1272, %v1247
        %v1274 = vmul.f32 %v1273, %v1272
        %v1275 = vmul.f32 0.5, %v1274
        %v1276 = vsub.f32 1.5, %v1275
        %v1277 = vmul.f32 %v1272, %v1276
        %v1278 = vmul.f32 %v1247, %v1277
        %vm1279 = vcmp.eq.f32.partialorder %v1247, inf
        %v1280 = vsel %vm1279, %v1247, %v1278
        %vm1281 = vcmp.eq.f32.partialorder %v1247, 0.0
        %v1282 = vand.u32 %v1247, 2147483648
        %v1283 = vsel %vm1281, %v1282, %v1280
        %v1284 = vrsqrt.pop %v1249
        %v1285 = vmul.f32 %v1284, %v1249
        %v1286 = vmul.f32 %v1285, %v1284
        %v1287 = vmul.f32 0.5, %v1286
        %v1288 = vsub.f32 1.5, %v1287
        %v1289 = vmul.f32 %v1284, %v1288
        %v1290 = vmul.f32 %v1249, %v1289
        %vm1291 = vcmp.eq.f32.partialorder %v1249, inf
        %v1292 = vsel %vm1291, %v1249, %v1290
        %vm1293 = vcmp.eq.f32.partialorder %v1249, 0.0
        %v1294 = vand.u32 %v1249, 2147483648
        %v1295 = vsel %vm1293, %v1294, %v1292
        %v1296 = vrsqrt.pop %v1251
        %v1297 = vmul.f32 %v1296, %v1251
        %v1298 = vmul.f32 %v1297, %v1296
        %v1299 = vmul.f32 0.5, %v1298
        %v1300 = vsub.f32 1.5, %v1299
        %v1301 = vmul.f32 %v1296, %v1300
        %v1302 = vmul.f32 %v1251, %v1301
        %vm1303 = vcmp.eq.f32.partialorder %v1251, inf
        %v1304 = vsel %vm1303, %v1251, %v1302
        %vm1305 = vcmp.eq.f32.partialorder %v1251, 0.0
        %v1306 = vand.u32 %v1251, 2147483648
        %v1307 = vsel %vm1305, %v1306, %v1304
        %v1308 = vrsqrt.pop %v1253
        %v1309 = vmul.f32 %v1308, %v1253
        %v1310 = vmul.f32 %v1309, %v1308
        %v1311 = vmul.f32 0.5, %v1310
        %v1312 = vsub.f32 1.5, %v1311
        %v1313 = vmul.f32 %v1308, %v1312
        %v1314 = vmul.f32 %v1253, %v1313
        %vm1315 = vcmp.eq.f32.partialorder %v1253, inf
        %v1316 = vsel %vm1315, %v1253, %v1314
        %vm1317 = vcmp.eq.f32.partialorder %v1253, 0.0
        %v1318 = vand.u32 %v1253, 2147483648
        %v1319 = vsel %vm1317, %v1318, %v1316
        %v1320 = vrsqrt.pop %v1255
        %v1321 = vmul.f32 %v1320, %v1255
        %v1322 = vmul.f32 %v1321, %v1320
        %v1323 = vmul.f32 0.5, %v1322
        %v1324 = vsub.f32 1.5, %v1323
        %v1325 = vmul.f32 %v1320, %v1324
        %v1326 = vmul.f32 %v1255, %v1325
        %vm1327 = vcmp.eq.f32.partialorder %v1255, inf
        %v1328 = vsel %vm1327, %v1255, %v1326
        %vm1329 = vcmp.eq.f32.partialorder %v1255, 0.0
        %v1330 = vand.u32 %v1255, 2147483648
        %v1331 = vsel %vm1329, %v1330, %v1328
        %v1332 = vrsqrt.pop %v1257
        %v1333 = vmul.f32 %v1332, %v1257
        %v1334 = vmul.f32 %v1333, %v1332
        %v1335 = vmul.f32 0.5, %v1334
        %v1336 = vsub.f32 1.5, %v1335
        %v1337 = vmul.f32 %v1332, %v1336
        %v1338 = vmul.f32 %v1257, %v1337
        %vm1339 = vcmp.eq.f32.partialorder %v1257, inf
        %v1340 = vsel %vm1339, %v1257, %v1338
        %vm1341 = vcmp.eq.f32.partialorder %v1257, 0.0
        %v1342 = vand.u32 %v1257, 2147483648
        %v1343 = vsel %vm1341, %v1342, %v1340
        %v1344 = vrsqrt.pop %v1259
        %v1345 = vmul.f32 %v1344, %v1259
        %v1346 = vmul.f32 %v1345, %v1344
        %v1347 = vmul.f32 0.5, %v1346
        %v1348 = vsub.f32 1.5, %v1347
        %v1349 = vmul.f32 %v1344, %v1348
        %v1350 = vmul.f32 %v1259, %v1349
        %vm1351 = vcmp.eq.f32.partialorder %v1259, inf
        %v1352 = vsel %vm1351, %v1259, %v1350
        %vm1353 = vcmp.eq.f32.partialorder %v1259, 0.0
        %v1354 = vand.u32 %v1259, 2147483648
        %v1355 = vsel %vm1353, %v1354, %v1352
        %v1356 = vmul.f32 %v633, %v633
        %v1357 = vmul.f32 %v636, %v636
        %v1358 = vmul.f32 %v639, %v639
        %v1359 = vmul.f32 %v642, %v642
        %v1360 = vmul.f32 %v645, %v645
        %v1361 = vmul.f32 %v648, %v648
        %v1362 = vmul.f32 %v651, %v651
        %v1363 = vmul.f32 %v654, %v654
        %1364 = vadd.xlane.f32.xlu0 %v1356
        %v1365 = vpop.xlane.xlu0 %1364
        %1366 = vadd.xlane.f32.xlu0 %v1357
        %v1367 = vpop.xlane.xlu0 %1366
        %1368 = vadd.xlane.f32.xlu0 %v1358
        %v1369 = vpop.xlane.xlu0 %1368
        %1370 = vadd.xlane.f32.xlu0 %v1359
        %v1371 = vpop.xlane.xlu0 %1370
        %1372 = vadd.xlane.f32.xlu0 %v1360
        %v1373 = vpop.xlane.xlu0 %1372
        %1374 = vadd.xlane.f32.xlu0 %v1361
        %v1375 = vpop.xlane.xlu0 %1374
        %1376 = vadd.xlane.f32.xlu0 %v1362
        %v1377 = vpop.xlane.xlu0 %1376
        %1378 = vadd.xlane.f32.xlu0 %v1363
        %v1379 = vpop.xlane.xlu0 %1378
        %v1380 = vrsqrt.pop %v1365
        %v1381 = vmul.f32 %v1380, %v1365
        %v1382 = vmul.f32 %v1381, %v1380
        %v1383 = vmul.f32 0.5, %v1382
        %v1384 = vsub.f32 1.5, %v1383
        %v1385 = vmul.f32 %v1380, %v1384
        %v1386 = vmul.f32 %v1365, %v1385
        %vm1387 = vcmp.eq.f32.partialorder %v1365, inf
        %v1388 = vsel %vm1387, %v1365, %v1386
        %vm1389 = vcmp.eq.f32.partialorder %v1365, 0.0
        %v1390 = vand.u32 %v1365, 2147483648
        %v1391 = vsel %vm1389, %v1390, %v1388
        %v1392 = vrsqrt.pop %v1367
        %v1393 = vmul.f32 %v1392, %v1367
        %v1394 = vmul.f32 %v1393, %v1392
        %v1395 = vmul.f32 0.5, %v1394
        %v1396 = vsub.f32 1.5, %v1395
        %v1397 = vmul.f32 %v1392, %v1396
        %v1398 = vmul.f32 %v1367, %v1397
        %vm1399 = vcmp.eq.f32.partialorder %v1367, inf
        %v1400 = vsel %vm1399, %v1367, %v1398
        %vm1401 = vcmp.eq.f32.partialorder %v1367, 0.0
        %v1402 = vand.u32 %v1367, 2147483648
        %v1403 = vsel %vm1401, %v1402, %v1400
        %v1404 = vrsqrt.pop %v1369
        %v1405 = vmul.f32 %v1404, %v1369
        %v1406 = vmul.f32 %v1405, %v1404
        %v1407 = vmul.f32 0.5, %v1406
        %v1408 = vsub.f32 1.5, %v1407
        %v1409 = vmul.f32 %v1404, %v1408
        %v1410 = vmul.f32 %v1369, %v1409
        %vm1411 = vcmp.eq.f32.partialorder %v1369, inf
        %v1412 = vsel %vm1411, %v1369, %v1410
        %vm1413 = vcmp.eq.f32.partialorder %v1369, 0.0
        %v1414 = vand.u32 %v1369, 2147483648
        %v1415 = vsel %vm1413, %v1414, %v1412
        %v1416 = vrsqrt.pop %v1371
        %v1417 = vmul.f32 %v1416, %v1371
        %v1418 = vmul.f32 %v1417, %v1416
        %v1419 = vmul.f32 0.5, %v1418
        %v1420 = vsub.f32 1.5, %v1419
        %v1421 = vmul.f32 %v1416, %v1420
        %v1422 = vmul.f32 %v1371, %v1421
        %vm1423 = vcmp.eq.f32.partialorder %v1371, inf
        %v1424 = vsel %vm1423, %v1371, %v1422
        %vm1425 = vcmp.eq.f32.partialorder %v1371, 0.0
        %v1426 = vand.u32 %v1371, 2147483648
        %v1427 = vsel %vm1425, %v1426, %v1424
        %v1428 = vrsqrt.pop %v1373
        %v1429 = vmul.f32 %v1428, %v1373
        %v1430 = vmul.f32 %v1429, %v1428
        %v1431 = vmul.f32 0.5, %v1430
        %v1432 = vsub.f32 1.5, %v1431
        %v1433 = vmul.f32 %v1428, %v1432
        %v1434 = vmul.f32 %v1373, %v1433
        %vm1435 = vcmp.eq.f32.partialorder %v1373, inf
        %v1436 = vsel %vm1435, %v1373, %v1434
        %vm1437 = vcmp.eq.f32.partialorder %v1373, 0.0
        %v1438 = vand.u32 %v1373, 2147483648
        %v1439 = vsel %vm1437, %v1438, %v1436
        %v1440 = vrsqrt.pop %v1375
        %v1441 = vmul.f32 %v1440, %v1375
        %v1442 = vmul.f32 %v1441, %v1440
        %v1443 = vmul.f32 0.5, %v1442
        %v1444 = vsub.f32 1.5, %v1443
        %v1445 = vmul.f32 %v1440, %v1444
        %v1446 = vmul.f32 %v1375, %v1445
        %vm1447 = vcmp.eq.f32.partialorder %v1375, inf
        %v1448 = vsel %vm1447, %v1375, %v1446
        %vm1449 = vcmp.eq.f32.partialorder %v1375, 0.0
        %v1450 = vand.u32 %v1375, 2147483648
        %v1451 = vsel %vm1449, %v1450, %v1448
        %v1452 = vrsqrt.pop %v1377
        %v1453 = vmul.f32 %v1452, %v1377
        %v1454 = vmul.f32 %v1453, %v1452
        %v1455 = vmul.f32 0.5, %v1454
        %v1456 = vsub.f32 1.5, %v1455
        %v1457 = vmul.f32 %v1452, %v1456
        %v1458 = vmul.f32 %v1377, %v1457
        %vm1459 = vcmp.eq.f32.partialorder %v1377, inf
        %v1460 = vsel %vm1459, %v1377, %v1458
        %vm1461 = vcmp.eq.f32.partialorder %v1377, 0.0
        %v1462 = vand.u32 %v1377, 2147483648
        %v1463 = vsel %vm1461, %v1462, %v1460
        %v1464 = vrsqrt.pop %v1379
        %v1465 = vmul.f32 %v1464, %v1379
        %v1466 = vmul.f32 %v1465, %v1464
        %v1467 = vmul.f32 0.5, %v1466
        %v1468 = vsub.f32 1.5, %v1467
        %v1469 = vmul.f32 %v1464, %v1468
        %v1470 = vmul.f32 %v1379, %v1469
        %vm1471 = vcmp.eq.f32.partialorder %v1379, inf
        %v1472 = vsel %vm1471, %v1379, %v1470
        %vm1473 = vcmp.eq.f32.partialorder %v1379, 0.0
        %v1474 = vand.u32 %v1379, 2147483648
        %v1475 = vsel %vm1473, %v1474, %v1472
        %v1476 = vmul.f32 %v1271, %v1391
        %v1477 = vmul.f32 %v1283, %v1403
        %v1478 = vmul.f32 %v1295, %v1415
        %v1479 = vmul.f32 %v1307, %v1427
        %v1480 = vmul.f32 %v1319, %v1439
        %v1481 = vmul.f32 %v1331, %v1451
        %v1482 = vmul.f32 %v1343, %v1463
        %v1483 = vmul.f32 %v1355, %v1475
        %v1484 = vmax.f32 %v1476, 1e-08
        %v1485 = vmax.f32 %v1477, 1e-08
        %v1486 = vmax.f32 %v1478, 1e-08
        %v1487 = vmax.f32 %v1479, 1e-08
        %v1488 = vmax.f32 %v1480, 1e-08
        %v1489 = vmax.f32 %v1481, 1e-08
        %v1490 = vmax.f32 %v1482, 1e-08
        %v1491 = vmax.f32 %v1483, 1e-08
        %v1492 = vrcp.pop %v1484
        %v1493 = vmul.f32 %v1484, %v1492
        %v1494 = vsub.f32 1.0, %v1493
        %v1495 = vmul.f32 %v1492, %v1494
        %v1496 = vadd.f32 %v1492, %v1495
        %vm1497 = vweird.f32 %v1484
        %vm1498 = vweird.f32 %v1492
        %vm1499 = vmor %vm1497, %vm1498
        %v1500 = vsel %vm1499, %v1492, %v1496
        %v1501 = vand.u32 2147483647, %v1484
        %vm1502 = vcmp.eq.f32.partialorder %v1501, 8.507059e+37
        %v1503 = vand.u32 %v1484, 2147483648
        %v1504 = vor.u32 1.1754944e-38, %v1503
        %v1505 = vsel %vm1502, %v1504, %v1500
        %v1506 = vmul.f32 %v1221, %v1505
        %v1507 = vrcp.pop %v1485
        %v1508 = vmul.f32 %v1485, %v1507
        %v1509 = vsub.f32 1.0, %v1508
        %v1510 = vmul.f32 %v1507, %v1509
        %v1511 = vadd.f32 %v1507, %v1510
        %vm1512 = vweird.f32 %v1485
        %vm1513 = vweird.f32 %v1507
        %vm1514 = vmor %vm1512, %vm1513
        %v1515 = vsel %vm1514, %v1507, %v1511
        %v1516 = vand.u32 2147483647, %v1485
        %vm1517 = vcmp.eq.f32.partialorder %v1516, 8.507059e+37
        %v1518 = vand.u32 %v1485, 2147483648
        %v1519 = vor.u32 1.1754944e-38, %v1518
        %v1520 = vsel %vm1517, %v1519, %v1515
        %v1521 = vmul.f32 %v1223, %v1520
        %v1522 = vrcp.pop %v1486
        %v1523 = vmul.f32 %v1486, %v1522
        %v1524 = vsub.f32 1.0, %v1523
        %v1525 = vmul.f32 %v1522, %v1524
        %v1526 = vadd.f32 %v1522, %v1525
        %vm1527 = vweird.f32 %v1486
        %vm1528 = vweird.f32 %v1522
        %vm1529 = vmor %vm1527, %vm1528
        %v1530 = vsel %vm1529, %v1522, %v1526
        %v1531 = vand.u32 2147483647, %v1486
        %vm1532 = vcmp.eq.f32.partialorder %v1531, 8.507059e+37
        %v1533 = vand.u32 %v1486, 2147483648
        %v1534 = vor.u32 1.1754944e-38, %v1533
        %v1535 = vsel %vm1532, %v1534, %v1530
        %v1536 = vmul.f32 %v1225, %v1535
        %v1537 = vrcp.pop %v1487
        %v1538 = vmul.f32 %v1487, %v1537
        %v1539 = vsub.f32 1.0, %v1538
        %v1540 = vmul.f32 %v1537, %v1539
        %v1541 = vadd.f32 %v1537, %v1540
        %vm1542 = vweird.f32 %v1487
        %vm1543 = vweird.f32 %v1537
        %vm1544 = vmor %vm1542, %vm1543
        %v1545 = vsel %vm1544, %v1537, %v1541
        %v1546 = vand.u32 2147483647, %v1487
        %vm1547 = vcmp.eq.f32.partialorder %v1546, 8.507059e+37
        %v1548 = vand.u32 %v1487, 2147483648
        %v1549 = vor.u32 1.1754944e-38, %v1548
        %v1550 = vsel %vm1547, %v1549, %v1545
        %v1551 = vmul.f32 %v1227, %v1550
        %v1552 = vrcp.pop %v1488
        %v1553 = vmul.f32 %v1488, %v1552
        %v1554 = vsub.f32 1.0, %v1553
        %v1555 = vmul.f32 %v1552, %v1554
        %v1556 = vadd.f32 %v1552, %v1555
        %vm1557 = vweird.f32 %v1488
        %vm1558 = vweird.f32 %v1552
        %vm1559 = vmor %vm1557, %vm1558
        %v1560 = vsel %vm1559, %v1552, %v1556
        %v1561 = vand.u32 2147483647, %v1488
        %vm1562 = vcmp.eq.f32.partialorder %v1561, 8.507059e+37
        %v1563 = vand.u32 %v1488, 2147483648
        %v1564 = vor.u32 1.1754944e-38, %v1563
        %v1565 = vsel %vm1562, %v1564, %v1560
        %v1566 = vmul.f32 %v1229, %v1565
        %v1567 = vrcp.pop %v1489
        %v1568 = vmul.f32 %v1489, %v1567
        %v1569 = vsub.f32 1.0, %v1568
        %v1570 = vmul.f32 %v1567, %v1569
        %v1571 = vadd.f32 %v1567, %v1570
        %vm1572 = vweird.f32 %v1489
        %vm1573 = vweird.f32 %v1567
        %vm1574 = vmor %vm1572, %vm1573
        %v1575 = vsel %vm1574, %v1567, %v1571
        %v1576 = vand.u32 2147483647, %v1489
        %vm1577 = vcmp.eq.f32.partialorder %v1576, 8.507059e+37
        %v1578 = vand.u32 %v1489, 2147483648
        %v1579 = vor.u32 1.1754944e-38, %v1578
        %v1580 = vsel %vm1577, %v1579, %v1575
        %v1581 = vmul.f32 %v1231, %v1580
        %v1582 = vrcp.pop %v1490
        %v1583 = vmul.f32 %v1490, %v1582
        %v1584 = vsub.f32 1.0, %v1583
        %v1585 = vmul.f32 %v1582, %v1584
        %v1586 = vadd.f32 %v1582, %v1585
        %vm1587 = vweird.f32 %v1490
        %vm1588 = vweird.f32 %v1582
        %vm1589 = vmor %vm1587, %vm1588
        %v1590 = vsel %vm1589, %v1582, %v1586
        %v1591 = vand.u32 2147483647, %v1490
        %vm1592 = vcmp.eq.f32.partialorder %v1591, 8.507059e+37
        %v1593 = vand.u32 %v1490, 2147483648
        %v1594 = vor.u32 1.1754944e-38, %v1593
        %v1595 = vsel %vm1592, %v1594, %v1590
        %v1596 = vmul.f32 %v1233, %v1595
        %v1597 = vrcp.pop %v1491
        %v1598 = vmul.f32 %v1491, %v1597
        %v1599 = vsub.f32 1.0, %v1598
        %v1600 = vmul.f32 %v1597, %v1599
        %v1601 = vadd.f32 %v1597, %v1600
        %vm1602 = vweird.f32 %v1491
        %vm1603 = vweird.f32 %v1597
        %vm1604 = vmor %vm1602, %vm1603
        %v1605 = vsel %vm1604, %v1597, %v1601
        %v1606 = vand.u32 2147483647, %v1491
        %vm1607 = vcmp.eq.f32.partialorder %v1606, 8.507059e+37
        %v1608 = vand.u32 %v1491, 2147483648
        %v1609 = vor.u32 1.1754944e-38, %v1608
        %v1610 = vsel %vm1607, %v1609, %v1605
        %v1611 = vmul.f32 %v1235, %v1610
        %v1612 = vsub.f32 %v1106, %v1506
        %v1613 = vsub.f32 %v1121, %v1521
        %v1614 = vsub.f32 %v1136, %v1536
        %v1615 = vsub.f32 %v1151, %v1551
        %v1616 = vsub.f32 %v1166, %v1566
        %v1617 = vsub.f32 %v1181, %v1581
        %v1618 = vsub.f32 %v1196, %v1596
        %v1619 = vsub.f32 %v1211, %v1611
        %v1620 = vstv %s811
        %v1621 = vmul.f32 %v1612, %v1620
        %v1622 = vmul.f32 %v1613, %v1620
        %v1623 = vmul.f32 %v1614, %v1620
        %v1624 = vmul.f32 %v1615, %v1620
        %v1625 = vmul.f32 %v1616, %v1620
        %v1626 = vmul.f32 %v1617, %v1620
        %v1627 = vmul.f32 %v1618, %v1620
        %v1628 = vmul.f32 %v1619, %v1620
        %v1629 = vld [vmem:[%s10] sm:$0xff]
        %v1630 = vld [vmem:[%s10 + $0x8] sm:$0xff]
        %v1631 = vld [vmem:[%s10 + $0x10] sm:$0xff]
        %v1632 = vld [vmem:[%s10 + $0x18] sm:$0xff]
        %v1633 = vld [vmem:[%s10 + $0x20] sm:$0xff]
        %v1634 = vld [vmem:[%s10 + $0x28] sm:$0xff]
        %v1635 = vld [vmem:[%s10 + $0x30] sm:$0xff]
        %v1636 = vld [vmem:[%s10 + $0x38] sm:$0xff]
        %vm1637 = vcmp.gt.f32.partialorder %v1629, 0.5
        %vm1638 = vcmp.gt.f32.partialorder %v1630, 0.5
        %vm1639 = vcmp.gt.f32.partialorder %v1631, 0.5
        %vm1640 = vcmp.gt.f32.partialorder %v1632, 0.5
        %vm1641 = vcmp.gt.f32.partialorder %v1633, 0.5
        %vm1642 = vcmp.gt.f32.partialorder %v1634, 0.5
        %vm1643 = vcmp.gt.f32.partialorder %v1635, 0.5
        %vm1644 = vcmp.gt.f32.partialorder %v1636, 0.5
        %v1645 = vsel %vm1637, %v1621, -inf
        %v1646 = vsel %vm1638, %v1622, -inf
        %v1647 = vsel %vm1639, %v1623, -inf
        %v1648 = vsel %vm1640, %v1624, -inf
        %v1649 = vsel %vm1641, %v1625, -inf
        %v1650 = vsel %vm1642, %v1626, -inf
        %v1651 = vsel %vm1643, %v1627, -inf
        %v1652 = vsel %vm1644, %v1628, -inf
        %vm1653 = vcmask 64512
        %v1654 = vsel %vm1653, %v1645, -inf
        %v1655 = vsel %vm1653, %v1646, -inf
        %v1656 = vsel %vm1653, %v1647, -inf
        %v1657 = vsel %vm1653, %v1648, -inf
        %v1658 = vsel %vm1653, %v1649, -inf
        %v1659 = vmax.f32 %v1654, %v1658
        %v1660 = vsel %vm1653, %v1650, -inf
        %v1661 = vmax.f32 %v1655, %v1660
        %v1662 = vsel %vm1653, %v1651, -inf
        %v1663 = vmax.f32 %v1656, %v1662
        %v1664 = vsel %vm1653, %v1652, -inf
        %v1665 = vmax.f32 %v1657, %v1664
        %v1666 = vmax.f32 %v1659, %v1661
        %v1667 = vmax.f32 %v1663, %v1665
        %v1668 = vmax.f32 %v1666, %v1667
        %v1669 = vrot.slane %v1668, 4
        %v1670 = vmax.f32 %v1668, %v1669
        %v1671 = vrot.slane %v1670, 2
        %v1672 = vmax.f32 %v1670, %v1671
        %v1673 = vrot.slane %v1672, 1
        %v1674 = vmax.f32 %v1672, %v1673
        %v1675 = vmul.f32 %v1629, %v1674
        %v1676 = vmul.f32 %v1630, %v1674
        %v1677 = vmul.f32 %v1631, %v1674
        %v1678 = vmul.f32 %v1632, %v1674
        %v1679 = vmul.f32 %v1633, %v1674
        %v1680 = vmul.f32 %v1634, %v1674
        %v1681 = vmul.f32 %v1635, %v1674
        %v1682 = vmul.f32 %v1636, %v1674
        %v1683 = vsel %vm1653, %v1675, 0.0
        %1684 = vadd.xlane.f32.xlu0 %v1683
        %v1685 = vpop.xlane.xlu0 %1684
        %v1686 = vsel %vm1653, %v1676, 0.0
        %1687 = vadd.xlane.f32.xlu0 %v1686
        %v1688 = vpop.xlane.xlu0 %1687
        %v1689 = vsel %vm1653, %v1677, 0.0
        %1690 = vadd.xlane.f32.xlu0 %v1689
        %v1691 = vpop.xlane.xlu0 %1690
        %v1692 = vsel %vm1653, %v1678, 0.0
        %1693 = vadd.xlane.f32.xlu0 %v1692
        %v1694 = vpop.xlane.xlu0 %1693
        %v1695 = vsel %vm1653, %v1679, 0.0
        %1696 = vadd.xlane.f32.xlu0 %v1695
        %v1697 = vpop.xlane.xlu0 %1696
        %v1698 = vsel %vm1653, %v1680, 0.0
        %1699 = vadd.xlane.f32.xlu0 %v1698
        %v1700 = vpop.xlane.xlu0 %1699
        %v1701 = vsel %vm1653, %v1681, 0.0
        %1702 = vadd.xlane.f32.xlu0 %v1701
        %v1703 = vpop.xlane.xlu0 %1702
        %v1704 = vsel %vm1653, %v1682, 0.0
        %1705 = vadd.xlane.f32.xlu0 %v1704
        %v1706 = vpop.xlane.xlu0 %1705
        %v1707 = vsub.f32 %v1621, %v1685
        %v1708 = vsub.f32 %v1622, %v1688
        %v1709 = vsub.f32 %v1623, %v1691
        %v1710 = vsub.f32 %v1624, %v1694
        %v1711 = vsub.f32 %v1625, %v1697
        %v1712 = vsub.f32 %v1626, %v1700
        %v1713 = vsub.f32 %v1627, %v1703
        %v1714 = vsub.f32 %v1628, %v1706
        %v1715 = vmul.f32 %v1707, 1.442695
        %v1716 = vpow.pop %v1715
        %v1717 = vmul.f32 %v1708, 1.442695
        %v1718 = vpow.pop %v1717
        %v1719 = vmul.f32 %v1709, 1.442695
        %v1720 = vpow.pop %v1719
        %v1721 = vmul.f32 %v1710, 1.442695
        %v1722 = vpow.pop %v1721
        %v1723 = vmul.f32 %v1711, 1.442695
        %v1724 = vpow.pop %v1723
        %v1725 = vmul.f32 %v1712, 1.442695
        %v1726 = vpow.pop %v1725
        %v1727 = vmul.f32 %v1713, 1.442695
        %v1728 = vpow.pop %v1727
        %v1729 = vmul.f32 %v1714, 1.442695
        %v1730 = vpow.pop %v1729
        %v1731 = vmul.f32 %v1629, %v1716
        %v1732 = vmul.f32 %v1630, %v1718
        %v1733 = vmul.f32 %v1631, %v1720
        %v1734 = vmul.f32 %v1632, %v1722
        %v1735 = vmul.f32 %v1633, %v1724
        %v1736 = vmul.f32 %v1634, %v1726
        %v1737 = vmul.f32 %v1635, %v1728
        %v1738 = vmul.f32 %v1636, %v1730
        %v1739 = vsel %vm1653, %v1731, 0.0
        %v1740 = vsel %vm1653, %v1732, 0.0
        %v1741 = vadd.f32 %v1739, %v1740
        %v1742 = vsel %vm1653, %v1733, 0.0
        %v1743 = vadd.f32 %v1741, %v1742
        %v1744 = vsel %vm1653, %v1734, 0.0
        %v1745 = vadd.f32 %v1743, %v1744
        %v1746 = vsel %vm1653, %v1735, 0.0
        %v1747 = vadd.f32 %v1745, %v1746
        %v1748 = vsel %vm1653, %v1736, 0.0
        %v1749 = vadd.f32 %v1747, %v1748
        %v1750 = vsel %vm1653, %v1737, 0.0
        %v1751 = vadd.f32 %v1749, %v1750
        %v1752 = vsel %vm1653, %v1738, 0.0
        %v1753 = vadd.f32 %v1751, %v1752
        %v1754 = vrot.slane %v1753, 4
        %v1755 = vadd.f32 %v1753, %v1754
        %v1756 = vrot.slane %v1755, 2
        %v1757 = vadd.f32 %v1755, %v1756
        %v1758 = vrot.slane %v1757, 1
        %v1759 = vadd.f32 %v1757, %v1758
        %v1760 = vmul.f32 %v1629, %v1759
        %v1761 = vmul.f32 %v1630, %v1759
        %v1762 = vmul.f32 %v1631, %v1759
        %v1763 = vmul.f32 %v1632, %v1759
        %v1764 = vmul.f32 %v1633, %v1759
        %v1765 = vmul.f32 %v1634, %v1759
        %v1766 = vmul.f32 %v1635, %v1759
        %v1767 = vmul.f32 %v1636, %v1759
        %v1768 = vsel %vm1653, %v1760, 0.0
        %1769 = vadd.xlane.f32.xlu0 %v1768
        %v1770 = vpop.xlane.xlu0 %1769
        %v1771 = vsel %vm1653, %v1761, 0.0
        %1772 = vadd.xlane.f32.xlu0 %v1771
        %v1773 = vpop.xlane.xlu0 %1772
        %v1774 = vsel %vm1653, %v1762, 0.0
        %1775 = vadd.xlane.f32.xlu0 %v1774
        %v1776 = vpop.xlane.xlu0 %1775
        %v1777 = vsel %vm1653, %v1763, 0.0
        %1778 = vadd.xlane.f32.xlu0 %v1777
        %v1779 = vpop.xlane.xlu0 %1778
        %v1780 = vsel %vm1653, %v1764, 0.0
        %1781 = vadd.xlane.f32.xlu0 %v1780
        %v1782 = vpop.xlane.xlu0 %1781
        %v1783 = vsel %vm1653, %v1765, 0.0
        %1784 = vadd.xlane.f32.xlu0 %v1783
        %v1785 = vpop.xlane.xlu0 %1784
        %v1786 = vsel %vm1653, %v1766, 0.0
        %1787 = vadd.xlane.f32.xlu0 %v1786
        %v1788 = vpop.xlane.xlu0 %1787
        %v1789 = vsel %vm1653, %v1767, 0.0
        %1790 = vadd.xlane.f32.xlu0 %v1789
        %v1791 = vpop.xlane.xlu0 %1790
        %v1792 = vrcp.pop %v1770
        %v1793 = vrcp.pop %v1773
        %v1794 = vrcp.pop %v1776
        %v1795 = vrcp.pop %v1779
        %v1796 = vrcp.pop %v1782
        %v1797 = vrcp.pop %v1785
        %v1798 = vrcp.pop %v1788
        %v1799 = vrcp.pop %v1791
        %v1800 = vmul.f32 %v1716, %v1792
        %v1801 = vmul.f32 %v1718, %v1793
        %v1802 = vmul.f32 %v1720, %v1794
        %v1803 = vmul.f32 %v1722, %v1795
        %v1804 = vmul.f32 %v1724, %v1796
        %v1805 = vmul.f32 %v1726, %v1797
        %v1806 = vmul.f32 %v1728, %v1798
        %v1807 = vmul.f32 %v1730, %v1799
        %v1808 = vmul.f32 %v1800, %v528
        %v1809 = vmul.f32 %v1801, %v529
        %v1810 = vmul.f32 %v1802, %v530
        %v1811 = vmul.f32 %v1803, %v531
        %v1812 = vmul.f32 %v1804, %v532
        %v1813 = vmul.f32 %v1805, %v533
        %v1814 = vmul.f32 %v1806, %v534
        %v1815 = vmul.f32 %v1807, %v535
        %v1816 = vld [vmem:[%s9] sm:$0xff]
        %v1818 = vsel %vm676, %v1816, 0
        %1820 = vmatpush.msra.mxu0 0.0
        %1821 = vmatpush.msra.mxu0 0.0
        %1822 = vmatpush.msra.mxu0 0.0
        %1823 = vmatpush.msra.mxu0 0.0
        %1824 = vmatpush.msra.mxu0 0.0
        %1825 = vmatpush.msra.mxu0 0.0
        %1826 = vmatpush.msra.mxu0 0.0
        %1827 = vmatpush.msra.mxu0 0.0
        %1828 = vmatpush.msra.mxu0 %v1815
        %1829 = vmatpush.msra.mxu0 %v1814
        %1830 = vmatpush.msra.mxu0 %v1813
        %1831 = vmatpush.msra.mxu0 %v1812
        %1832 = vmatpush.msra.mxu0 %v1811
        %1833 = vmatpush.msra.mxu0 %v1810
        %1834 = vmatpush.msra.mxu0 %v1809
        %1835 = vmatpush.msra.mxu0 %v1808
        %1836 = vmatmul.f32.gmra.mxu0 %v1818
        %v1837 = vpop.f32.mrf.mxu0
        %v1838 = vadd.f32 0.0, %v1837
        %1839 = vdwg.mxu0
        %1840 = vst [vmem:[%s514] sm:$0xff] %v1838
        %s1841 = sand.u32 %s307, 1
        %s1842 = scalar_lea.sflag [#allocation5], %s1841
        %s1843 = sand.u32 %s307, 1
        %s1844 = smul.addr %s1843, 8
        %s1845 = scalar_lea.vmem [#allocation11], %s1844
        // Predicated region
        $region85: #{tpu_custom_call.1} parent=67 // pred_check
          %p1846 = pneg %p317
        $region86: #{tpu_custom_call.1} parent=67 // pred_check_branch
          %1848 = sbr.rel (%p1846) target = $region88
        $region87: #{tpu_custom_call.1} parent=67 // pred_region
          %1850 = vsyncadd %s1842, 0
          %s1851 = smul.addr %s32, 8
          %s1852 = scalar_lea.hbm %s12, %s1851
          %s1854 = sshll.u32 %s1845, 4
          %s1855 = int_to_ptr.vmem [resolvable:$true] %s1854
          %s1856 = sshll.u32 %s1852, 4
          %s1857 = int_to_ptr.hbm [resolvable:$true] %s1856
          %1859 = dma.vmem_to_hbm [thread:$0]  %s1855, 128, %s1857, %s1842
        $region88: #{tpu_custom_call.1} parent=67 // pred_fallthru
          _
      $region68: #{tpu_custom_call.1} parent=5 // pred_fallthru
        _
      %p1860 = scmp.le.s32.totalorder 2, %s27
      // Predicated region
      $region89: #{tpu_custom_call.1} parent=5 // pred_check
        %p1861 = pneg %p1860
      $region90: #{tpu_custom_call.1} parent=5 // pred_check_branch
        %1863 = sbr.rel (%p1861) target = $region92
      $region91: #{tpu_custom_call.1} parent=5 // pred_region
        %s1864 = ssub.s32 %s27, 2
        // Predicated region
        $region93: #{tpu_custom_call.1} parent=91 // pred_check
          %p1865 = pneg %p323
        $region94: #{tpu_custom_call.1} parent=91 // pred_check_branch
          %1867 = sbr.rel (%p1865) target = $region96
        $region95: #{tpu_custom_call.1} parent=91 // pred_region
          %s1868 = sand.u32 %s308, 1
          %s1869 = scalar_lea.sflag [#allocation5], %s1868
          %s1870 = sand.u32 %s308, 1
          %s1871 = smul.addr %s1870, 8
          %s1872 = scalar_lea.vmem [#allocation11], %s1871
          %1874 = dma.done %s1869, 128
        $region96: #{tpu_custom_call.1} parent=91 // pred_fallthru
          _
      $region92: #{tpu_custom_call.1} parent=5 // pred_fallthru
        _
    $region6: #{tpu_custom_call.1} parent=1 // loop_footer
      %s31 = sadd.s32 1, %s27
    $region7: #{tpu_custom_call.1} parent=1 // loop_footer_branch
      %26 = sbr.rel target = $region3
    $region8: #{tpu_custom_call.1} parent=1 // loop_exit
      _
    %1875 = vsyncpa [#allocation4], 1
    %s1876 = scalar_lea.sflag [#allocation4], 1
    %1877 = vsyncpa %s1876, 1
    %1878 = vsyncpa [#allocation7], 1
    %1879 = vsyncpa [#allocation10], 1
    %1880 = vsyncpa [#allocation5], 1
    %s1881 = scalar_lea.sflag [#allocation5], 1
    %1882 = vsyncpa %s1881, 1

// kernel: tpu_custom_call.1
$region0: #{tpu_custom_call.1}
  #allocation0 [shape = 'u32[]', space=smem, size = 0x4, offset = 0x4, fixed_abs, tag = 'smem constant byte address 0x4 - core index']
  #allocation1 [shape = 'u32[72,128]{1,0:T(1,128)}', space=vmem, size = 0x9000, scoped, tag = 'internal scratch']
  #allocation2 [shape = 'f32[1,1]{1,0:T(1,128)S(1)}', space=vmem, size = 0x200, scoped, tag = 'scoped memory for tpu_custom_call.1']
  %s0 = inlined_call_operand.vmem [shape: f32[128,128], index: 0, kind: input, shape index: {}]
  %s1 = inlined_call_operand.hbm [shape: f32[128,128], index: 1, kind: input, shape index: {}]
  %s2 = inlined_call_operand.vmem [shape: f32[128,64], index: 2, kind: input, shape index: {}]
  %s3 = inlined_call_operand.hbm [shape: f32[128,256], index: 3, kind: input, shape index: {}]
  %s4 = inlined_call_operand.vmem [shape: f32[1,256], index: 4, kind: input, shape index: {}]
  %s5 = inlined_call_operand.vmem [shape: f32[64,128], index: 5, kind: input, shape index: {}]
  %s6 = inlined_call_operand.vmem [shape: f32[1,128], index: 6, kind: input, shape index: {}]
  %s7 = inlined_call_operand.hbm [shape: f32[128,128], index: 7, kind: input, shape index: {}]
  %s8 = inlined_call_operand.hbm [shape: f32[1,128], index: 8, kind: input, shape index: {}]
  %s9 = inlined_call_operand.vmem [shape: f32[8,64], index: 9, kind: input, shape index: {}]
  %s10 = inlined_call_operand.vmem [shape: f32[64,8], index: 10, kind: input, shape index: {}]
  %s11 = inlined_call_operand.<no memory space> [shape: f32[1,1], index: 11, kind: input, shape index: {}]
  %s12 = inlined_call_operand.hbm [shape: f32[16,128], index: 12, kind: output, shape index: {}]
  %s13 = sld [smem:[#allocation0]]
  $region97: #{tpu_custom_call.1} parent=0
    _
  %s15 = ssub.s32 1, %s13
  %s16 = scalar_select 0, %s15, %s13
  %v17 = vstv %s11
  %18 = vst [vmem:[#allocation2] sm:$0x1] %v17
  $region1: #{tpu_custom_call.1} parent=0
    #allocation3 [shape = 'u8[65536]{0}', space=vmem, size = 0x10000, scoped, tag = 'input window, operand 1']
    #allocation4 [shape = 's32[2]{0}', space=sflag, size = 0x8, scoped, tag = 'scoped memory for tpu_custom_call.1']
    #allocation5 [shape = 's32[2]{0}', space=sflag, size = 0x8, scoped, tag = 'scoped memory for tpu_custom_call.1']
    #allocation6 [shape = 'u8[131072]{0}', space=vmem, size = 0x20000, scoped, tag = 'input window, operand 3, single buffered']
    #allocation7 [shape = 's32[1]{0}', space=sflag, size = 0x4, scoped, tag = 'scoped memory for tpu_custom_call.1']
    #allocation8 [shape = 'u8[65536]{0}', space=vmem, size = 0x10000, scoped, tag = 'input window, operand 7, single buffered']
    #allocation9 [shape = 'u8[512]{0}', space=vmem, size = 0x400, scoped, tag = 'input window, operand 8, single buffered']
    #allocation10 [shape = 's32[1]{0}', space=sflag, size = 0x4, scoped, tag = 'scoped memory for tpu_custom_call.1']
    #allocation11 [shape = 'u8[8192]{0}', space=vmem, size = 0x2000, scoped, tag = 'output window, operand 0']
    %19 = vsyncpa [#allocation4], 0
    %s20 = scalar_lea.sflag [#allocation4], 1
    %21 = vsyncpa %s20, 0
    %22 = vsyncpa [#allocation7], 0
    %23 = vsyncpa [#allocation10], 0
    %24 = vsyncpa [#allocation5], 0
    %s25 = scalar_lea.sflag [#allocation5], 1
    %26 = vsyncpa %s25, 0
    loop: start=0, step=1, limit=4
    $region2: #{tpu_custom_call.1} parent=1 // loop_pre_header
      _
    $region3: #{tpu_custom_call.1} parent=1 // loop_header
      %s28 = sphi 0, %s32
      %p29 = scmp.ge.s32.totalorder %s28, 4
      %s38 = sphi 0, %s40
      %s41 = sphi 0, %s38
      %s42 = sphi 0, %s41
      %s58 = sphi 0, %s42
      %s64 = sphi 0, %s66
      %s67 = sphi 0, %s64
      %s68 = sphi 0, %s67
      %s84 = sphi 0, %s68
      %s90 = sphi 0, %s92
      %s93 = sphi 0, %s90
      %s94 = sphi 0, %s93
      %s110 = sphi 0, %s94
      %s114 = sphi 0, %s114
      %s116 = sphi 0, %s114
      %s117 = sphi 0, %s116
      %s131 = sphi 0, %s117
      %s135 = sphi 0, %s135
      %s137 = sphi 0, %s135
      %s138 = sphi 0, %s137
      %s152 = sphi 0, %s138
      %s156 = sphi 0, %s156
      %s158 = sphi 0, %s156
      %s159 = sphi 0, %s158
      %s173 = sphi 0, %s159
      %s177 = sphi 0, %s177
      %s179 = sphi 0, %s177
      %s180 = sphi 0, %s179
      %s194 = sphi 0, %s180
      %s198 = sphi 0, %s198
      %s200 = sphi 0, %s198
      %s201 = sphi 0, %s200
      %s215 = sphi 0, %s201
      %s219 = sphi 0, %s219
      %s221 = sphi 0, %s219
      %s222 = sphi 0, %s221
      %s236 = sphi 0, %s222
      %s240 = sphi 0, %s240
      %s242 = sphi 0, %s240
      %s243 = sphi 0, %s242
      %s257 = sphi 0, %s243
      %s261 = sphi 0, %s261
      %s263 = sphi 0, %s261
      %s264 = sphi 0, %s263
      %s278 = sphi 0, %s264
      %s282 = sphi 0, %s282
      %s284 = sphi 0, %s282
      %s285 = sphi 0, %s284
      %s299 = sphi 0, %s285
      %s305 = sphi 0, %s307
      %s308 = sphi 0, %s305
      %s309 = sphi 0, %s308
      %s325 = sphi 0, %s309
    $region4: #{tpu_custom_call.1} parent=1 // loop_header_branch
      %31 = sbr.rel (%p29) target = $region8
    $region5: #{tpu_custom_call.1} parent=1 // loop_body
      %s33 = ssub.s32 %s28, 1
      %s34 = ssub.s32 %s28, 2
      %s35 = sadd.s32 %s28, 1
      %s36 = ssub.s32 %s28, %s35
      %p37 = scmp.eq.s32.totalorder %s36, 0
      %s39 = sadd.s32 %s38, 1
      %s40 = scalar_select %p37, %s38, %s39
      %p43 = pneg %p37
      %p44 = scmp.eq.s32.totalorder %s28, 1
      %p45 = por %p43, %p44
      %p46 = scmp.ne.s32.totalorder %s38, %s41
      %p47 = scmp.eq.s32.totalorder %s28, 0
      %p48 = por %p46, %p47
      %p49 = scmp.ne.s32.totalorder %s38, %s41
      %p50 = scmp.eq.s32.totalorder %s33, 1
      %p51 = por %p49, %p50
      %p52 = scmp.ne.s32.totalorder %s41, %s42
      %p53 = scmp.eq.s32.totalorder %s33, 0
      %p54 = por %p52, %p53
      %p55 = scmp.ne.s32.totalorder %s41, %s42
      %p56 = scmp.eq.s32.totalorder %s34, 1
      %p57 = por %p55, %p56
      %p59 = scmp.ne.s32.totalorder %s42, %s58
      %p60 = scmp.eq.s32.totalorder %s34, 0
      %p61 = por %p59, %p60
      %s62 = ssub.s32 %s28, %s35
      %p63 = scmp.eq.s32.totalorder %s62, 0
      %s65 = sadd.s32 %s64, 1
      %s66 = scalar_select %p63, %s64, %s65
      %p69 = pneg %p63
      %p70 = scmp.eq.s32.totalorder %s28, 1
      %p71 = por %p69, %p70
      %p72 = scmp.ne.s32.totalorder %s64, %s67
      %p73 = scmp.eq.s32.totalorder %s28, 0
      %p74 = por %p72, %p73
      %p75 = scmp.ne.s32.totalorder %s64, %s67
      %p76 = scmp.eq.s32.totalorder %s33, 1
      %p77 = por %p75, %p76
      %p78 = scmp.ne.s32.totalorder %s67, %s68
      %p79 = scmp.eq.s32.totalorder %s33, 0
      %p80 = por %p78, %p79
      %p81 = scmp.ne.s32.totalorder %s67, %s68
      %p82 = scmp.eq.s32.totalorder %s34, 1
      %p83 = por %p81, %p82
      %p85 = scmp.ne.s32.totalorder %s68, %s84
      %p86 = scmp.eq.s32.totalorder %s34, 0
      %p87 = por %p85, %p86
      %s88 = ssub.s32 %s28, %s35
      %p89 = scmp.eq.s32.totalorder %s88, 0
      %s91 = sadd.s32 %s90, 1
      %s92 = scalar_select %p89, %s90, %s91
      %p95 = pneg %p89
      %p96 = scmp.eq.s32.totalorder %s28, 1
      %p97 = por %p95, %p96
      %p98 = scmp.ne.s32.totalorder %s90, %s93
      %p99 = scmp.eq.s32.totalorder %s28, 0
      %p100 = por %p98, %p99
      %p101 = scmp.ne.s32.totalorder %s90, %s93
      %p102 = scmp.eq.s32.totalorder %s33, 1
      %p103 = por %p101, %p102
      %p104 = scmp.ne.s32.totalorder %s93, %s94
      %p105 = scmp.eq.s32.totalorder %s33, 0
      %p106 = por %p104, %p105
      %p107 = scmp.ne.s32.totalorder %s93, %s94
      %p108 = scmp.eq.s32.totalorder %s34, 1
      %p109 = por %p107, %p108
      %p111 = scmp.ne.s32.totalorder %s94, %s110
      %p112 = scmp.eq.s32.totalorder %s34, 0
      %p113 = por %p111, %p112
      %s115 = sadd.s32 %s114, 1
      %p118 = scmp.eq.s32.totalorder %s28, 1
      %p119 = scmp.ne.s32.totalorder %s114, %s116
      %p120 = scmp.eq.s32.totalorder %s28, 0
      %p121 = por %p119, %p120
      %p122 = scmp.ne.s32.totalorder %s114, %s116
      %p123 = scmp.eq.s32.totalorder %s33, 1
      %p124 = por %p122, %p123
      %p125 = scmp.ne.s32.totalorder %s116, %s117
      %p126 = scmp.eq.s32.totalorder %s33, 0
      %p127 = por %p125, %p126
      %p128 = scmp.ne.s32.totalorder %s116, %s117
      %p129 = scmp.eq.s32.totalorder %s34, 1
      %p130 = por %p128, %p129
      %p132 = scmp.ne.s32.totalorder %s117, %s131
      %p133 = scmp.eq.s32.totalorder %s34, 0
      %p134 = por %p132, %p133
      %s136 = sadd.s32 %s135, 1
      %p139 = scmp.eq.s32.totalorder %s28, 1
      %p140 = scmp.ne.s32.totalorder %s135, %s137
      %p141 = scmp.eq.s32.totalorder %s28, 0
      %p142 = por %p140, %p141
      %p143 = scmp.ne.s32.totalorder %s135, %s137
      %p144 = scmp.eq.s32.totalorder %s33, 1
      %p145 = por %p143, %p144
      %p146 = scmp.ne.s32.totalorder %s137, %s138
      %p147 = scmp.eq.s32.totalorder %s33, 0
      %p148 = por %p146, %p147
      %p149 = scmp.ne.s32.totalorder %s137, %s138
      %p150 = scmp.eq.s32.totalorder %s34, 1
      %p151 = por %p149, %p150
      %p153 = scmp.ne.s32.totalorder %s138, %s152
      %p154 = scmp.eq.s32.totalorder %s34, 0
      %p155 = por %p153, %p154
      %s157 = sadd.s32 %s156, 1
      %p160 = scmp.eq.s32.totalorder %s28, 1
      %p161 = scmp.ne.s32.totalorder %s156, %s158
      %p162 = scmp.eq.s32.totalorder %s28, 0
      %p163 = por %p161, %p162
      %p164 = scmp.ne.s32.totalorder %s156, %s158
      %p165 = scmp.eq.s32.totalorder %s33, 1
      %p166 = por %p164, %p165
      %p167 = scmp.ne.s32.totalorder %s158, %s159
      %p168 = scmp.eq.s32.totalorder %s33, 0
      %p169 = por %p167, %p168
      %p170 = scmp.ne.s32.totalorder %s158, %s159
      %p171 = scmp.eq.s32.totalorder %s34, 1
      %p172 = por %p170, %p171
      %p174 = scmp.ne.s32.totalorder %s159, %s173
      %p175 = scmp.eq.s32.totalorder %s34, 0
      %p176 = por %p174, %p175
      %s178 = sadd.s32 %s177, 1
      %p181 = scmp.eq.s32.totalorder %s28, 1
      %p182 = scmp.ne.s32.totalorder %s177, %s179
      %p183 = scmp.eq.s32.totalorder %s28, 0
      %p184 = por %p182, %p183
      %p185 = scmp.ne.s32.totalorder %s177, %s179
      %p186 = scmp.eq.s32.totalorder %s33, 1
      %p187 = por %p185, %p186
      %p188 = scmp.ne.s32.totalorder %s179, %s180
      %p189 = scmp.eq.s32.totalorder %s33, 0
      %p190 = por %p188, %p189
      %p191 = scmp.ne.s32.totalorder %s179, %s180
      %p192 = scmp.eq.s32.totalorder %s34, 1
      %p193 = por %p191, %p192
      %p195 = scmp.ne.s32.totalorder %s180, %s194
      %p196 = scmp.eq.s32.totalorder %s34, 0
      %p197 = por %p195, %p196
      %s199 = sadd.s32 %s198, 1
      %p202 = scmp.eq.s32.totalorder %s28, 1
      %p203 = scmp.ne.s32.totalorder %s198, %s200
      %p204 = scmp.eq.s32.totalorder %s28, 0
      %p205 = por %p203, %p204
      %p206 = scmp.ne.s32.totalorder %s198, %s200
      %p207 = scmp.eq.s32.totalorder %s33, 1
      %p208 = por %p206, %p207
      %p209 = scmp.ne.s32.totalorder %s200, %s201
      %p210 = scmp.eq.s32.totalorder %s33, 0
      %p211 = por %p209, %p210
      %p212 = scmp.ne.s32.totalorder %s200, %s201
      %p213 = scmp.eq.s32.totalorder %s34, 1
      %p214 = por %p212, %p213
      %p216 = scmp.ne.s32.totalorder %s201, %s215
      %p217 = scmp.eq.s32.totalorder %s34, 0
      %p218 = por %p216, %p217
      %s220 = sadd.s32 %s219, 1
      %p223 = scmp.eq.s32.totalorder %s28, 1
      %p224 = scmp.ne.s32.totalorder %s219, %s221
      %p225 = scmp.eq.s32.totalorder %s28, 0
      %p226 = por %p224, %p225
      %p227 = scmp.ne.s32.totalorder %s219, %s221
      %p228 = scmp.eq.s32.totalorder %s33, 1
      %p229 = por %p227, %p228
      %p230 = scmp.ne.s32.totalorder %s221, %s222
      %p231 = scmp.eq.s32.totalorder %s33, 0
      %p232 = por %p230, %p231
      %p233 = scmp.ne.s32.totalorder %s221, %s222
      %p234 = scmp.eq.s32.totalorder %s34, 1
      %p235 = por %p233, %p234
      %p237 = scmp.ne.s32.totalorder %s222, %s236
      %p238 = scmp.eq.s32.totalorder %s34, 0
      %p239 = por %p237, %p238
      %s241 = sadd.s32 %s240, 1
      %p244 = scmp.eq.s32.totalorder %s28, 1
      %p245 = scmp.ne.s32.totalorder %s240, %s242
      %p246 = scmp.eq.s32.totalorder %s28, 0
      %p247 = por %p245, %p246
      %p248 = scmp.ne.s32.totalorder %s240, %s242
      %p249 = scmp.eq.s32.totalorder %s33, 1
      %p250 = por %p248, %p249
      %p251 = scmp.ne.s32.totalorder %s242, %s243
      %p252 = scmp.eq.s32.totalorder %s33, 0
      %p253 = por %p251, %p252
      %p254 = scmp.ne.s32.totalorder %s242, %s243
      %p255 = scmp.eq.s32.totalorder %s34, 1
      %p256 = por %p254, %p255
      %p258 = scmp.ne.s32.totalorder %s243, %s257
      %p259 = scmp.eq.s32.totalorder %s34, 0
      %p260 = por %p258, %p259
      %s262 = sadd.s32 %s261, 1
      %p265 = scmp.eq.s32.totalorder %s28, 1
      %p266 = scmp.ne.s32.totalorder %s261, %s263
      %p267 = scmp.eq.s32.totalorder %s28, 0
      %p268 = por %p266, %p267
      %p269 = scmp.ne.s32.totalorder %s261, %s263
      %p270 = scmp.eq.s32.totalorder %s33, 1
      %p271 = por %p269, %p270
      %p272 = scmp.ne.s32.totalorder %s263, %s264
      %p273 = scmp.eq.s32.totalorder %s33, 0
      %p274 = por %p272, %p273
      %p275 = scmp.ne.s32.totalorder %s263, %s264
      %p276 = scmp.eq.s32.totalorder %s34, 1
      %p277 = por %p275, %p276
      %p279 = scmp.ne.s32.totalorder %s264, %s278
      %p280 = scmp.eq.s32.totalorder %s34, 0
      %p281 = por %p279, %p280
      %s283 = sadd.s32 %s282, 1
      %p286 = scmp.eq.s32.totalorder %s28, 1
      %p287 = scmp.ne.s32.totalorder %s282, %s284
      %p288 = scmp.eq.s32.totalorder %s28, 0
      %p289 = por %p287, %p288
      %p290 = scmp.ne.s32.totalorder %s282, %s284
      %p291 = scmp.eq.s32.totalorder %s33, 1
      %p292 = por %p290, %p291
      %p293 = scmp.ne.s32.totalorder %s284, %s285
      %p294 = scmp.eq.s32.totalorder %s33, 0
      %p295 = por %p293, %p294
      %p296 = scmp.ne.s32.totalorder %s284, %s285
      %p297 = scmp.eq.s32.totalorder %s34, 1
      %p298 = por %p296, %p297
      %p300 = scmp.ne.s32.totalorder %s285, %s299
      %p301 = scmp.eq.s32.totalorder %s34, 0
      %p302 = por %p300, %p301
      %s303 = ssub.s32 %s28, %s35
      %p304 = scmp.eq.s32.totalorder %s303, 0
      %s306 = sadd.s32 %s305, 1
      %s307 = scalar_select %p304, %s305, %s306
      %p310 = pneg %p304
      %p311 = scmp.eq.s32.totalorder %s28, 1
      %p312 = por %p310, %p311
      %p313 = scmp.ne.s32.totalorder %s305, %s308
      %p314 = scmp.eq.s32.totalorder %s28, 0
      %p315 = por %p313, %p314
      %p316 = scmp.ne.s32.totalorder %s305, %s308
      %p317 = scmp.eq.s32.totalorder %s33, 1
      %p318 = por %p316, %p317
      %p319 = scmp.ne.s32.totalorder %s308, %s309
      %p320 = scmp.eq.s32.totalorder %s33, 0
      %p321 = por %p319, %p320
      %p322 = scmp.ne.s32.totalorder %s308, %s309
      %p323 = scmp.eq.s32.totalorder %s34, 1
      %p324 = por %p322, %p323
      %p326 = scmp.ne.s32.totalorder %s309, %s325
      %p327 = scmp.eq.s32.totalorder %s34, 0
      %p328 = por %p326, %p327
      %p329 = scmp.le.s32.totalorder 1, %s28
      %p330 = scmp.lt.s32.totalorder %s28, 3
      %p331 = pnand %p329, %p330
      %p332 = pneg %p331
      // Predicated region
      $region9: #{tpu_custom_call.1} parent=5 // pred_check
        _
      $region10: #{tpu_custom_call.1} parent=5 // pred_check_branch
        %334 = sbr.rel (%p331) target = $region12
      $region11: #{tpu_custom_call.1} parent=5 // pred_region
        %s335 = ssub.s32 %s28, 1
        // Predicated region
        $region13: #{tpu_custom_call.1} parent=11 // pred_check
          %p336 = pneg %p127
        $region14: #{tpu_custom_call.1} parent=11 // pred_check_branch
          %338 = sbr.rel (%p336) target = $region16
        $region15: #{tpu_custom_call.1} parent=11 // pred_region
          %340 = vsyncadd [#allocation7], 0
          %s341 = sshll.u32 %s3, 4
          %s342 = int_to_ptr.hbm [resolvable:$true] %s341
          %s343 = sshll.u32 [#allocation6], 4
          %s344 = int_to_ptr.vmem [resolvable:$true] %s343
          %349 = dma.hbm_to_vmem [thread:$0]  %s342, 4096, %s344, [#allocation7], 256, 256, 16
        $region16: #{tpu_custom_call.1} parent=11 // pred_fallthru
          _
        // Predicated region
        $region17: #{tpu_custom_call.1} parent=11 // pred_check
          %p350 = pneg %p148
        $region18: #{tpu_custom_call.1} parent=11 // pred_check_branch
          %352 = sbr.rel (%p350) target = $region20
        $region19: #{tpu_custom_call.1} parent=11 // pred_region
          _
        $region20: #{tpu_custom_call.1} parent=11 // pred_fallthru
          _
        // Predicated region
        $region21: #{tpu_custom_call.1} parent=11 // pred_check
          %p353 = pneg %p169
        $region22: #{tpu_custom_call.1} parent=11 // pred_check_branch
          %355 = sbr.rel (%p353) target = $region24
        $region23: #{tpu_custom_call.1} parent=11 // pred_region
          _
        $region24: #{tpu_custom_call.1} parent=11 // pred_fallthru
          _
        // Predicated region
        $region25: #{tpu_custom_call.1} parent=11 // pred_check
          %p356 = pneg %p190
        $region26: #{tpu_custom_call.1} parent=11 // pred_check_branch
          %358 = sbr.rel (%p356) target = $region28
        $region27: #{tpu_custom_call.1} parent=11 // pred_region
          _
        $region28: #{tpu_custom_call.1} parent=11 // pred_fallthru
          _
        // Predicated region
        $region29: #{tpu_custom_call.1} parent=11 // pred_check
          %p359 = pneg %p211
        $region30: #{tpu_custom_call.1} parent=11 // pred_check_branch
          %361 = sbr.rel (%p359) target = $region32
        $region31: #{tpu_custom_call.1} parent=11 // pred_region
          %363 = vsyncadd [#allocation7], 0
          %s364 = sshll.u32 %s7, 4
          %s365 = int_to_ptr.hbm [resolvable:$true] %s364
          %s366 = sshll.u32 [#allocation8], 4
          %s367 = int_to_ptr.vmem [resolvable:$true] %s366
          %372 = dma.hbm_to_vmem [thread:$0]  %s365, 2048, %s367, [#allocation7], 128, 128, 8
        $region32: #{tpu_custom_call.1} parent=11 // pred_fallthru
          _
        // Predicated region
        $region33: #{tpu_custom_call.1} parent=11 // pred_check
          %p373 = pneg %p232
        $region34: #{tpu_custom_call.1} parent=11 // pred_check_branch
          %375 = sbr.rel (%p373) target = $region36
        $region35: #{tpu_custom_call.1} parent=11 // pred_region
          %377 = vsyncadd [#allocation10], 0
          %s379 = sshll.u32 %s8, 4
          %s380 = int_to_ptr.hbm [resolvable:$true] %s379
          %s381 = sshll.u32 [#allocation9], 4
          %s382 = int_to_ptr.vmem [resolvable:$true] %s381
          %384 = dma.hbm_to_vmem [thread:$0]  %s380, 16, %s382, [#allocation10]
        $region36: #{tpu_custom_call.1} parent=11 // pred_fallthru
          _
        // Predicated region
        $region37: #{tpu_custom_call.1} parent=11 // pred_check
          %p385 = pneg %p253
        $region38: #{tpu_custom_call.1} parent=11 // pred_check_branch
          %387 = sbr.rel (%p385) target = $region40
        $region39: #{tpu_custom_call.1} parent=11 // pred_region
          _
        $region40: #{tpu_custom_call.1} parent=11 // pred_fallthru
          _
        // Predicated region
        $region41: #{tpu_custom_call.1} parent=11 // pred_check
          %p388 = pneg %p274
        $region42: #{tpu_custom_call.1} parent=11 // pred_check_branch
          %390 = sbr.rel (%p388) target = $region44
        $region43: #{tpu_custom_call.1} parent=11 // pred_region
          _
        $region44: #{tpu_custom_call.1} parent=11 // pred_fallthru
          _
        // Predicated region
        $region45: #{tpu_custom_call.1} parent=11 // pred_check
          %p391 = pneg %p295
        $region46: #{tpu_custom_call.1} parent=11 // pred_check_branch
          %393 = sbr.rel (%p391) target = $region48
        $region47: #{tpu_custom_call.1} parent=11 // pred_region
          _
        $region48: #{tpu_custom_call.1} parent=11 // pred_fallthru
          _
      $region12: #{tpu_custom_call.1} parent=5 // pred_fallthru
        _
      %p394 = scmp.lt.s32.totalorder %s28, 2
      // Predicated region
      $region49: #{tpu_custom_call.1} parent=5 // pred_check
        %p395 = pneg %p394
      $region50: #{tpu_custom_call.1} parent=5 // pred_check_branch
        %397 = sbr.rel (%p395) target = $region52
      $region51: #{tpu_custom_call.1} parent=5 // pred_region
        // Predicated region
        $region53: #{tpu_custom_call.1} parent=51 // pred_check
          %p398 = pneg %p48
        $region54: #{tpu_custom_call.1} parent=51 // pred_check_branch
          %400 = sbr.rel (%p398) target = $region56
        $region55: #{tpu_custom_call.1} parent=51 // pred_region
          %s401 = smul.u32 8, %s28
          %p402 = scmp.lt.s32.totalorder %s401, 15
          %s403 = scalar_select %p402, %s401, 15
          %s404 = smul.addr %s403, 8
          %s405 = scalar_lea.vmem %s0, %s404
          %s406 = smul.u32 8, %s28
        $region56: #{tpu_custom_call.1} parent=51 // pred_fallthru
          _
        // Predicated region
        $region57: #{tpu_custom_call.1} parent=51 // pred_check
          %p407 = pneg %p74
        $region58: #{tpu_custom_call.1} parent=51 // pred_check_branch
          %409 = sbr.rel (%p407) target = $region60
        $region59: #{tpu_custom_call.1} parent=51 // pred_region
          %s410 = sand.u32 %s64, 1
          %s411 = scalar_lea.sflag [#allocation4], %s410
          %s412 = sand.u32 %s64, 1
          %s413 = smul.addr %s412, 64
          %s414 = scalar_lea.vmem [#allocation3], %s413
          %s415 = smul.u32 8, %s28
          %417 = vsyncadd %s411, 0
          %s418 = smul.addr %s415, 8
          %s419 = scalar_lea.hbm %s1, %s418
          %s420 = sshll.u32 %s419, 4
          %s421 = int_to_ptr.hbm [resolvable:$true] %s420
          %s422 = sshll.u32 %s414, 4
          %s423 = int_to_ptr.vmem [resolvable:$true] %s422
          %428 = dma.hbm_to_vmem [thread:$0]  %s421, 1024, %s423, %s411, 128, 128, 8
        $region60: #{tpu_custom_call.1} parent=51 // pred_fallthru
          _
        // Predicated region
        $region61: #{tpu_custom_call.1} parent=51 // pred_check
          %p429 = pneg %p100
        $region62: #{tpu_custom_call.1} parent=51 // pred_check_branch
          %431 = sbr.rel (%p429) target = $region64
        $region63: #{tpu_custom_call.1} parent=51 // pred_region
          %s432 = smul.u32 8, %s28
          %p433 = scmp.lt.s32.totalorder %s432, 15
          %s434 = scalar_select %p433, %s432, 15
          %s435 = smul.addr %s434, 8
          %s436 = scalar_lea.vmem %s2, %s435
          %s437 = smul.u32 8, %s28
        $region64: #{tpu_custom_call.1} parent=51 // pred_fallthru
          _
      $region52: #{tpu_custom_call.1} parent=5 // pred_fallthru
        _
      %p438 = scmp.le.s32.totalorder 1, %s28
      %p439 = scmp.lt.s32.totalorder %s28, 3
      %p440 = pnand %p438, %p439
      %p441 = pneg %p440
      // Predicated region
      $region65: #{tpu_custom_call.1} parent=5 // pred_check
        _
      $region66: #{tpu_custom_call.1} parent=5 // pred_check_branch
        %443 = sbr.rel (%p440) target = $region68
      $region67: #{tpu_custom_call.1} parent=5 // pred_region
        %s444 = ssub.s32 %s28, 1
        %s445 = sand.u32 %s67, 1
        %s446 = scalar_lea.sflag [#allocation4], %s445
        %s447 = sand.u32 %s67, 1
        %s448 = smul.addr %s447, 64
        %s449 = scalar_lea.vmem [#allocation3], %s448
        // Predicated region
        $region69: #{tpu_custom_call.1} parent=67 // pred_check
          %p450 = pneg %p80
        $region70: #{tpu_custom_call.1} parent=67 // pred_check_branch
          %452 = sbr.rel (%p450) target = $region72
        $region71: #{tpu_custom_call.1} parent=67 // pred_region
          %454 = dma.done %s446, 1024
        $region72: #{tpu_custom_call.1} parent=67 // pred_fallthru
          _
        // Predicated region
        $region73: #{tpu_custom_call.1} parent=67 // pred_check
          %p455 = pneg %p127
        $region74: #{tpu_custom_call.1} parent=67 // pred_check_branch
          %457 = sbr.rel (%p455) target = $region76
        $region75: #{tpu_custom_call.1} parent=67 // pred_region
          %459 = dma.done [#allocation7], 4096
        $region76: #{tpu_custom_call.1} parent=67 // pred_fallthru
          _
        // Predicated region
        $region77: #{tpu_custom_call.1} parent=67 // pred_check
          %p460 = pneg %p211
        $region78: #{tpu_custom_call.1} parent=67 // pred_check_branch
          %462 = sbr.rel (%p460) target = $region80
        $region79: #{tpu_custom_call.1} parent=67 // pred_region
          %464 = dma.done [#allocation7], 2048
        $region80: #{tpu_custom_call.1} parent=67 // pred_fallthru
          _
        // Predicated region
        $region81: #{tpu_custom_call.1} parent=67 // pred_check
          %p465 = pneg %p232
        $region82: #{tpu_custom_call.1} parent=67 // pred_check_branch
          %467 = sbr.rel (%p465) target = $region84
        $region83: #{tpu_custom_call.1} parent=67 // pred_region
          %469 = dma.done [#allocation10], 16
        $region84: #{tpu_custom_call.1} parent=67 // pred_fallthru
          _
        %s470 = smul.u32 8, %s33
        %p471 = scmp.lt.s32.totalorder %s470, 15
        %s472 = scalar_select %p471, %s470, 15
        %s473 = smul.addr %s472, 8
        %s474 = scalar_lea.vmem %s0, %s473
        %p475 = pneg %p54
        %p476 = pneg %p51
        %s477 = sand.u32 %s67, 1
        %s478 = scalar_lea.sflag [#allocation4], %s477
        %s479 = sand.u32 %s67, 1
        %s480 = smul.addr %s479, 64
        %s481 = scalar_lea.vmem [#allocation3], %s480
        %p482 = pneg %p80
        %p483 = pneg %p77
        %s484 = smul.u32 8, %s33
        %p485 = scmp.lt.s32.totalorder %s484, 15
        %s486 = scalar_select %p485, %s484, 15
        %s487 = smul.addr %s486, 8
        %s488 = scalar_lea.vmem %s2, %s487
        %p489 = pneg %p106
        %p490 = pneg %p103
        %p491 = pneg %p127
        %p492 = pneg %p124
        %p493 = pneg %p148
        %p494 = pneg %p145
        %p495 = pneg %p169
        %p496 = pneg %p166
        %p497 = pneg %p190
        %p498 = pneg %p187
        %p499 = pneg %p211
        %p500 = pneg %p208
        %p501 = pneg %p232
        %p502 = pneg %p229
        %p503 = pneg %p253
        %p504 = pneg %p250
        %p505 = pneg %p274
        %p506 = pneg %p271
        %p507 = pneg %p295
        %p508 = pneg %p292
        %p509 = pneg %p321
        %p510 = pneg %p318
        %s511 = sand.u32 %s308, 1
        %s512 = scalar_lea.sflag [#allocation5], %s511
        %s513 = sand.u32 %s308, 1
        %s514 = smul.addr %s513, 8
        %s515 = scalar_lea.vmem [#allocation11], %s514
        %s516 = smul.u32 8, %s33
        %p517 = scmp.lt.s32.totalorder %s516, 15
        %s518 = scalar_select %p517, %s516, 15
        %s519 = smul.addr %s518, 8
        %s520 = scalar_lea.vmem %s0, %s519
        %s521 = smul.u32 8, %s33
        %s522 = smul.u32 8, %s33
        %s523 = smul.u32 8, %s33
        %p524 = scmp.lt.s32.totalorder %s523, 15
        %s525 = scalar_select %p524, %s523, 15
        %s526 = smul.addr %s525, 8
        %s527 = scalar_lea.vmem %s2, %s526
        %s528 = smul.u32 8, %s33
        %v529 = vld [vmem:[%s520] sm:$0xff]
        %v530 = vld [vmem:[%s520 + $0x8] sm:$0xff]
        %v531 = vld [vmem:[%s520 + $0x10] sm:$0xff]
        %v532 = vld [vmem:[%s520 + $0x18] sm:$0xff]
        %v533 = vld [vmem:[%s520 + $0x20] sm:$0xff]
        %v534 = vld [vmem:[%s520 + $0x28] sm:$0xff]
        %v535 = vld [vmem:[%s520 + $0x30] sm:$0xff]
        %v536 = vld [vmem:[%s520 + $0x38] sm:$0xff]
        %v537 = vld [vmem:[#allocation6] sm:$0xff]
        %v538 = vld [vmem:[#allocation6 + $0x8] sm:$0xff]
        %v539 = vld [vmem:[#allocation6 + $0x10] sm:$0xff]
        %v540 = vld [vmem:[#allocation6 + $0x18] sm:$0xff]
        %v541 = vld [vmem:[#allocation6 + $0x20] sm:$0xff]
        %v542 = vld [vmem:[#allocation6 + $0x28] sm:$0xff]
        %v543 = vld [vmem:[#allocation6 + $0x30] sm:$0xff]
        %v544 = vld [vmem:[#allocation6 + $0x38] sm:$0xff]
        %v545 = vld [vmem:[#allocation6 + $0x40] sm:$0xff]
        %v546 = vld [vmem:[#allocation6 + $0x48] sm:$0xff]
        %v547 = vld [vmem:[#allocation6 + $0x50] sm:$0xff]
        %v548 = vld [vmem:[#allocation6 + $0x58] sm:$0xff]
        %v549 = vld [vmem:[#allocation6 + $0x60] sm:$0xff]
        %v550 = vld [vmem:[#allocation6 + $0x68] sm:$0xff]
        %v551 = vld [vmem:[#allocation6 + $0x70] sm:$0xff]
        %v552 = vld [vmem:[#allocation6 + $0x78] sm:$0xff]
        %v553 = vld [vmem:[#allocation6 + $0x80] sm:$0xff]
        %v554 = vld [vmem:[#allocation6 + $0x88] sm:$0xff]
        %v555 = vld [vmem:[#allocation6 + $0x90] sm:$0xff]
        %v556 = vld [vmem:[#allocation6 + $0x98] sm:$0xff]
        %v557 = vld [vmem:[#allocation6 + $0xa0] sm:$0xff]
        %v558 = vld [vmem:[#allocation6 + $0xa8] sm:$0xff]
        %v559 = vld [vmem:[#allocation6 + $0xb0] sm:$0xff]
        %v560 = vld [vmem:[#allocation6 + $0xb8] sm:$0xff]
        %v561 = vld [vmem:[#allocation6 + $0xc0] sm:$0xff]
        %v562 = vld [vmem:[#allocation6 + $0xc8] sm:$0xff]
        %v563 = vld [vmem:[#allocation6 + $0xd0] sm:$0xff]
        %v564 = vld [vmem:[#allocation6 + $0xd8] sm:$0xff]
        %v565 = vld [vmem:[#allocation6 + $0xe0] sm:$0xff]
        %v566 = vld [vmem:[#allocation6 + $0xe8] sm:$0xff]
        %v567 = vld [vmem:[#allocation6 + $0xf0] sm:$0xff]
        %v568 = vld [vmem:[#allocation6 + $0xf8] sm:$0xff]
        %v569 = vld [vmem:[%s4] sm:$0x3]
        %v571 = vperm.slane %v569, 0
        %v572 = vperm.slane %v569, 1
        %575 = vmatpush.msra.mxu0 %v567
        %576 = vmatpush.msra.mxu0 %v565
        %577 = vmatpush.msra.mxu0 %v563
        %578 = vmatpush.msra.mxu0 %v561
        %579 = vmatpush.msra.mxu0 %v559
        %580 = vmatpush.msra.mxu0 %v557
        %581 = vmatpush.msra.mxu0 %v555
        %582 = vmatpush.msra.mxu0 %v553
        %583 = vmatpush.msra.mxu0 %v551
        %584 = vmatpush.msra.mxu0 %v549
        %585 = vmatpush.msra.mxu0 %v547
        %586 = vmatpush.msra.mxu0 %v545
        %587 = vmatpush.msra.mxu0 %v543
        %588 = vmatpush.msra.mxu0 %v541
        %589 = vmatpush.msra.mxu0 %v539
        %590 = vmatpush.msra.mxu0 %v537
        %591 = vmatmul.f32.gmra.mxu0 %v529
        %v592 = vpop.f32.mrf.mxu0
        %v593 = vadd.f32 %v571, %v592
        %594 = vmatmul.f32.gmra.mxu0 %v530
        %v595 = vpop.f32.mrf.mxu0
        %v596 = vadd.f32 %v571, %v595
        %597 = vmatmul.f32.gmra.mxu0 %v531
        %v598 = vpop.f32.mrf.mxu0
        %v599 = vadd.f32 %v571, %v598
        %600 = vmatmul.f32.gmra.mxu0 %v532
        %v601 = vpop.f32.mrf.mxu0
        %v602 = vadd.f32 %v571, %v601
        %603 = vmatmul.f32.gmra.mxu0 %v533
        %v604 = vpop.f32.mrf.mxu0
        %v605 = vadd.f32 %v571, %v604
        %606 = vmatmul.f32.gmra.mxu0 %v534
        %v607 = vpop.f32.mrf.mxu0
        %v608 = vadd.f32 %v571, %v607
        %609 = vmatmul.f32.gmra.mxu0 %v535
        %v610 = vpop.f32.mrf.mxu0
        %v611 = vadd.f32 %v571, %v610
        %612 = vmatmul.f32.gmra.mxu0 %v536
        %v613 = vpop.f32.mrf.mxu0
        %v614 = vadd.f32 %v571, %v613
        %615 = vdwg.mxu0
        %616 = vmatpush.msra.mxu0 %v568
        %617 = vmatpush.msra.mxu0 %v566
        %618 = vmatpush.msra.mxu0 %v564
        %619 = vmatpush.msra.mxu0 %v562
        %620 = vmatpush.msra.mxu0 %v560
        %621 = vmatpush.msra.mxu0 %v558
        %622 = vmatpush.msra.mxu0 %v556
        %623 = vmatpush.msra.mxu0 %v554
        %624 = vmatpush.msra.mxu0 %v552
        %625 = vmatpush.msra.mxu0 %v550
        %626 = vmatpush.msra.mxu0 %v548
        %627 = vmatpush.msra.mxu0 %v546
        %628 = vmatpush.msra.mxu0 %v544
        %629 = vmatpush.msra.mxu0 %v542
        %630 = vmatpush.msra.mxu0 %v540
        %631 = vmatpush.msra.mxu0 %v538
        %632 = vmatmul.f32.gmra.mxu0 %v529
        %v633 = vpop.f32.mrf.mxu0
        %v634 = vadd.f32 %v572, %v633
        %635 = vmatmul.f32.gmra.mxu0 %v530
        %v636 = vpop.f32.mrf.mxu0
        %v637 = vadd.f32 %v572, %v636
        %638 = vmatmul.f32.gmra.mxu0 %v531
        %v639 = vpop.f32.mrf.mxu0
        %v640 = vadd.f32 %v572, %v639
        %641 = vmatmul.f32.gmra.mxu0 %v532
        %v642 = vpop.f32.mrf.mxu0
        %v643 = vadd.f32 %v572, %v642
        %644 = vmatmul.f32.gmra.mxu0 %v533
        %v645 = vpop.f32.mrf.mxu0
        %v646 = vadd.f32 %v572, %v645
        %647 = vmatmul.f32.gmra.mxu0 %v534
        %v648 = vpop.f32.mrf.mxu0
        %v649 = vadd.f32 %v572, %v648
        %650 = vmatmul.f32.gmra.mxu0 %v535
        %v651 = vpop.f32.mrf.mxu0
        %v652 = vadd.f32 %v572, %v651
        %653 = vmatmul.f32.gmra.mxu0 %v536
        %v654 = vpop.f32.mrf.mxu0
        %v655 = vadd.f32 %v572, %v654
        %656 = vdwg.mxu0
        %v657 = vld [vmem:[%s527] sm:$0xff]
        %v658 = vld [vmem:[%s527 + $0x8] sm:$0xff]
        %v659 = vld [vmem:[%s527 + $0x10] sm:$0xff]
        %v660 = vld [vmem:[%s527 + $0x18] sm:$0xff]
        %v661 = vld [vmem:[%s527 + $0x20] sm:$0xff]
        %v662 = vld [vmem:[%s527 + $0x28] sm:$0xff]
        %v663 = vld [vmem:[%s527 + $0x30] sm:$0xff]
        %v664 = vld [vmem:[%s527 + $0x38] sm:$0xff]
        %v665 = vld [vmem:[%s5] sm:$0xff]
        %v666 = vld [vmem:[%s5 + $0x8] sm:$0xff]
        %v667 = vld [vmem:[%s5 + $0x10] sm:$0xff]
        %v668 = vld [vmem:[%s5 + $0x18] sm:$0xff]
        %v669 = vld [vmem:[%s5 + $0x20] sm:$0xff]
        %v670 = vld [vmem:[%s5 + $0x28] sm:$0xff]
        %v671 = vld [vmem:[%s5 + $0x30] sm:$0xff]
        %v672 = vld [vmem:[%s5 + $0x38] sm:$0xff]
        %v673 = vld [vmem:[%s6] sm:$0x1]
        %v675 = vperm.slane %v673, 0
        %vm677 = vcmask 523264
        %v679 = vsel %vm677, %v657, 0
        %v682 = vsel %vm677, %v658, 0
        %v685 = vsel %vm677, %v659, 0
        %v688 = vsel %vm677, %v660, 0
        %v691 = vsel %vm677, %v661, 0
        %v694 = vsel %vm677, %v662, 0
        %v697 = vsel %vm677, %v663, 0
        %v700 = vsel %vm677, %v664, 0
        %702 = vmatpush.msra.mxu0 0.0
        %703 = vmatpush.msra.mxu0 0.0
        %704 = vmatpush.msra.mxu0 0.0
        %705 = vmatpush.msra.mxu0 0.0
        %706 = vmatpush.msra.mxu0 0.0
        %707 = vmatpush.msra.mxu0 0.0
        %708 = vmatpush.msra.mxu0 0.0
        %709 = vmatpush.msra.mxu0 0.0
        %710 = vmatpush.msra.mxu0 %v672
        %711 = vmatpush.msra.mxu0 %v671
        %712 = vmatpush.msra.mxu0 %v670
        %713 = vmatpush.msra.mxu0 %v669
        %714 = vmatpush.msra.mxu0 %v668
        %715 = vmatpush.msra.mxu0 %v667
        %716 = vmatpush.msra.mxu0 %v666
        %717 = vmatpush.msra.mxu0 %v665
        %718 = vmatmul.f32.gmra.mxu0 %v679
        %v719 = vpop.f32.mrf.mxu0
        %v720 = vadd.f32 %v675, %v719
        %721 = vmatmul.f32.gmra.mxu0 %v682
        %v722 = vpop.f32.mrf.mxu0
        %v723 = vadd.f32 %v675, %v722
        %724 = vmatmul.f32.gmra.mxu0 %v685
        %v725 = vpop.f32.mrf.mxu0
        %v726 = vadd.f32 %v675, %v725
        %727 = vmatmul.f32.gmra.mxu0 %v688
        %v728 = vpop.f32.mrf.mxu0
        %v729 = vadd.f32 %v675, %v728
        %730 = vmatmul.f32.gmra.mxu0 %v691
        %v731 = vpop.f32.mrf.mxu0
        %v732 = vadd.f32 %v675, %v731
        %733 = vmatmul.f32.gmra.mxu0 %v694
        %v734 = vpop.f32.mrf.mxu0
        %v735 = vadd.f32 %v675, %v734
        %736 = vmatmul.f32.gmra.mxu0 %v697
        %v737 = vpop.f32.mrf.mxu0
        %v738 = vadd.f32 %v675, %v737
        %739 = vmatmul.f32.gmra.mxu0 %v700
        %v740 = vpop.f32.mrf.mxu0
        %v741 = vadd.f32 %v675, %v740
        %742 = vdwg.mxu0
        %v743 = vld [vmem:[%s449] sm:$0xff]
        %v744 = vld [vmem:[%s449 + $0x8] sm:$0xff]
        %v745 = vld [vmem:[%s449 + $0x10] sm:$0xff]
        %v746 = vld [vmem:[%s449 + $0x18] sm:$0xff]
        %v747 = vld [vmem:[%s449 + $0x20] sm:$0xff]
        %v748 = vld [vmem:[%s449 + $0x28] sm:$0xff]
        %v749 = vld [vmem:[%s449 + $0x30] sm:$0xff]
        %v750 = vld [vmem:[%s449 + $0x38] sm:$0xff]
        %v751 = vld [vmem:[#allocation8] sm:$0xff]
        %v752 = vld [vmem:[#allocation8 + $0x8] sm:$0xff]
        %v753 = vld [vmem:[#allocation8 + $0x10] sm:$0xff]
        %v754 = vld [vmem:[#allocation8 + $0x18] sm:$0xff]
        %v755 = vld [vmem:[#allocation8 + $0x20] sm:$0xff]
        %v756 = vld [vmem:[#allocation8 + $0x28] sm:$0xff]
        %v757 = vld [vmem:[#allocation8 + $0x30] sm:$0xff]
        %v758 = vld [vmem:[#allocation8 + $0x38] sm:$0xff]
        %v759 = vld [vmem:[#allocation8 + $0x40] sm:$0xff]
        %v760 = vld [vmem:[#allocation8 + $0x48] sm:$0xff]
        %v761 = vld [vmem:[#allocation8 + $0x50] sm:$0xff]
        %v762 = vld [vmem:[#allocation8 + $0x58] sm:$0xff]
        %v763 = vld [vmem:[#allocation8 + $0x60] sm:$0xff]
        %v764 = vld [vmem:[#allocation8 + $0x68] sm:$0xff]
        %v765 = vld [vmem:[#allocation8 + $0x70] sm:$0xff]
        %v766 = vld [vmem:[#allocation8 + $0x78] sm:$0xff]
        %v767 = vld [vmem:[#allocation9] sm:$0x1]
        %v769 = vperm.slane %v767, 0
        %771 = vmatpush.msra.mxu0 %v766
        %772 = vmatpush.msra.mxu0 %v765
        %773 = vmatpush.msra.mxu0 %v764
        %774 = vmatpush.msra.mxu0 %v763
        %775 = vmatpush.msra.mxu0 %v762
        %776 = vmatpush.msra.mxu0 %v761
        %777 = vmatpush.msra.mxu0 %v760
        %778 = vmatpush.msra.mxu0 %v759
        %779 = vmatpush.msra.mxu0 %v758
        %780 = vmatpush.msra.mxu0 %v757
        %781 = vmatpush.msra.mxu0 %v756
        %782 = vmatpush.msra.mxu0 %v755
        %783 = vmatpush.msra.mxu0 %v754
        %784 = vmatpush.msra.mxu0 %v753
        %785 = vmatpush.msra.mxu0 %v752
        %786 = vmatpush.msra.mxu0 %v751
        %787 = vmatmul.f32.gmra.mxu0 %v743
        %v788 = vpop.f32.mrf.mxu0
        %v789 = vadd.f32 %v769, %v788
        %790 = vmatmul.f32.gmra.mxu0 %v744
        %v791 = vpop.f32.mrf.mxu0
        %v792 = vadd.f32 %v769, %v791
        %793 = vmatmul.f32.gmra.mxu0 %v745
        %v794 = vpop.f32.mrf.mxu0
        %v795 = vadd.f32 %v769, %v794
        %796 = vmatmul.f32.gmra.mxu0 %v746
        %v797 = vpop.f32.mrf.mxu0
        %v798 = vadd.f32 %v769, %v797
        %799 = vmatmul.f32.gmra.mxu0 %v747
        %v800 = vpop.f32.mrf.mxu0
        %v801 = vadd.f32 %v769, %v800
        %802 = vmatmul.f32.gmra.mxu0 %v748
        %v803 = vpop.f32.mrf.mxu0
        %v804 = vadd.f32 %v769, %v803
        %805 = vmatmul.f32.gmra.mxu0 %v749
        %v806 = vpop.f32.mrf.mxu0
        %v807 = vadd.f32 %v769, %v806
        %808 = vmatmul.f32.gmra.mxu0 %v750
        %v809 = vpop.f32.mrf.mxu0
        %v810 = vadd.f32 %v769, %v809
        %811 = vdwg.mxu0
        %v812 = vld [vmem:[#allocation2] sm:$0x1]
        %s813 = vtos %v812
        %v814 = vmul.f32 %v720, %v593
        %v815 = vmul.f32 %v723, %v596
        %v816 = vmul.f32 %v726, %v599
        %v817 = vmul.f32 %v729, %v602
        %v818 = vmul.f32 %v732, %v605
        %v819 = vmul.f32 %v735, %v608
        %v820 = vmul.f32 %v738, %v611
        %v821 = vmul.f32 %v741, %v614
        %822 = vadd.xlane.f32.xlu0 %v814
        %v823 = vpop.xlane.xlu0 %822
        %824 = vadd.xlane.f32.xlu0 %v815
        %v825 = vpop.xlane.xlu0 %824
        %826 = vadd.xlane.f32.xlu0 %v816
        %v827 = vpop.xlane.xlu0 %826
        %828 = vadd.xlane.f32.xlu0 %v817
        %v829 = vpop.xlane.xlu0 %828
        %830 = vadd.xlane.f32.xlu0 %v818
        %v831 = vpop.xlane.xlu0 %830
        %832 = vadd.xlane.f32.xlu0 %v819
        %v833 = vpop.xlane.xlu0 %832
        %834 = vadd.xlane.f32.xlu0 %v820
        %v835 = vpop.xlane.xlu0 %834
        %836 = vadd.xlane.f32.xlu0 %v821
        %v837 = vpop.xlane.xlu0 %836
        %v838 = vmul.f32 %v720, %v720
        %v839 = vmul.f32 %v723, %v723
        %v840 = vmul.f32 %v726, %v726
        %v841 = vmul.f32 %v729, %v729
        %v842 = vmul.f32 %v732, %v732
        %v843 = vmul.f32 %v735, %v735
        %v844 = vmul.f32 %v738, %v738
        %v845 = vmul.f32 %v741, %v741
        %846 = vadd.xlane.f32.xlu0 %v838
        %v847 = vpop.xlane.xlu0 %846
        %848 = vadd.xlane.f32.xlu0 %v839
        %v849 = vpop.xlane.xlu0 %848
        %850 = vadd.xlane.f32.xlu0 %v840
        %v851 = vpop.xlane.xlu0 %850
        %852 = vadd.xlane.f32.xlu0 %v841
        %v853 = vpop.xlane.xlu0 %852
        %854 = vadd.xlane.f32.xlu0 %v842
        %v855 = vpop.xlane.xlu0 %854
        %856 = vadd.xlane.f32.xlu0 %v843
        %v857 = vpop.xlane.xlu0 %856
        %858 = vadd.xlane.f32.xlu0 %v844
        %v859 = vpop.xlane.xlu0 %858
        %860 = vadd.xlane.f32.xlu0 %v845
        %v861 = vpop.xlane.xlu0 %860
        %v862 = vrsqrt.pop %v847
        %v863 = vmul.f32 %v862, %v847
        %v864 = vmul.f32 %v863, %v862
        %v865 = vmul.f32 0.5, %v864
        %v866 = vsub.f32 1.5, %v865
        %v867 = vmul.f32 %v862, %v866
        %v868 = vmul.f32 %v847, %v867
        %vm869 = vcmp.eq.f32.partialorder %v847, inf
        %v870 = vsel %vm869, %v847, %v868
        %vm871 = vcmp.eq.f32.partialorder %v847, 0.0
        %v872 = vand.u32 %v847, 2147483648
        %v873 = vsel %vm871, %v872, %v870
        %v874 = vrsqrt.pop %v849
        %v875 = vmul.f32 %v874, %v849
        %v876 = vmul.f32 %v875, %v874
        %v877 = vmul.f32 0.5, %v876
        %v878 = vsub.f32 1.5, %v877
        %v879 = vmul.f32 %v874, %v878
        %v880 = vmul.f32 %v849, %v879
        %vm881 = vcmp.eq.f32.partialorder %v849, inf
        %v882 = vsel %vm881, %v849, %v880
        %vm883 = vcmp.eq.f32.partialorder %v849, 0.0
        %v884 = vand.u32 %v849, 2147483648
        %v885 = vsel %vm883, %v884, %v882
        %v886 = vrsqrt.pop %v851
        %v887 = vmul.f32 %v886, %v851
        %v888 = vmul.f32 %v887, %v886
        %v889 = vmul.f32 0.5, %v888
        %v890 = vsub.f32 1.5, %v889
        %v891 = vmul.f32 %v886, %v890
        %v892 = vmul.f32 %v851, %v891
        %vm893 = vcmp.eq.f32.partialorder %v851, inf
        %v894 = vsel %vm893, %v851, %v892
        %vm895 = vcmp.eq.f32.partialorder %v851, 0.0
        %v896 = vand.u32 %v851, 2147483648
        %v897 = vsel %vm895, %v896, %v894
        %v898 = vrsqrt.pop %v853
        %v899 = vmul.f32 %v898, %v853
        %v900 = vmul.f32 %v899, %v898
        %v901 = vmul.f32 0.5, %v900
        %v902 = vsub.f32 1.5, %v901
        %v903 = vmul.f32 %v898, %v902
        %v904 = vmul.f32 %v853, %v903
        %vm905 = vcmp.eq.f32.partialorder %v853, inf
        %v906 = vsel %vm905, %v853, %v904
        %vm907 = vcmp.eq.f32.partialorder %v853, 0.0
        %v908 = vand.u32 %v853, 2147483648
        %v909 = vsel %vm907, %v908, %v906
        %v910 = vrsqrt.pop %v855
        %v911 = vmul.f32 %v910, %v855
        %v912 = vmul.f32 %v911, %v910
        %v913 = vmul.f32 0.5, %v912
        %v914 = vsub.f32 1.5, %v913
        %v915 = vmul.f32 %v910, %v914
        %v916 = vmul.f32 %v855, %v915
        %vm917 = vcmp.eq.f32.partialorder %v855, inf
        %v918 = vsel %vm917, %v855, %v916
        %vm919 = vcmp.eq.f32.partialorder %v855, 0.0
        %v920 = vand.u32 %v855, 2147483648
        %v921 = vsel %vm919, %v920, %v918
        %v922 = vrsqrt.pop %v857
        %v923 = vmul.f32 %v922, %v857
        %v924 = vmul.f32 %v923, %v922
        %v925 = vmul.f32 0.5, %v924
        %v926 = vsub.f32 1.5, %v925
        %v927 = vmul.f32 %v922, %v926
        %v928 = vmul.f32 %v857, %v927
        %vm929 = vcmp.eq.f32.partialorder %v857, inf
        %v930 = vsel %vm929, %v857, %v928
        %vm931 = vcmp.eq.f32.partialorder %v857, 0.0
        %v932 = vand.u32 %v857, 2147483648
        %v933 = vsel %vm931, %v932, %v930
        %v934 = vrsqrt.pop %v859
        %v935 = vmul.f32 %v934, %v859
        %v936 = vmul.f32 %v935, %v934
        %v937 = vmul.f32 0.5, %v936
        %v938 = vsub.f32 1.5, %v937
        %v939 = vmul.f32 %v934, %v938
        %v940 = vmul.f32 %v859, %v939
        %vm941 = vcmp.eq.f32.partialorder %v859, inf
        %v942 = vsel %vm941, %v859, %v940
        %vm943 = vcmp.eq.f32.partialorder %v859, 0.0
        %v944 = vand.u32 %v859, 2147483648
        %v945 = vsel %vm943, %v944, %v942
        %v946 = vrsqrt.pop %v861
        %v947 = vmul.f32 %v946, %v861
        %v948 = vmul.f32 %v947, %v946
        %v949 = vmul.f32 0.5, %v948
        %v950 = vsub.f32 1.5, %v949
        %v951 = vmul.f32 %v946, %v950
        %v952 = vmul.f32 %v861, %v951
        %vm953 = vcmp.eq.f32.partialorder %v861, inf
        %v954 = vsel %vm953, %v861, %v952
        %vm955 = vcmp.eq.f32.partialorder %v861, 0.0
        %v956 = vand.u32 %v861, 2147483648
        %v957 = vsel %vm955, %v956, %v954
        %v958 = vmul.f32 %v593, %v593
        %v959 = vmul.f32 %v596, %v596
        %v960 = vmul.f32 %v599, %v599
        %v961 = vmul.f32 %v602, %v602
        %v962 = vmul.f32 %v605, %v605
        %v963 = vmul.f32 %v608, %v608
        %v964 = vmul.f32 %v611, %v611
        %v965 = vmul.f32 %v614, %v614
        %966 = vadd.xlane.f32.xlu0 %v958
        %v967 = vpop.xlane.xlu0 %966
        %968 = vadd.xlane.f32.xlu0 %v959
        %v969 = vpop.xlane.xlu0 %968
        %970 = vadd.xlane.f32.xlu0 %v960
        %v971 = vpop.xlane.xlu0 %970
        %972 = vadd.xlane.f32.xlu0 %v961
        %v973 = vpop.xlane.xlu0 %972
        %974 = vadd.xlane.f32.xlu0 %v962
        %v975 = vpop.xlane.xlu0 %974
        %976 = vadd.xlane.f32.xlu0 %v963
        %v977 = vpop.xlane.xlu0 %976
        %978 = vadd.xlane.f32.xlu0 %v964
        %v979 = vpop.xlane.xlu0 %978
        %980 = vadd.xlane.f32.xlu0 %v965
        %v981 = vpop.xlane.xlu0 %980
        %v982 = vrsqrt.pop %v967
        %v983 = vmul.f32 %v982, %v967
        %v984 = vmul.f32 %v983, %v982
        %v985 = vmul.f32 0.5, %v984
        %v986 = vsub.f32 1.5, %v985
        %v987 = vmul.f32 %v982, %v986
        %v988 = vmul.f32 %v967, %v987
        %vm989 = vcmp.eq.f32.partialorder %v967, inf
        %v990 = vsel %vm989, %v967, %v988
        %vm991 = vcmp.eq.f32.partialorder %v967, 0.0
        %v992 = vand.u32 %v967, 2147483648
        %v993 = vsel %vm991, %v992, %v990
        %v994 = vrsqrt.pop %v969
        %v995 = vmul.f32 %v994, %v969
        %v996 = vmul.f32 %v995, %v994
        %v997 = vmul.f32 0.5, %v996
        %v998 = vsub.f32 1.5, %v997
        %v999 = vmul.f32 %v994, %v998
        %v1000 = vmul.f32 %v969, %v999
        %vm1001 = vcmp.eq.f32.partialorder %v969, inf
        %v1002 = vsel %vm1001, %v969, %v1000
        %vm1003 = vcmp.eq.f32.partialorder %v969, 0.0
        %v1004 = vand.u32 %v969, 2147483648
        %v1005 = vsel %vm1003, %v1004, %v1002
        %v1006 = vrsqrt.pop %v971
        %v1007 = vmul.f32 %v1006, %v971
        %v1008 = vmul.f32 %v1007, %v1006
        %v1009 = vmul.f32 0.5, %v1008
        %v1010 = vsub.f32 1.5, %v1009
        %v1011 = vmul.f32 %v1006, %v1010
        %v1012 = vmul.f32 %v971, %v1011
        %vm1013 = vcmp.eq.f32.partialorder %v971, inf
        %v1014 = vsel %vm1013, %v971, %v1012
        %vm1015 = vcmp.eq.f32.partialorder %v971, 0.0
        %v1016 = vand.u32 %v971, 2147483648
        %v1017 = vsel %vm1015, %v1016, %v1014
        %v1018 = vrsqrt.pop %v973
        %v1019 = vmul.f32 %v1018, %v973
        %v1020 = vmul.f32 %v1019, %v1018
        %v1021 = vmul.f32 0.5, %v1020
        %v1022 = vsub.f32 1.5, %v1021
        %v1023 = vmul.f32 %v1018, %v1022
        %v1024 = vmul.f32 %v973, %v1023
        %vm1025 = vcmp.eq.f32.partialorder %v973, inf
        %v1026 = vsel %vm1025, %v973, %v1024
        %vm1027 = vcmp.eq.f32.partialorder %v973, 0.0
        %v1028 = vand.u32 %v973, 2147483648
        %v1029 = vsel %vm1027, %v1028, %v1026
        %v1030 = vrsqrt.pop %v975
        %v1031 = vmul.f32 %v1030, %v975
        %v1032 = vmul.f32 %v1031, %v1030
        %v1033 = vmul.f32 0.5, %v1032
        %v1034 = vsub.f32 1.5, %v1033
        %v1035 = vmul.f32 %v1030, %v1034
        %v1036 = vmul.f32 %v975, %v1035
        %vm1037 = vcmp.eq.f32.partialorder %v975, inf
        %v1038 = vsel %vm1037, %v975, %v1036
        %vm1039 = vcmp.eq.f32.partialorder %v975, 0.0
        %v1040 = vand.u32 %v975, 2147483648
        %v1041 = vsel %vm1039, %v1040, %v1038
        %v1042 = vrsqrt.pop %v977
        %v1043 = vmul.f32 %v1042, %v977
        %v1044 = vmul.f32 %v1043, %v1042
        %v1045 = vmul.f32 0.5, %v1044
        %v1046 = vsub.f32 1.5, %v1045
        %v1047 = vmul.f32 %v1042, %v1046
        %v1048 = vmul.f32 %v977, %v1047
        %vm1049 = vcmp.eq.f32.partialorder %v977, inf
        %v1050 = vsel %vm1049, %v977, %v1048
        %vm1051 = vcmp.eq.f32.partialorder %v977, 0.0
        %v1052 = vand.u32 %v977, 2147483648
        %v1053 = vsel %vm1051, %v1052, %v1050
        %v1054 = vrsqrt.pop %v979
        %v1055 = vmul.f32 %v1054, %v979
        %v1056 = vmul.f32 %v1055, %v1054
        %v1057 = vmul.f32 0.5, %v1056
        %v1058 = vsub.f32 1.5, %v1057
        %v1059 = vmul.f32 %v1054, %v1058
        %v1060 = vmul.f32 %v979, %v1059
        %vm1061 = vcmp.eq.f32.partialorder %v979, inf
        %v1062 = vsel %vm1061, %v979, %v1060
        %vm1063 = vcmp.eq.f32.partialorder %v979, 0.0
        %v1064 = vand.u32 %v979, 2147483648
        %v1065 = vsel %vm1063, %v1064, %v1062
        %v1066 = vrsqrt.pop %v981
        %v1067 = vmul.f32 %v1066, %v981
        %v1068 = vmul.f32 %v1067, %v1066
        %v1069 = vmul.f32 0.5, %v1068
        %v1070 = vsub.f32 1.5, %v1069
        %v1071 = vmul.f32 %v1066, %v1070
        %v1072 = vmul.f32 %v981, %v1071
        %vm1073 = vcmp.eq.f32.partialorder %v981, inf
        %v1074 = vsel %vm1073, %v981, %v1072
        %vm1075 = vcmp.eq.f32.partialorder %v981, 0.0
        %v1076 = vand.u32 %v981, 2147483648
        %v1077 = vsel %vm1075, %v1076, %v1074
        %v1078 = vmul.f32 %v873, %v993
        %v1079 = vmul.f32 %v885, %v1005
        %v1080 = vmul.f32 %v897, %v1017
        %v1081 = vmul.f32 %v909, %v1029
        %v1082 = vmul.f32 %v921, %v1041
        %v1083 = vmul.f32 %v933, %v1053
        %v1084 = vmul.f32 %v945, %v1065
        %v1085 = vmul.f32 %v957, %v1077
        %v1086 = vmax.f32 %v1078, 1e-08
        %v1087 = vmax.f32 %v1079, 1e-08
        %v1088 = vmax.f32 %v1080, 1e-08
        %v1089 = vmax.f32 %v1081, 1e-08
        %v1090 = vmax.f32 %v1082, 1e-08
        %v1091 = vmax.f32 %v1083, 1e-08
        %v1092 = vmax.f32 %v1084, 1e-08
        %v1093 = vmax.f32 %v1085, 1e-08
        %v1094 = vrcp.pop %v1086
        %v1095 = vmul.f32 %v1086, %v1094
        %v1096 = vsub.f32 1.0, %v1095
        %v1097 = vmul.f32 %v1094, %v1096
        %v1098 = vadd.f32 %v1094, %v1097
        %vm1099 = vweird.f32 %v1086
        %vm1100 = vweird.f32 %v1094
        %vm1101 = vmor %vm1099, %vm1100
        %v1102 = vsel %vm1101, %v1094, %v1098
        %v1103 = vand.u32 2147483647, %v1086
        %vm1104 = vcmp.eq.f32.partialorder %v1103, 8.507059e+37
        %v1105 = vand.u32 %v1086, 2147483648
        %v1106 = vor.u32 1.1754944e-38, %v1105
        %v1107 = vsel %vm1104, %v1106, %v1102
        %v1108 = vmul.f32 %v823, %v1107
        %v1109 = vrcp.pop %v1087
        %v1110 = vmul.f32 %v1087, %v1109
        %v1111 = vsub.f32 1.0, %v1110
        %v1112 = vmul.f32 %v1109, %v1111
        %v1113 = vadd.f32 %v1109, %v1112
        %vm1114 = vweird.f32 %v1087
        %vm1115 = vweird.f32 %v1109
        %vm1116 = vmor %vm1114, %vm1115
        %v1117 = vsel %vm1116, %v1109, %v1113
        %v1118 = vand.u32 2147483647, %v1087
        %vm1119 = vcmp.eq.f32.partialorder %v1118, 8.507059e+37
        %v1120 = vand.u32 %v1087, 2147483648
        %v1121 = vor.u32 1.1754944e-38, %v1120
        %v1122 = vsel %vm1119, %v1121, %v1117
        %v1123 = vmul.f32 %v825, %v1122
        %v1124 = vrcp.pop %v1088
        %v1125 = vmul.f32 %v1088, %v1124
        %v1126 = vsub.f32 1.0, %v1125
        %v1127 = vmul.f32 %v1124, %v1126
        %v1128 = vadd.f32 %v1124, %v1127
        %vm1129 = vweird.f32 %v1088
        %vm1130 = vweird.f32 %v1124
        %vm1131 = vmor %vm1129, %vm1130
        %v1132 = vsel %vm1131, %v1124, %v1128
        %v1133 = vand.u32 2147483647, %v1088
        %vm1134 = vcmp.eq.f32.partialorder %v1133, 8.507059e+37
        %v1135 = vand.u32 %v1088, 2147483648
        %v1136 = vor.u32 1.1754944e-38, %v1135
        %v1137 = vsel %vm1134, %v1136, %v1132
        %v1138 = vmul.f32 %v827, %v1137
        %v1139 = vrcp.pop %v1089
        %v1140 = vmul.f32 %v1089, %v1139
        %v1141 = vsub.f32 1.0, %v1140
        %v1142 = vmul.f32 %v1139, %v1141
        %v1143 = vadd.f32 %v1139, %v1142
        %vm1144 = vweird.f32 %v1089
        %vm1145 = vweird.f32 %v1139
        %vm1146 = vmor %vm1144, %vm1145
        %v1147 = vsel %vm1146, %v1139, %v1143
        %v1148 = vand.u32 2147483647, %v1089
        %vm1149 = vcmp.eq.f32.partialorder %v1148, 8.507059e+37
        %v1150 = vand.u32 %v1089, 2147483648
        %v1151 = vor.u32 1.1754944e-38, %v1150
        %v1152 = vsel %vm1149, %v1151, %v1147
        %v1153 = vmul.f32 %v829, %v1152
        %v1154 = vrcp.pop %v1090
        %v1155 = vmul.f32 %v1090, %v1154
        %v1156 = vsub.f32 1.0, %v1155
        %v1157 = vmul.f32 %v1154, %v1156
        %v1158 = vadd.f32 %v1154, %v1157
        %vm1159 = vweird.f32 %v1090
        %vm1160 = vweird.f32 %v1154
        %vm1161 = vmor %vm1159, %vm1160
        %v1162 = vsel %vm1161, %v1154, %v1158
        %v1163 = vand.u32 2147483647, %v1090
        %vm1164 = vcmp.eq.f32.partialorder %v1163, 8.507059e+37
        %v1165 = vand.u32 %v1090, 2147483648
        %v1166 = vor.u32 1.1754944e-38, %v1165
        %v1167 = vsel %vm1164, %v1166, %v1162
        %v1168 = vmul.f32 %v831, %v1167
        %v1169 = vrcp.pop %v1091
        %v1170 = vmul.f32 %v1091, %v1169
        %v1171 = vsub.f32 1.0, %v1170
        %v1172 = vmul.f32 %v1169, %v1171
        %v1173 = vadd.f32 %v1169, %v1172
        %vm1174 = vweird.f32 %v1091
        %vm1175 = vweird.f32 %v1169
        %vm1176 = vmor %vm1174, %vm1175
        %v1177 = vsel %vm1176, %v1169, %v1173
        %v1178 = vand.u32 2147483647, %v1091
        %vm1179 = vcmp.eq.f32.partialorder %v1178, 8.507059e+37
        %v1180 = vand.u32 %v1091, 2147483648
        %v1181 = vor.u32 1.1754944e-38, %v1180
        %v1182 = vsel %vm1179, %v1181, %v1177
        %v1183 = vmul.f32 %v833, %v1182
        %v1184 = vrcp.pop %v1092
        %v1185 = vmul.f32 %v1092, %v1184
        %v1186 = vsub.f32 1.0, %v1185
        %v1187 = vmul.f32 %v1184, %v1186
        %v1188 = vadd.f32 %v1184, %v1187
        %vm1189 = vweird.f32 %v1092
        %vm1190 = vweird.f32 %v1184
        %vm1191 = vmor %vm1189, %vm1190
        %v1192 = vsel %vm1191, %v1184, %v1188
        %v1193 = vand.u32 2147483647, %v1092
        %vm1194 = vcmp.eq.f32.partialorder %v1193, 8.507059e+37
        %v1195 = vand.u32 %v1092, 2147483648
        %v1196 = vor.u32 1.1754944e-38, %v1195
        %v1197 = vsel %vm1194, %v1196, %v1192
        %v1198 = vmul.f32 %v835, %v1197
        %v1199 = vrcp.pop %v1093
        %v1200 = vmul.f32 %v1093, %v1199
        %v1201 = vsub.f32 1.0, %v1200
        %v1202 = vmul.f32 %v1199, %v1201
        %v1203 = vadd.f32 %v1199, %v1202
        %vm1204 = vweird.f32 %v1093
        %vm1205 = vweird.f32 %v1199
        %vm1206 = vmor %vm1204, %vm1205
        %v1207 = vsel %vm1206, %v1199, %v1203
        %v1208 = vand.u32 2147483647, %v1093
        %vm1209 = vcmp.eq.f32.partialorder %v1208, 8.507059e+37
        %v1210 = vand.u32 %v1093, 2147483648
        %v1211 = vor.u32 1.1754944e-38, %v1210
        %v1212 = vsel %vm1209, %v1211, %v1207
        %v1213 = vmul.f32 %v837, %v1212
        %v1214 = vmul.f32 %v789, %v634
        %v1215 = vmul.f32 %v792, %v637
        %v1216 = vmul.f32 %v795, %v640
        %v1217 = vmul.f32 %v798, %v643
        %v1218 = vmul.f32 %v801, %v646
        %v1219 = vmul.f32 %v804, %v649
        %v1220 = vmul.f32 %v807, %v652
        %v1221 = vmul.f32 %v810, %v655
        %1222 = vadd.xlane.f32.xlu0 %v1214
        %v1223 = vpop.xlane.xlu0 %1222
        %1224 = vadd.xlane.f32.xlu0 %v1215
        %v1225 = vpop.xlane.xlu0 %1224
        %1226 = vadd.xlane.f32.xlu0 %v1216
        %v1227 = vpop.xlane.xlu0 %1226
        %1228 = vadd.xlane.f32.xlu0 %v1217
        %v1229 = vpop.xlane.xlu0 %1228
        %1230 = vadd.xlane.f32.xlu0 %v1218
        %v1231 = vpop.xlane.xlu0 %1230
        %1232 = vadd.xlane.f32.xlu0 %v1219
        %v1233 = vpop.xlane.xlu0 %1232
        %1234 = vadd.xlane.f32.xlu0 %v1220
        %v1235 = vpop.xlane.xlu0 %1234
        %1236 = vadd.xlane.f32.xlu0 %v1221
        %v1237 = vpop.xlane.xlu0 %1236
        %v1238 = vmul.f32 %v789, %v789
        %v1239 = vmul.f32 %v792, %v792
        %v1240 = vmul.f32 %v795, %v795
        %v1241 = vmul.f32 %v798, %v798
        %v1242 = vmul.f32 %v801, %v801
        %v1243 = vmul.f32 %v804, %v804
        %v1244 = vmul.f32 %v807, %v807
        %v1245 = vmul.f32 %v810, %v810
        %1246 = vadd.xlane.f32.xlu0 %v1238
        %v1247 = vpop.xlane.xlu0 %1246
        %1248 = vadd.xlane.f32.xlu0 %v1239
        %v1249 = vpop.xlane.xlu0 %1248
        %1250 = vadd.xlane.f32.xlu0 %v1240
        %v1251 = vpop.xlane.xlu0 %1250
        %1252 = vadd.xlane.f32.xlu0 %v1241
        %v1253 = vpop.xlane.xlu0 %1252
        %1254 = vadd.xlane.f32.xlu0 %v1242
        %v1255 = vpop.xlane.xlu0 %1254
        %1256 = vadd.xlane.f32.xlu0 %v1243
        %v1257 = vpop.xlane.xlu0 %1256
        %1258 = vadd.xlane.f32.xlu0 %v1244
        %v1259 = vpop.xlane.xlu0 %1258
        %1260 = vadd.xlane.f32.xlu0 %v1245
        %v1261 = vpop.xlane.xlu0 %1260
        %v1262 = vrsqrt.pop %v1247
        %v1263 = vmul.f32 %v1262, %v1247
        %v1264 = vmul.f32 %v1263, %v1262
        %v1265 = vmul.f32 0.5, %v1264
        %v1266 = vsub.f32 1.5, %v1265
        %v1267 = vmul.f32 %v1262, %v1266
        %v1268 = vmul.f32 %v1247, %v1267
        %vm1269 = vcmp.eq.f32.partialorder %v1247, inf
        %v1270 = vsel %vm1269, %v1247, %v1268
        %vm1271 = vcmp.eq.f32.partialorder %v1247, 0.0
        %v1272 = vand.u32 %v1247, 2147483648
        %v1273 = vsel %vm1271, %v1272, %v1270
        %v1274 = vrsqrt.pop %v1249
        %v1275 = vmul.f32 %v1274, %v1249
        %v1276 = vmul.f32 %v1275, %v1274
        %v1277 = vmul.f32 0.5, %v1276
        %v1278 = vsub.f32 1.5, %v1277
        %v1279 = vmul.f32 %v1274, %v1278
        %v1280 = vmul.f32 %v1249, %v1279
        %vm1281 = vcmp.eq.f32.partialorder %v1249, inf
        %v1282 = vsel %vm1281, %v1249, %v1280
        %vm1283 = vcmp.eq.f32.partialorder %v1249, 0.0
        %v1284 = vand.u32 %v1249, 2147483648
        %v1285 = vsel %vm1283, %v1284, %v1282
        %v1286 = vrsqrt.pop %v1251
        %v1287 = vmul.f32 %v1286, %v1251
        %v1288 = vmul.f32 %v1287, %v1286
        %v1289 = vmul.f32 0.5, %v1288
        %v1290 = vsub.f32 1.5, %v1289
        %v1291 = vmul.f32 %v1286, %v1290
        %v1292 = vmul.f32 %v1251, %v1291
        %vm1293 = vcmp.eq.f32.partialorder %v1251, inf
        %v1294 = vsel %vm1293, %v1251, %v1292
        %vm1295 = vcmp.eq.f32.partialorder %v1251, 0.0
        %v1296 = vand.u32 %v1251, 2147483648
        %v1297 = vsel %vm1295, %v1296, %v1294
        %v1298 = vrsqrt.pop %v1253
        %v1299 = vmul.f32 %v1298, %v1253
        %v1300 = vmul.f32 %v1299, %v1298
        %v1301 = vmul.f32 0.5, %v1300
        %v1302 = vsub.f32 1.5, %v1301
        %v1303 = vmul.f32 %v1298, %v1302
        %v1304 = vmul.f32 %v1253, %v1303
        %vm1305 = vcmp.eq.f32.partialorder %v1253, inf
        %v1306 = vsel %vm1305, %v1253, %v1304
        %vm1307 = vcmp.eq.f32.partialorder %v1253, 0.0
        %v1308 = vand.u32 %v1253, 2147483648
        %v1309 = vsel %vm1307, %v1308, %v1306
        %v1310 = vrsqrt.pop %v1255
        %v1311 = vmul.f32 %v1310, %v1255
        %v1312 = vmul.f32 %v1311, %v1310
        %v1313 = vmul.f32 0.5, %v1312
        %v1314 = vsub.f32 1.5, %v1313
        %v1315 = vmul.f32 %v1310, %v1314
        %v1316 = vmul.f32 %v1255, %v1315
        %vm1317 = vcmp.eq.f32.partialorder %v1255, inf
        %v1318 = vsel %vm1317, %v1255, %v1316
        %vm1319 = vcmp.eq.f32.partialorder %v1255, 0.0
        %v1320 = vand.u32 %v1255, 2147483648
        %v1321 = vsel %vm1319, %v1320, %v1318
        %v1322 = vrsqrt.pop %v1257
        %v1323 = vmul.f32 %v1322, %v1257
        %v1324 = vmul.f32 %v1323, %v1322
        %v1325 = vmul.f32 0.5, %v1324
        %v1326 = vsub.f32 1.5, %v1325
        %v1327 = vmul.f32 %v1322, %v1326
        %v1328 = vmul.f32 %v1257, %v1327
        %vm1329 = vcmp.eq.f32.partialorder %v1257, inf
        %v1330 = vsel %vm1329, %v1257, %v1328
        %vm1331 = vcmp.eq.f32.partialorder %v1257, 0.0
        %v1332 = vand.u32 %v1257, 2147483648
        %v1333 = vsel %vm1331, %v1332, %v1330
        %v1334 = vrsqrt.pop %v1259
        %v1335 = vmul.f32 %v1334, %v1259
        %v1336 = vmul.f32 %v1335, %v1334
        %v1337 = vmul.f32 0.5, %v1336
        %v1338 = vsub.f32 1.5, %v1337
        %v1339 = vmul.f32 %v1334, %v1338
        %v1340 = vmul.f32 %v1259, %v1339
        %vm1341 = vcmp.eq.f32.partialorder %v1259, inf
        %v1342 = vsel %vm1341, %v1259, %v1340
        %vm1343 = vcmp.eq.f32.partialorder %v1259, 0.0
        %v1344 = vand.u32 %v1259, 2147483648
        %v1345 = vsel %vm1343, %v1344, %v1342
        %v1346 = vrsqrt.pop %v1261
        %v1347 = vmul.f32 %v1346, %v1261
        %v1348 = vmul.f32 %v1347, %v1346
        %v1349 = vmul.f32 0.5, %v1348
        %v1350 = vsub.f32 1.5, %v1349
        %v1351 = vmul.f32 %v1346, %v1350
        %v1352 = vmul.f32 %v1261, %v1351
        %vm1353 = vcmp.eq.f32.partialorder %v1261, inf
        %v1354 = vsel %vm1353, %v1261, %v1352
        %vm1355 = vcmp.eq.f32.partialorder %v1261, 0.0
        %v1356 = vand.u32 %v1261, 2147483648
        %v1357 = vsel %vm1355, %v1356, %v1354
        %v1358 = vmul.f32 %v634, %v634
        %v1359 = vmul.f32 %v637, %v637
        %v1360 = vmul.f32 %v640, %v640
        %v1361 = vmul.f32 %v643, %v643
        %v1362 = vmul.f32 %v646, %v646
        %v1363 = vmul.f32 %v649, %v649
        %v1364 = vmul.f32 %v652, %v652
        %v1365 = vmul.f32 %v655, %v655
        %1366 = vadd.xlane.f32.xlu0 %v1358
        %v1367 = vpop.xlane.xlu0 %1366
        %1368 = vadd.xlane.f32.xlu0 %v1359
        %v1369 = vpop.xlane.xlu0 %1368
        %1370 = vadd.xlane.f32.xlu0 %v1360
        %v1371 = vpop.xlane.xlu0 %1370
        %1372 = vadd.xlane.f32.xlu0 %v1361
        %v1373 = vpop.xlane.xlu0 %1372
        %1374 = vadd.xlane.f32.xlu0 %v1362
        %v1375 = vpop.xlane.xlu0 %1374
        %1376 = vadd.xlane.f32.xlu0 %v1363
        %v1377 = vpop.xlane.xlu0 %1376
        %1378 = vadd.xlane.f32.xlu0 %v1364
        %v1379 = vpop.xlane.xlu0 %1378
        %1380 = vadd.xlane.f32.xlu0 %v1365
        %v1381 = vpop.xlane.xlu0 %1380
        %v1382 = vrsqrt.pop %v1367
        %v1383 = vmul.f32 %v1382, %v1367
        %v1384 = vmul.f32 %v1383, %v1382
        %v1385 = vmul.f32 0.5, %v1384
        %v1386 = vsub.f32 1.5, %v1385
        %v1387 = vmul.f32 %v1382, %v1386
        %v1388 = vmul.f32 %v1367, %v1387
        %vm1389 = vcmp.eq.f32.partialorder %v1367, inf
        %v1390 = vsel %vm1389, %v1367, %v1388
        %vm1391 = vcmp.eq.f32.partialorder %v1367, 0.0
        %v1392 = vand.u32 %v1367, 2147483648
        %v1393 = vsel %vm1391, %v1392, %v1390
        %v1394 = vrsqrt.pop %v1369
        %v1395 = vmul.f32 %v1394, %v1369
        %v1396 = vmul.f32 %v1395, %v1394
        %v1397 = vmul.f32 0.5, %v1396
        %v1398 = vsub.f32 1.5, %v1397
        %v1399 = vmul.f32 %v1394, %v1398
        %v1400 = vmul.f32 %v1369, %v1399
        %vm1401 = vcmp.eq.f32.partialorder %v1369, inf
        %v1402 = vsel %vm1401, %v1369, %v1400
        %vm1403 = vcmp.eq.f32.partialorder %v1369, 0.0
        %v1404 = vand.u32 %v1369, 2147483648
        %v1405 = vsel %vm1403, %v1404, %v1402
        %v1406 = vrsqrt.pop %v1371
        %v1407 = vmul.f32 %v1406, %v1371
        %v1408 = vmul.f32 %v1407, %v1406
        %v1409 = vmul.f32 0.5, %v1408
        %v1410 = vsub.f32 1.5, %v1409
        %v1411 = vmul.f32 %v1406, %v1410
        %v1412 = vmul.f32 %v1371, %v1411
        %vm1413 = vcmp.eq.f32.partialorder %v1371, inf
        %v1414 = vsel %vm1413, %v1371, %v1412
        %vm1415 = vcmp.eq.f32.partialorder %v1371, 0.0
        %v1416 = vand.u32 %v1371, 2147483648
        %v1417 = vsel %vm1415, %v1416, %v1414
        %v1418 = vrsqrt.pop %v1373
        %v1419 = vmul.f32 %v1418, %v1373
        %v1420 = vmul.f32 %v1419, %v1418
        %v1421 = vmul.f32 0.5, %v1420
        %v1422 = vsub.f32 1.5, %v1421
        %v1423 = vmul.f32 %v1418, %v1422
        %v1424 = vmul.f32 %v1373, %v1423
        %vm1425 = vcmp.eq.f32.partialorder %v1373, inf
        %v1426 = vsel %vm1425, %v1373, %v1424
        %vm1427 = vcmp.eq.f32.partialorder %v1373, 0.0
        %v1428 = vand.u32 %v1373, 2147483648
        %v1429 = vsel %vm1427, %v1428, %v1426
        %v1430 = vrsqrt.pop %v1375
        %v1431 = vmul.f32 %v1430, %v1375
        %v1432 = vmul.f32 %v1431, %v1430
        %v1433 = vmul.f32 0.5, %v1432
        %v1434 = vsub.f32 1.5, %v1433
        %v1435 = vmul.f32 %v1430, %v1434
        %v1436 = vmul.f32 %v1375, %v1435
        %vm1437 = vcmp.eq.f32.partialorder %v1375, inf
        %v1438 = vsel %vm1437, %v1375, %v1436
        %vm1439 = vcmp.eq.f32.partialorder %v1375, 0.0
        %v1440 = vand.u32 %v1375, 2147483648
        %v1441 = vsel %vm1439, %v1440, %v1438
        %v1442 = vrsqrt.pop %v1377
        %v1443 = vmul.f32 %v1442, %v1377
        %v1444 = vmul.f32 %v1443, %v1442
        %v1445 = vmul.f32 0.5, %v1444
        %v1446 = vsub.f32 1.5, %v1445
        %v1447 = vmul.f32 %v1442, %v1446
        %v1448 = vmul.f32 %v1377, %v1447
        %vm1449 = vcmp.eq.f32.partialorder %v1377, inf
        %v1450 = vsel %vm1449, %v1377, %v1448
        %vm1451 = vcmp.eq.f32.partialorder %v1377, 0.0
        %v1452 = vand.u32 %v1377, 2147483648
        %v1453 = vsel %vm1451, %v1452, %v1450
        %v1454 = vrsqrt.pop %v1379
        %v1455 = vmul.f32 %v1454, %v1379
        %v1456 = vmul.f32 %v1455, %v1454
        %v1457 = vmul.f32 0.5, %v1456
        %v1458 = vsub.f32 1.5, %v1457
        %v1459 = vmul.f32 %v1454, %v1458
        %v1460 = vmul.f32 %v1379, %v1459
        %vm1461 = vcmp.eq.f32.partialorder %v1379, inf
        %v1462 = vsel %vm1461, %v1379, %v1460
        %vm1463 = vcmp.eq.f32.partialorder %v1379, 0.0
        %v1464 = vand.u32 %v1379, 2147483648
        %v1465 = vsel %vm1463, %v1464, %v1462
        %v1466 = vrsqrt.pop %v1381
        %v1467 = vmul.f32 %v1466, %v1381
        %v1468 = vmul.f32 %v1467, %v1466
        %v1469 = vmul.f32 0.5, %v1468
        %v1470 = vsub.f32 1.5, %v1469
        %v1471 = vmul.f32 %v1466, %v1470
        %v1472 = vmul.f32 %v1381, %v1471
        %vm1473 = vcmp.eq.f32.partialorder %v1381, inf
        %v1474 = vsel %vm1473, %v1381, %v1472
        %vm1475 = vcmp.eq.f32.partialorder %v1381, 0.0
        %v1476 = vand.u32 %v1381, 2147483648
        %v1477 = vsel %vm1475, %v1476, %v1474
        %v1478 = vmul.f32 %v1273, %v1393
        %v1479 = vmul.f32 %v1285, %v1405
        %v1480 = vmul.f32 %v1297, %v1417
        %v1481 = vmul.f32 %v1309, %v1429
        %v1482 = vmul.f32 %v1321, %v1441
        %v1483 = vmul.f32 %v1333, %v1453
        %v1484 = vmul.f32 %v1345, %v1465
        %v1485 = vmul.f32 %v1357, %v1477
        %v1486 = vmax.f32 %v1478, 1e-08
        %v1487 = vmax.f32 %v1479, 1e-08
        %v1488 = vmax.f32 %v1480, 1e-08
        %v1489 = vmax.f32 %v1481, 1e-08
        %v1490 = vmax.f32 %v1482, 1e-08
        %v1491 = vmax.f32 %v1483, 1e-08
        %v1492 = vmax.f32 %v1484, 1e-08
        %v1493 = vmax.f32 %v1485, 1e-08
        %v1494 = vrcp.pop %v1486
        %v1495 = vmul.f32 %v1486, %v1494
        %v1496 = vsub.f32 1.0, %v1495
        %v1497 = vmul.f32 %v1494, %v1496
        %v1498 = vadd.f32 %v1494, %v1497
        %vm1499 = vweird.f32 %v1486
        %vm1500 = vweird.f32 %v1494
        %vm1501 = vmor %vm1499, %vm1500
        %v1502 = vsel %vm1501, %v1494, %v1498
        %v1503 = vand.u32 2147483647, %v1486
        %vm1504 = vcmp.eq.f32.partialorder %v1503, 8.507059e+37
        %v1505 = vand.u32 %v1486, 2147483648
        %v1506 = vor.u32 1.1754944e-38, %v1505
        %v1507 = vsel %vm1504, %v1506, %v1502
        %v1508 = vmul.f32 %v1223, %v1507
        %v1509 = vrcp.pop %v1487
        %v1510 = vmul.f32 %v1487, %v1509
        %v1511 = vsub.f32 1.0, %v1510
        %v1512 = vmul.f32 %v1509, %v1511
        %v1513 = vadd.f32 %v1509, %v1512
        %vm1514 = vweird.f32 %v1487
        %vm1515 = vweird.f32 %v1509
        %vm1516 = vmor %vm1514, %vm1515
        %v1517 = vsel %vm1516, %v1509, %v1513
        %v1518 = vand.u32 2147483647, %v1487
        %vm1519 = vcmp.eq.f32.partialorder %v1518, 8.507059e+37
        %v1520 = vand.u32 %v1487, 2147483648
        %v1521 = vor.u32 1.1754944e-38, %v1520
        %v1522 = vsel %vm1519, %v1521, %v1517
        %v1523 = vmul.f32 %v1225, %v1522
        %v1524 = vrcp.pop %v1488
        %v1525 = vmul.f32 %v1488, %v1524
        %v1526 = vsub.f32 1.0, %v1525
        %v1527 = vmul.f32 %v1524, %v1526
        %v1528 = vadd.f32 %v1524, %v1527
        %vm1529 = vweird.f32 %v1488
        %vm1530 = vweird.f32 %v1524
        %vm1531 = vmor %vm1529, %vm1530
        %v1532 = vsel %vm1531, %v1524, %v1528
        %v1533 = vand.u32 2147483647, %v1488
        %vm1534 = vcmp.eq.f32.partialorder %v1533, 8.507059e+37
        %v1535 = vand.u32 %v1488, 2147483648
        %v1536 = vor.u32 1.1754944e-38, %v1535
        %v1537 = vsel %vm1534, %v1536, %v1532
        %v1538 = vmul.f32 %v1227, %v1537
        %v1539 = vrcp.pop %v1489
        %v1540 = vmul.f32 %v1489, %v1539
        %v1541 = vsub.f32 1.0, %v1540
        %v1542 = vmul.f32 %v1539, %v1541
        %v1543 = vadd.f32 %v1539, %v1542
        %vm1544 = vweird.f32 %v1489
        %vm1545 = vweird.f32 %v1539
        %vm1546 = vmor %vm1544, %vm1545
        %v1547 = vsel %vm1546, %v1539, %v1543
        %v1548 = vand.u32 2147483647, %v1489
        %vm1549 = vcmp.eq.f32.partialorder %v1548, 8.507059e+37
        %v1550 = vand.u32 %v1489, 2147483648
        %v1551 = vor.u32 1.1754944e-38, %v1550
        %v1552 = vsel %vm1549, %v1551, %v1547
        %v1553 = vmul.f32 %v1229, %v1552
        %v1554 = vrcp.pop %v1490
        %v1555 = vmul.f32 %v1490, %v1554
        %v1556 = vsub.f32 1.0, %v1555
        %v1557 = vmul.f32 %v1554, %v1556
        %v1558 = vadd.f32 %v1554, %v1557
        %vm1559 = vweird.f32 %v1490
        %vm1560 = vweird.f32 %v1554
        %vm1561 = vmor %vm1559, %vm1560
        %v1562 = vsel %vm1561, %v1554, %v1558
        %v1563 = vand.u32 2147483647, %v1490
        %vm1564 = vcmp.eq.f32.partialorder %v1563, 8.507059e+37
        %v1565 = vand.u32 %v1490, 2147483648
        %v1566 = vor.u32 1.1754944e-38, %v1565
        %v1567 = vsel %vm1564, %v1566, %v1562
        %v1568 = vmul.f32 %v1231, %v1567
        %v1569 = vrcp.pop %v1491
        %v1570 = vmul.f32 %v1491, %v1569
        %v1571 = vsub.f32 1.0, %v1570
        %v1572 = vmul.f32 %v1569, %v1571
        %v1573 = vadd.f32 %v1569, %v1572
        %vm1574 = vweird.f32 %v1491
        %vm1575 = vweird.f32 %v1569
        %vm1576 = vmor %vm1574, %vm1575
        %v1577 = vsel %vm1576, %v1569, %v1573
        %v1578 = vand.u32 2147483647, %v1491
        %vm1579 = vcmp.eq.f32.partialorder %v1578, 8.507059e+37
        %v1580 = vand.u32 %v1491, 2147483648
        %v1581 = vor.u32 1.1754944e-38, %v1580
        %v1582 = vsel %vm1579, %v1581, %v1577
        %v1583 = vmul.f32 %v1233, %v1582
        %v1584 = vrcp.pop %v1492
        %v1585 = vmul.f32 %v1492, %v1584
        %v1586 = vsub.f32 1.0, %v1585
        %v1587 = vmul.f32 %v1584, %v1586
        %v1588 = vadd.f32 %v1584, %v1587
        %vm1589 = vweird.f32 %v1492
        %vm1590 = vweird.f32 %v1584
        %vm1591 = vmor %vm1589, %vm1590
        %v1592 = vsel %vm1591, %v1584, %v1588
        %v1593 = vand.u32 2147483647, %v1492
        %vm1594 = vcmp.eq.f32.partialorder %v1593, 8.507059e+37
        %v1595 = vand.u32 %v1492, 2147483648
        %v1596 = vor.u32 1.1754944e-38, %v1595
        %v1597 = vsel %vm1594, %v1596, %v1592
        %v1598 = vmul.f32 %v1235, %v1597
        %v1599 = vrcp.pop %v1493
        %v1600 = vmul.f32 %v1493, %v1599
        %v1601 = vsub.f32 1.0, %v1600
        %v1602 = vmul.f32 %v1599, %v1601
        %v1603 = vadd.f32 %v1599, %v1602
        %vm1604 = vweird.f32 %v1493
        %vm1605 = vweird.f32 %v1599
        %vm1606 = vmor %vm1604, %vm1605
        %v1607 = vsel %vm1606, %v1599, %v1603
        %v1608 = vand.u32 2147483647, %v1493
        %vm1609 = vcmp.eq.f32.partialorder %v1608, 8.507059e+37
        %v1610 = vand.u32 %v1493, 2147483648
        %v1611 = vor.u32 1.1754944e-38, %v1610
        %v1612 = vsel %vm1609, %v1611, %v1607
        %v1613 = vmul.f32 %v1237, %v1612
        %v1614 = vsub.f32 %v1108, %v1508
        %v1615 = vsub.f32 %v1123, %v1523
        %v1616 = vsub.f32 %v1138, %v1538
        %v1617 = vsub.f32 %v1153, %v1553
        %v1618 = vsub.f32 %v1168, %v1568
        %v1619 = vsub.f32 %v1183, %v1583
        %v1620 = vsub.f32 %v1198, %v1598
        %v1621 = vsub.f32 %v1213, %v1613
        %v1622 = vstv %s813
        %v1623 = vmul.f32 %v1614, %v1622
        %v1624 = vmul.f32 %v1615, %v1622
        %v1625 = vmul.f32 %v1616, %v1622
        %v1626 = vmul.f32 %v1617, %v1622
        %v1627 = vmul.f32 %v1618, %v1622
        %v1628 = vmul.f32 %v1619, %v1622
        %v1629 = vmul.f32 %v1620, %v1622
        %v1630 = vmul.f32 %v1621, %v1622
        %v1631 = vld [vmem:[%s10] sm:$0xff]
        %v1632 = vld [vmem:[%s10 + $0x8] sm:$0xff]
        %v1633 = vld [vmem:[%s10 + $0x10] sm:$0xff]
        %v1634 = vld [vmem:[%s10 + $0x18] sm:$0xff]
        %v1635 = vld [vmem:[%s10 + $0x20] sm:$0xff]
        %v1636 = vld [vmem:[%s10 + $0x28] sm:$0xff]
        %v1637 = vld [vmem:[%s10 + $0x30] sm:$0xff]
        %v1638 = vld [vmem:[%s10 + $0x38] sm:$0xff]
        %vm1639 = vcmp.gt.f32.partialorder %v1631, 0.5
        %vm1640 = vcmp.gt.f32.partialorder %v1632, 0.5
        %vm1641 = vcmp.gt.f32.partialorder %v1633, 0.5
        %vm1642 = vcmp.gt.f32.partialorder %v1634, 0.5
        %vm1643 = vcmp.gt.f32.partialorder %v1635, 0.5
        %vm1644 = vcmp.gt.f32.partialorder %v1636, 0.5
        %vm1645 = vcmp.gt.f32.partialorder %v1637, 0.5
        %vm1646 = vcmp.gt.f32.partialorder %v1638, 0.5
        %v1647 = vsel %vm1639, %v1623, -inf
        %v1648 = vsel %vm1640, %v1624, -inf
        %v1649 = vsel %vm1641, %v1625, -inf
        %v1650 = vsel %vm1642, %v1626, -inf
        %v1651 = vsel %vm1643, %v1627, -inf
        %v1652 = vsel %vm1644, %v1628, -inf
        %v1653 = vsel %vm1645, %v1629, -inf
        %v1654 = vsel %vm1646, %v1630, -inf
        %vm1655 = vcmask 64512
        %v1656 = vsel %vm1655, %v1647, -inf
        %v1657 = vsel %vm1655, %v1648, -inf
        %v1658 = vsel %vm1655, %v1649, -inf
        %v1659 = vsel %vm1655, %v1650, -inf
        %v1660 = vsel %vm1655, %v1651, -inf
        %v1661 = vmax.f32 %v1656, %v1660
        %v1662 = vsel %vm1655, %v1652, -inf
        %v1663 = vmax.f32 %v1657, %v1662
        %v1664 = vsel %vm1655, %v1653, -inf
        %v1665 = vmax.f32 %v1658, %v1664
        %v1666 = vsel %vm1655, %v1654, -inf
        %v1667 = vmax.f32 %v1659, %v1666
        %v1668 = vmax.f32 %v1661, %v1663
        %v1669 = vmax.f32 %v1665, %v1667
        %v1670 = vmax.f32 %v1668, %v1669
        %v1671 = vrot.slane %v1670, 4
        %v1672 = vmax.f32 %v1670, %v1671
        %v1673 = vrot.slane %v1672, 2
        %v1674 = vmax.f32 %v1672, %v1673
        %v1675 = vrot.slane %v1674, 1
        %v1676 = vmax.f32 %v1674, %v1675
        %v1677 = vmul.f32 %v1631, %v1676
        %v1678 = vmul.f32 %v1632, %v1676
        %v1679 = vmul.f32 %v1633, %v1676
        %v1680 = vmul.f32 %v1634, %v1676
        %v1681 = vmul.f32 %v1635, %v1676
        %v1682 = vmul.f32 %v1636, %v1676
        %v1683 = vmul.f32 %v1637, %v1676
        %v1684 = vmul.f32 %v1638, %v1676
        %v1685 = vsel %vm1655, %v1677, 0.0
        %1686 = vadd.xlane.f32.xlu0 %v1685
        %v1687 = vpop.xlane.xlu0 %1686
        %v1688 = vsel %vm1655, %v1678, 0.0
        %1689 = vadd.xlane.f32.xlu0 %v1688
        %v1690 = vpop.xlane.xlu0 %1689
        %v1691 = vsel %vm1655, %v1679, 0.0
        %1692 = vadd.xlane.f32.xlu0 %v1691
        %v1693 = vpop.xlane.xlu0 %1692
        %v1694 = vsel %vm1655, %v1680, 0.0
        %1695 = vadd.xlane.f32.xlu0 %v1694
        %v1696 = vpop.xlane.xlu0 %1695
        %v1697 = vsel %vm1655, %v1681, 0.0
        %1698 = vadd.xlane.f32.xlu0 %v1697
        %v1699 = vpop.xlane.xlu0 %1698
        %v1700 = vsel %vm1655, %v1682, 0.0
        %1701 = vadd.xlane.f32.xlu0 %v1700
        %v1702 = vpop.xlane.xlu0 %1701
        %v1703 = vsel %vm1655, %v1683, 0.0
        %1704 = vadd.xlane.f32.xlu0 %v1703
        %v1705 = vpop.xlane.xlu0 %1704
        %v1706 = vsel %vm1655, %v1684, 0.0
        %1707 = vadd.xlane.f32.xlu0 %v1706
        %v1708 = vpop.xlane.xlu0 %1707
        %v1709 = vsub.f32 %v1623, %v1687
        %v1710 = vsub.f32 %v1624, %v1690
        %v1711 = vsub.f32 %v1625, %v1693
        %v1712 = vsub.f32 %v1626, %v1696
        %v1713 = vsub.f32 %v1627, %v1699
        %v1714 = vsub.f32 %v1628, %v1702
        %v1715 = vsub.f32 %v1629, %v1705
        %v1716 = vsub.f32 %v1630, %v1708
        %v1717 = vmul.f32 %v1709, 1.442695
        %v1718 = vpow.pop %v1717
        %v1719 = vmul.f32 %v1710, 1.442695
        %v1720 = vpow.pop %v1719
        %v1721 = vmul.f32 %v1711, 1.442695
        %v1722 = vpow.pop %v1721
        %v1723 = vmul.f32 %v1712, 1.442695
        %v1724 = vpow.pop %v1723
        %v1725 = vmul.f32 %v1713, 1.442695
        %v1726 = vpow.pop %v1725
        %v1727 = vmul.f32 %v1714, 1.442695
        %v1728 = vpow.pop %v1727
        %v1729 = vmul.f32 %v1715, 1.442695
        %v1730 = vpow.pop %v1729
        %v1731 = vmul.f32 %v1716, 1.442695
        %v1732 = vpow.pop %v1731
        %v1733 = vmul.f32 %v1631, %v1718
        %v1734 = vmul.f32 %v1632, %v1720
        %v1735 = vmul.f32 %v1633, %v1722
        %v1736 = vmul.f32 %v1634, %v1724
        %v1737 = vmul.f32 %v1635, %v1726
        %v1738 = vmul.f32 %v1636, %v1728
        %v1739 = vmul.f32 %v1637, %v1730
        %v1740 = vmul.f32 %v1638, %v1732
        %v1741 = vsel %vm1655, %v1733, 0.0
        %v1742 = vsel %vm1655, %v1734, 0.0
        %v1743 = vadd.f32 %v1741, %v1742
        %v1744 = vsel %vm1655, %v1735, 0.0
        %v1745 = vadd.f32 %v1743, %v1744
        %v1746 = vsel %vm1655, %v1736, 0.0
        %v1747 = vadd.f32 %v1745, %v1746
        %v1748 = vsel %vm1655, %v1737, 0.0
        %v1749 = vadd.f32 %v1747, %v1748
        %v1750 = vsel %vm1655, %v1738, 0.0
        %v1751 = vadd.f32 %v1749, %v1750
        %v1752 = vsel %vm1655, %v1739, 0.0
        %v1753 = vadd.f32 %v1751, %v1752
        %v1754 = vsel %vm1655, %v1740, 0.0
        %v1755 = vadd.f32 %v1753, %v1754
        %v1756 = vrot.slane %v1755, 4
        %v1757 = vadd.f32 %v1755, %v1756
        %v1758 = vrot.slane %v1757, 2
        %v1759 = vadd.f32 %v1757, %v1758
        %v1760 = vrot.slane %v1759, 1
        %v1761 = vadd.f32 %v1759, %v1760
        %v1762 = vmul.f32 %v1631, %v1761
        %v1763 = vmul.f32 %v1632, %v1761
        %v1764 = vmul.f32 %v1633, %v1761
        %v1765 = vmul.f32 %v1634, %v1761
        %v1766 = vmul.f32 %v1635, %v1761
        %v1767 = vmul.f32 %v1636, %v1761
        %v1768 = vmul.f32 %v1637, %v1761
        %v1769 = vmul.f32 %v1638, %v1761
        %v1770 = vsel %vm1655, %v1762, 0.0
        %1771 = vadd.xlane.f32.xlu0 %v1770
        %v1772 = vpop.xlane.xlu0 %1771
        %v1773 = vsel %vm1655, %v1763, 0.0
        %1774 = vadd.xlane.f32.xlu0 %v1773
        %v1775 = vpop.xlane.xlu0 %1774
        %v1776 = vsel %vm1655, %v1764, 0.0
        %1777 = vadd.xlane.f32.xlu0 %v1776
        %v1778 = vpop.xlane.xlu0 %1777
        %v1779 = vsel %vm1655, %v1765, 0.0
        %1780 = vadd.xlane.f32.xlu0 %v1779
        %v1781 = vpop.xlane.xlu0 %1780
        %v1782 = vsel %vm1655, %v1766, 0.0
        %1783 = vadd.xlane.f32.xlu0 %v1782
        %v1784 = vpop.xlane.xlu0 %1783
        %v1785 = vsel %vm1655, %v1767, 0.0
        %1786 = vadd.xlane.f32.xlu0 %v1785
        %v1787 = vpop.xlane.xlu0 %1786
        %v1788 = vsel %vm1655, %v1768, 0.0
        %1789 = vadd.xlane.f32.xlu0 %v1788
        %v1790 = vpop.xlane.xlu0 %1789
        %v1791 = vsel %vm1655, %v1769, 0.0
        %1792 = vadd.xlane.f32.xlu0 %v1791
        %v1793 = vpop.xlane.xlu0 %1792
        %v1794 = vrcp.pop %v1772
        %v1795 = vrcp.pop %v1775
        %v1796 = vrcp.pop %v1778
        %v1797 = vrcp.pop %v1781
        %v1798 = vrcp.pop %v1784
        %v1799 = vrcp.pop %v1787
        %v1800 = vrcp.pop %v1790
        %v1801 = vrcp.pop %v1793
        %v1802 = vmul.f32 %v1718, %v1794
        %v1803 = vmul.f32 %v1720, %v1795
        %v1804 = vmul.f32 %v1722, %v1796
        %v1805 = vmul.f32 %v1724, %v1797
        %v1806 = vmul.f32 %v1726, %v1798
        %v1807 = vmul.f32 %v1728, %v1799
        %v1808 = vmul.f32 %v1730, %v1800
        %v1809 = vmul.f32 %v1732, %v1801
        %v1810 = vmul.f32 %v1802, %v529
        %v1811 = vmul.f32 %v1803, %v530
        %v1812 = vmul.f32 %v1804, %v531
        %v1813 = vmul.f32 %v1805, %v532
        %v1814 = vmul.f32 %v1806, %v533
        %v1815 = vmul.f32 %v1807, %v534
        %v1816 = vmul.f32 %v1808, %v535
        %v1817 = vmul.f32 %v1809, %v536
        %v1818 = vld [vmem:[%s9] sm:$0xff]
        %v1820 = vsel %vm677, %v1818, 0
        %1822 = vmatpush.msra.mxu0 0.0
        %1823 = vmatpush.msra.mxu0 0.0
        %1824 = vmatpush.msra.mxu0 0.0
        %1825 = vmatpush.msra.mxu0 0.0
        %1826 = vmatpush.msra.mxu0 0.0
        %1827 = vmatpush.msra.mxu0 0.0
        %1828 = vmatpush.msra.mxu0 0.0
        %1829 = vmatpush.msra.mxu0 0.0
        %1830 = vmatpush.msra.mxu0 %v1817
        %1831 = vmatpush.msra.mxu0 %v1816
        %1832 = vmatpush.msra.mxu0 %v1815
        %1833 = vmatpush.msra.mxu0 %v1814
        %1834 = vmatpush.msra.mxu0 %v1813
        %1835 = vmatpush.msra.mxu0 %v1812
        %1836 = vmatpush.msra.mxu0 %v1811
        %1837 = vmatpush.msra.mxu0 %v1810
        %1838 = vmatmul.f32.gmra.mxu0 %v1820
        %v1839 = vpop.f32.mrf.mxu0
        %v1840 = vadd.f32 0.0, %v1839
        %1841 = vdwg.mxu0
        %1842 = vst [vmem:[%s515] sm:$0xff] %v1840
        %s1843 = sand.u32 %s308, 1
        %s1844 = scalar_lea.sflag [#allocation5], %s1843
        %s1845 = sand.u32 %s308, 1
        %s1846 = smul.addr %s1845, 8
        %s1847 = scalar_lea.vmem [#allocation11], %s1846
        // Predicated region
        $region85: #{tpu_custom_call.1} parent=67 // pred_check
          %p1848 = pneg %p318
        $region86: #{tpu_custom_call.1} parent=67 // pred_check_branch
          %1850 = sbr.rel (%p1848) target = $region88
        $region87: #{tpu_custom_call.1} parent=67 // pred_region
          %1852 = vsyncadd %s1844, 0
          %s1853 = smul.addr %s33, 8
          %s1854 = scalar_lea.hbm %s12, %s1853
          %s1856 = sshll.u32 %s1847, 4
          %s1857 = int_to_ptr.vmem [resolvable:$true] %s1856
          %s1858 = sshll.u32 %s1854, 4
          %s1859 = int_to_ptr.hbm [resolvable:$true] %s1858
          %1861 = dma.vmem_to_hbm [thread:$0]  %s1857, 128, %s1859, %s1844
        $region88: #{tpu_custom_call.1} parent=67 // pred_fallthru
          _
      $region68: #{tpu_custom_call.1} parent=5 // pred_fallthru
        _
      %p1862 = scmp.le.s32.totalorder 2, %s28
      // Predicated region
      $region89: #{tpu_custom_call.1} parent=5 // pred_check
        %p1863 = pneg %p1862
      $region90: #{tpu_custom_call.1} parent=5 // pred_check_branch
        %1865 = sbr.rel (%p1863) target = $region92
      $region91: #{tpu_custom_call.1} parent=5 // pred_region
        %s1866 = ssub.s32 %s28, 2
        // Predicated region
        $region93: #{tpu_custom_call.1} parent=91 // pred_check
          %p1867 = pneg %p324
        $region94: #{tpu_custom_call.1} parent=91 // pred_check_branch
          %1869 = sbr.rel (%p1867) target = $region96
        $region95: #{tpu_custom_call.1} parent=91 // pred_region
          %s1870 = sand.u32 %s309, 1
          %s1871 = scalar_lea.sflag [#allocation5], %s1870
          %s1872 = sand.u32 %s309, 1
          %s1873 = smul.addr %s1872, 8
          %s1874 = scalar_lea.vmem [#allocation11], %s1873
          %1876 = dma.done %s1871, 128
        $region96: #{tpu_custom_call.1} parent=91 // pred_fallthru
          _
      $region92: #{tpu_custom_call.1} parent=5 // pred_fallthru
        _
    $region6: #{tpu_custom_call.1} parent=1 // loop_footer
      %s32 = sadd.s32 1, %s28
    $region7: #{tpu_custom_call.1} parent=1 // loop_footer_branch
      %27 = sbr.rel target = $region3
    $region8: #{tpu_custom_call.1} parent=1 // loop_exit
      _
    %1877 = vsyncpa [#allocation4], 1
    %s1878 = scalar_lea.sflag [#allocation4], 1
    %1879 = vsyncpa %s1878, 1
    %1880 = vsyncpa [#allocation7], 1
    %1881 = vsyncpa [#allocation10], 1
    %1882 = vsyncpa [#allocation5], 1
    %s1883 = scalar_lea.sflag [#allocation5], 1
    %1884 = vsyncpa %s1883, 1

</llo_original>
